<compile_context>
chip_gen: v7x
topology: tpu7x:2x2x1
jax: 0.10.0
libtpu: 0.0.40
codegen_flags: <defaults>
</compile_context>

<pallas_src>
import jax
import jax.numpy as jnp
from jax.experimental import pallas as pl
from jax.experimental.pallas import tpu as pltpu


def _parallel_conv_kernel(x_ref, w3_ref, b3_ref, w1_ref, b1_ref, o_ref):
    # x_ref : (tb, H+2, W+2, Cin)   zero-padded NHWC input tile
    # w3_ref: (3, 3, Cin, Cout)     3x3 branch weights (HWIO)
    # b3_ref: (1, Cout)
    # w1_ref: (Cin, Cout)           1x1 branch weights
    # b1_ref: (1, Cout)
    # o_ref : (tb, H, W, Cout)
    tb, H, W, Cout = o_ref.shape
    Cin = x_ref.shape[-1]
    rows = tb * H * W

    x = x_ref[...]
    w3 = w3_ref[...]

    # Branch 2 (1x1 conv on the centre tap) seeds the accumulator.
    center = x[:, 1:1 + H, 1:1 + W, :].reshape(rows, Cin)
    acc = jnp.dot(center, w1_ref[...], preferred_element_type=jnp.float32)

    # Branch 1: 3x3 conv with padding=1 as nine shifted matmuls on the MXU.
    for dy in range(3):
        for dx in range(3):
            patch = x[:, dy:dy + H, dx:dx + W, :].reshape(rows, Cin)
            acc = acc + jnp.dot(patch, w3[dy, dx],
                                preferred_element_type=jnp.float32)

    # Parallel sums the branch outputs; biases sum likewise. Direct store (no concat).
    acc = acc + (b3_ref[...] + b1_ref[...])
    o_ref[...] = acc.reshape(tb, H, W, Cout).astype(o_ref.dtype)


def parallel_conv(x, w3, b3, w1, b1, *, block_b=1):
    """Fused Parallel(Conv2d(Cin,Cout,3,pad=1), Conv2d(Cin,Cout,1)).

    Args (PyTorch layouts):
      x : (B, Cin, H, W) float32
      w3: (Cout, Cin, 3, 3), b3: (Cout,)
      w1: (Cout, Cin, 1, 1), b1: (Cout,)
    Returns (B, Cout, H, W) float32.
    """
    B, Cin, H, W = x.shape
    Cout = w3.shape[0]
    assert B % block_b == 0, "block_b must divide the batch"

    # Glue at the pallas_call boundary: layout conversion + zero padding.
    x_nhwc = jnp.transpose(x.astype(jnp.float32), (0, 2, 3, 1))
    x_pad = jnp.pad(x_nhwc, ((0, 0), (1, 1), (1, 1), (0, 0)))
    w3_hwio = jnp.transpose(w3, (2, 3, 1, 0)).astype(jnp.float32)      # (3,3,Cin,Cout)
    w1_io = jnp.transpose(w1[:, :, 0, 0], (1, 0)).astype(jnp.float32)  # (Cin,Cout)
    b3_2d = b3.reshape(1, Cout).astype(jnp.float32)
    b1_2d = b1.reshape(1, Cout).astype(jnp.float32)

    grid = (B // block_b,)
    out_nhwc = pl.pallas_call(
        _parallel_conv_kernel,
        out_shape=jax.ShapeDtypeStruct((B, H, W, Cout), jnp.float32),
        grid_spec=pltpu.PrefetchScalarGridSpec(
            num_scalar_prefetch=0,
            grid=grid,
            in_specs=[
                pl.BlockSpec((block_b, H + 2, W + 2, Cin),
                             lambda i: (i, 0, 0, 0)),
                pl.BlockSpec((3, 3, Cin, Cout), lambda i: (0, 0, 0, 0)),
                pl.BlockSpec((1, Cout), lambda i: (0, 0)),
                pl.BlockSpec((Cin, Cout), lambda i: (0, 0)),
                pl.BlockSpec((1, Cout), lambda i: (0, 0)),
            ],
            out_specs=pl.BlockSpec((block_b, H, W, Cout),
                                   lambda i: (i, 0, 0, 0)),
        ),
        compiler_params=pltpu.CompilerParams(
            dimension_semantics=("parallel",),
        ),
    )(x_pad, w3_hwio, b3_2d, w1_io, b1_2d)

    return jnp.transpose(out_nhwc, (0, 3, 1, 2))


def parallel_ref(x, w3, b3, w1, b1):
    """Pure-JAX reference mirroring the PyTorch forward (conv3x3(x) + conv1x1(x))."""
    x_nhwc = jnp.transpose(x, (0, 2, 3, 1))
    dn = ("NHWC", "HWIO", "NHWC")
    y3 = jax.lax.conv_general_dilated(
        x_nhwc, jnp.transpose(w3, (2, 3, 1, 0)), (1, 1), "SAME",
        dimension_numbers=dn, precision=jax.lax.Precision.HIGHEST)
    y1 = jax.lax.conv_general_dilated(
        x_nhwc, jnp.transpose(w1, (2, 3, 1, 0)), (1, 1), "SAME",
        dimension_numbers=dn, precision=jax.lax.Precision.HIGHEST)
    y = (y3 + b3.reshape(1, 1, 1, -1)) + (y1 + b1.reshape(1, 1, 1, -1))
    return jnp.transpose(y, (0, 3, 1, 2))


if __name__ == "__main__":
    B, CIN, COUT, H, W = 2, 4, 8, 16, 16

    key = jax.random.PRNGKey(0)
    kx, k3w, k3b, k1w, k1b = jax.random.split(key, 5)
    x = jax.random.normal(kx, (B, CIN, H, W), dtype=jnp.float32)
    w3 = jax.random.normal(k3w, (COUT, CIN, 3, 3), dtype=jnp.float32) * 0.1
    b3 = jax.random.normal(k3b, (COUT,), dtype=jnp.float32) * 0.1
    w1 = jax.random.normal(k1w, (COUT, CIN, 1, 1), dtype=jnp.float32) * 0.1
    b1 = jax.random.normal(k1b, (COUT,), dtype=jnp.float32) * 0.1

    out = parallel_conv(x, w3, b3, w1, b1, block_b=1)
    out = jax.block_until_ready(out)

    ref = parallel_ref(x, w3, b3, w1, b1)
    assert out.shape == (B, COUT, H, W), out.shape
    max_err = float(jnp.max(jnp.abs(out - ref)))
    assert max_err < 2e-2, f"mismatch vs reference: max_err={max_err}"

    print("KERNEL_OK")
</pallas_src>

<mosaic_0001>
module attributes {stable_mosaic.version = 11 : i64} {
  func.func @_parallel_conv_kernel(%arg0: i32, %arg1: memref<1x18x18x4xf32, #tpu.memory_space<vmem>>, %arg2: memref<3x3x4x8xf32, #tpu.memory_space<vmem>>, %arg3: memref<1x8xf32, #tpu.memory_space<vmem>>, %arg4: memref<4x8xf32, #tpu.memory_space<vmem>>, %arg5: memref<1x8xf32, #tpu.memory_space<vmem>>, %arg6: memref<1x16x16x8xf32, #tpu.memory_space<vmem>>) attributes {dimension_semantics = [#tpu.dimension_semantics<parallel>], iteration_bounds = array<i64: 2>, scalar_prefetch = 0 : i64, scratch_operands = 0 : i64, tpu.core_type = #tpu.core_type<tc>, window_params = [{transform_indices = @transform_0, window_bounds = array<i64: 1, 18, 18, 4>}, {pipeline_mode = #tpu.pipeline_mode<synchronous>, transform_indices = @transform_1, window_bounds = array<i64: 3, 3, 4, 8>}, {pipeline_mode = #tpu.pipeline_mode<synchronous>, transform_indices = @transform_2, window_bounds = array<i64: 1, 8>}, {pipeline_mode = #tpu.pipeline_mode<synchronous>, transform_indices = @transform_3, window_bounds = array<i64: 4, 8>}, {pipeline_mode = #tpu.pipeline_mode<synchronous>, transform_indices = @transform_4, window_bounds = array<i64: 1, 8>}, {transform_indices = @transform_5, window_bounds = array<i64: 1, 16, 16, 8>}]} {
    %c0 = arith.constant 0 : index
    %c0_0 = arith.constant 0 : index
    %c0_1 = arith.constant 0 : index
    %c0_2 = arith.constant 0 : index
    %0 = vector.load %arg1[%c0, %c0_0, %c0_1, %c0_2] : memref<1x18x18x4xf32, #tpu.memory_space<vmem>>, vector<1x18x18x4xf32>
    %c0_3 = arith.constant 0 : index
    %c0_4 = arith.constant 0 : index
    %c0_5 = arith.constant 0 : index
    %c0_6 = arith.constant 0 : index
    %1 = vector.load %arg2[%c0_3, %c0_4, %c0_5, %c0_6] : memref<3x3x4x8xf32, #tpu.memory_space<vmem>>, vector<3x3x4x8xf32>
    %2 = vector.extract_strided_slice %0 {offsets = [0, 1, 1, 0], sizes = [1, 16, 16, 4], strides = [1, 1, 1, 1]} : vector<1x18x18x4xf32> to vector<1x16x16x4xf32>
    %3 = vector.shape_cast %2 : vector<1x16x16x4xf32> to vector<256x4xf32>
    %c0_7 = arith.constant 0 : index
    %c0_8 = arith.constant 0 : index
    %4 = vector.load %arg4[%c0_7, %c0_8] : memref<4x8xf32, #tpu.memory_space<vmem>>, vector<4x8xf32>
    %cst = arith.constant dense<0.000000e+00> : vector<256x8xf32>
    %5 = tpu.matmul %3, %4, %cst {dimension_numbers = #tpu.dot_dimension_numbers<[1], [0], [0], [1], [0, 0, 1, 1], [], []>} : vector<256x4xf32>, vector<4x8xf32>, vector<256x8xf32> -> vector<256x8xf32>
    %6 = vector.extract_strided_slice %0 {offsets = [0, 0, 0, 0], sizes = [1, 16, 16, 4], strides = [1, 1, 1, 1]} : vector<1x18x18x4xf32> to vector<1x16x16x4xf32>
    %7 = vector.shape_cast %6 : vector<1x16x16x4xf32> to vector<256x4xf32>
    %8 = vector.extract_strided_slice %1 {offsets = [0, 0, 0, 0], sizes = [1, 1, 4, 8], strides = [1, 1, 1, 1]} : vector<3x3x4x8xf32> to vector<1x1x4x8xf32>
    %9 = vector.shape_cast %8 : vector<1x1x4x8xf32> to vector<4x8xf32>
    %cst_9 = arith.constant dense<0.000000e+00> : vector<256x8xf32>
    %10 = tpu.matmul %7, %9, %cst_9 {dimension_numbers = #tpu.dot_dimension_numbers<[1], [0], [0], [1], [0, 0, 1, 1], [], []>} : vector<256x4xf32>, vector<4x8xf32>, vector<256x8xf32> -> vector<256x8xf32>
    %11 = arith.addf %5, %10 : vector<256x8xf32>
    %12 = vector.extract_strided_slice %0 {offsets = [0, 0, 1, 0], sizes = [1, 16, 16, 4], strides = [1, 1, 1, 1]} : vector<1x18x18x4xf32> to vector<1x16x16x4xf32>
    %13 = vector.shape_cast %12 : vector<1x16x16x4xf32> to vector<256x4xf32>
    %14 = vector.extract_strided_slice %1 {offsets = [0, 1, 0, 0], sizes = [1, 1, 4, 8], strides = [1, 1, 1, 1]} : vector<3x3x4x8xf32> to vector<1x1x4x8xf32>
    %15 = vector.shape_cast %14 : vector<1x1x4x8xf32> to vector<4x8xf32>
    %cst_10 = arith.constant dense<0.000000e+00> : vector<256x8xf32>
    %16 = tpu.matmul %13, %15, %cst_10 {dimension_numbers = #tpu.dot_dimension_numbers<[1], [0], [0], [1], [0, 0, 1, 1], [], []>} : vector<256x4xf32>, vector<4x8xf32>, vector<256x8xf32> -> vector<256x8xf32>
    %17 = arith.addf %11, %16 : vector<256x8xf32>
    %18 = vector.extract_strided_slice %0 {offsets = [0, 0, 2, 0], sizes = [1, 16, 16, 4], strides = [1, 1, 1, 1]} : vector<1x18x18x4xf32> to vector<1x16x16x4xf32>
    %19 = vector.shape_cast %18 : vector<1x16x16x4xf32> to vector<256x4xf32>
    %20 = vector.extract_strided_slice %1 {offsets = [0, 2, 0, 0], sizes = [1, 1, 4, 8], strides = [1, 1, 1, 1]} : vector<3x3x4x8xf32> to vector<1x1x4x8xf32>
    %21 = vector.shape_cast %20 : vector<1x1x4x8xf32> to vector<4x8xf32>
    %cst_11 = arith.constant dense<0.000000e+00> : vector<256x8xf32>
    %22 = tpu.matmul %19, %21, %cst_11 {dimension_numbers = #tpu.dot_dimension_numbers<[1], [0], [0], [1], [0, 0, 1, 1], [], []>} : vector<256x4xf32>, vector<4x8xf32>, vector<256x8xf32> -> vector<256x8xf32>
    %23 = arith.addf %17, %22 : vector<256x8xf32>
    %24 = vector.extract_strided_slice %0 {offsets = [0, 1, 0, 0], sizes = [1, 16, 16, 4], strides = [1, 1, 1, 1]} : vector<1x18x18x4xf32> to vector<1x16x16x4xf32>
    %25 = vector.shape_cast %24 : vector<1x16x16x4xf32> to vector<256x4xf32>
    %26 = vector.extract_strided_slice %1 {offsets = [1, 0, 0, 0], sizes = [1, 1, 4, 8], strides = [1, 1, 1, 1]} : vector<3x3x4x8xf32> to vector<1x1x4x8xf32>
    %27 = vector.shape_cast %26 : vector<1x1x4x8xf32> to vector<4x8xf32>
    %cst_12 = arith.constant dense<0.000000e+00> : vector<256x8xf32>
    %28 = tpu.matmul %25, %27, %cst_12 {dimension_numbers = #tpu.dot_dimension_numbers<[1], [0], [0], [1], [0, 0, 1, 1], [], []>} : vector<256x4xf32>, vector<4x8xf32>, vector<256x8xf32> -> vector<256x8xf32>
    %29 = arith.addf %23, %28 : vector<256x8xf32>
    %30 = vector.extract_strided_slice %0 {offsets = [0, 1, 1, 0], sizes = [1, 16, 16, 4], strides = [1, 1, 1, 1]} : vector<1x18x18x4xf32> to vector<1x16x16x4xf32>
    %31 = vector.shape_cast %30 : vector<1x16x16x4xf32> to vector<256x4xf32>
    %32 = vector.extract_strided_slice %1 {offsets = [1, 1, 0, 0], sizes = [1, 1, 4, 8], strides = [1, 1, 1, 1]} : vector<3x3x4x8xf32> to vector<1x1x4x8xf32>
    %33 = vector.shape_cast %32 : vector<1x1x4x8xf32> to vector<4x8xf32>
    %cst_13 = arith.constant dense<0.000000e+00> : vector<256x8xf32>
    %34 = tpu.matmul %31, %33, %cst_13 {dimension_numbers = #tpu.dot_dimension_numbers<[1], [0], [0], [1], [0, 0, 1, 1], [], []>} : vector<256x4xf32>, vector<4x8xf32>, vector<256x8xf32> -> vector<256x8xf32>
    %35 = arith.addf %29, %34 : vector<256x8xf32>
    %36 = vector.extract_strided_slice %0 {offsets = [0, 1, 2, 0], sizes = [1, 16, 16, 4], strides = [1, 1, 1, 1]} : vector<1x18x18x4xf32> to vector<1x16x16x4xf32>
    %37 = vector.shape_cast %36 : vector<1x16x16x4xf32> to vector<256x4xf32>
    %38 = vector.extract_strided_slice %1 {offsets = [1, 2, 0, 0], sizes = [1, 1, 4, 8], strides = [1, 1, 1, 1]} : vector<3x3x4x8xf32> to vector<1x1x4x8xf32>
    %39 = vector.shape_cast %38 : vector<1x1x4x8xf32> to vector<4x8xf32>
    %cst_14 = arith.constant dense<0.000000e+00> : vector<256x8xf32>
    %40 = tpu.matmul %37, %39, %cst_14 {dimension_numbers = #tpu.dot_dimension_numbers<[1], [0], [0], [1], [0, 0, 1, 1], [], []>} : vector<256x4xf32>, vector<4x8xf32>, vector<256x8xf32> -> vector<256x8xf32>
    %41 = arith.addf %35, %40 : vector<256x8xf32>
    %42 = vector.extract_strided_slice %0 {offsets = [0, 2, 0, 0], sizes = [1, 16, 16, 4], strides = [1, 1, 1, 1]} : vector<1x18x18x4xf32> to vector<1x16x16x4xf32>
    %43 = vector.shape_cast %42 : vector<1x16x16x4xf32> to vector<256x4xf32>
    %44 = vector.extract_strided_slice %1 {offsets = [2, 0, 0, 0], sizes = [1, 1, 4, 8], strides = [1, 1, 1, 1]} : vector<3x3x4x8xf32> to vector<1x1x4x8xf32>
    %45 = vector.shape_cast %44 : vector<1x1x4x8xf32> to vector<4x8xf32>
    %cst_15 = arith.constant dense<0.000000e+00> : vector<256x8xf32>
    %46 = tpu.matmul %43, %45, %cst_15 {dimension_numbers = #tpu.dot_dimension_numbers<[1], [0], [0], [1], [0, 0, 1, 1], [], []>} : vector<256x4xf32>, vector<4x8xf32>, vector<256x8xf32> -> vector<256x8xf32>
    %47 = arith.addf %41, %46 : vector<256x8xf32>
    %48 = vector.extract_strided_slice %0 {offsets = [0, 2, 1, 0], sizes = [1, 16, 16, 4], strides = [1, 1, 1, 1]} : vector<1x18x18x4xf32> to vector<1x16x16x4xf32>
    %49 = vector.shape_cast %48 : vector<1x16x16x4xf32> to vector<256x4xf32>
    %50 = vector.extract_strided_slice %1 {offsets = [2, 1, 0, 0], sizes = [1, 1, 4, 8], strides = [1, 1, 1, 1]} : vector<3x3x4x8xf32> to vector<1x1x4x8xf32>
    %51 = vector.shape_cast %50 : vector<1x1x4x8xf32> to vector<4x8xf32>
    %cst_16 = arith.constant dense<0.000000e+00> : vector<256x8xf32>
    %52 = tpu.matmul %49, %51, %cst_16 {dimension_numbers = #tpu.dot_dimension_numbers<[1], [0], [0], [1], [0, 0, 1, 1], [], []>} : vector<256x4xf32>, vector<4x8xf32>, vector<256x8xf32> -> vector<256x8xf32>
    %53 = arith.addf %47, %52 : vector<256x8xf32>
    %54 = vector.extract_strided_slice %0 {offsets = [0, 2, 2, 0], sizes = [1, 16, 16, 4], strides = [1, 1, 1, 1]} : vector<1x18x18x4xf32> to vector<1x16x16x4xf32>
    %55 = vector.shape_cast %54 : vector<1x16x16x4xf32> to vector<256x4xf32>
    %56 = vector.extract_strided_slice %1 {offsets = [2, 2, 0, 0], sizes = [1, 1, 4, 8], strides = [1, 1, 1, 1]} : vector<3x3x4x8xf32> to vector<1x1x4x8xf32>
    %57 = vector.shape_cast %56 : vector<1x1x4x8xf32> to vector<4x8xf32>
    %cst_17 = arith.constant dense<0.000000e+00> : vector<256x8xf32>
    %58 = tpu.matmul %55, %57, %cst_17 {dimension_numbers = #tpu.dot_dimension_numbers<[1], [0], [0], [1], [0, 0, 1, 1], [], []>} : vector<256x4xf32>, vector<4x8xf32>, vector<256x8xf32> -> vector<256x8xf32>
    %59 = arith.addf %53, %58 : vector<256x8xf32>
    %c0_18 = arith.constant 0 : index
    %c0_19 = arith.constant 0 : index
    %60 = vector.load %arg3[%c0_18, %c0_19] : memref<1x8xf32, #tpu.memory_space<vmem>>, vector<1x8xf32>
    %c0_20 = arith.constant 0 : index
    %c0_21 = arith.constant 0 : index
    %61 = vector.load %arg5[%c0_20, %c0_21] : memref<1x8xf32, #tpu.memory_space<vmem>>, vector<1x8xf32>
    %62 = arith.addf %60, %61 : vector<1x8xf32>
    %63 = vector.broadcast %62 : vector<1x8xf32> to vector<256x8xf32>
    %64 = arith.addf %59, %63 : vector<256x8xf32>
    %65 = vector.shape_cast %64 : vector<256x8xf32> to vector<1x16x16x8xf32>
    %c0_22 = arith.constant 0 : index
    %c0_23 = arith.constant 0 : index
    %c0_24 = arith.constant 0 : index
    %c0_25 = arith.constant 0 : index
    %66 = vector.load %arg6[%c0_22, %c0_23, %c0_24, %c0_25] : memref<1x16x16x8xf32, #tpu.memory_space<vmem>>, vector<1x16x16x8xf32>
    tpu.vector_store %arg6[%c0_22, %c0_23, %c0_24, %c0_25], %65 {strides = array<i32>} : memref<1x16x16x8xf32, #tpu.memory_space<vmem>>, vector<1x16x16x8xf32>,
    return
  }
  func.func @transform_0(%arg0: i32) -> (i32, i32, i32, i32) {
    %c0_i32 = arith.constant 0 : i32
    %c0_i32_0 = arith.constant 0 : i32
    %c0_i32_1 = arith.constant 0 : i32
    %c0_i32_2 = arith.constant 0 : i32
    return %arg0, %c0_i32, %c0_i32_0, %c0_i32_1 : i32, i32, i32, i32
  }
  func.func @transform_1(%arg0: i32) -> (i32, i32, i32, i32) {
    %c0_i32 = arith.constant 0 : i32
    %c0_i32_0 = arith.constant 0 : i32
    %c0_i32_1 = arith.constant 0 : i32
    %c0_i32_2 = arith.constant 0 : i32
    %c0_i32_3 = arith.constant 0 : i32
    return %c0_i32, %c0_i32_0, %c0_i32_1, %c0_i32_2 : i32, i32, i32, i32
  }
  func.func @transform_2(%arg0: i32) -> (i32, i32) {
    %c0_i32 = arith.constant 0 : i32
    %c0_i32_0 = arith.constant 0 : i32
    %c0_i32_1 = arith.constant 0 : i32
    return %c0_i32, %c0_i32_0 : i32, i32
  }
  func.func @transform_3(%arg0: i32) -> (i32, i32) {
    %c0_i32 = arith.constant 0 : i32
    %c0_i32_0 = arith.constant 0 : i32
    %c0_i32_1 = arith.constant 0 : i32
    return %c0_i32, %c0_i32_0 : i32, i32
  }
  func.func @transform_4(%arg0: i32) -> (i32, i32) {
    %c0_i32 = arith.constant 0 : i32
    %c0_i32_0 = arith.constant 0 : i32
    %c0_i32_1 = arith.constant 0 : i32
    return %c0_i32, %c0_i32_0 : i32, i32
  }
  func.func @transform_5(%arg0: i32) -> (i32, i32, i32, i32) {
    %c0_i32 = arith.constant 0 : i32
    %c0_i32_0 = arith.constant 0 : i32
    %c0_i32_1 = arith.constant 0 : i32
    %c0_i32_2 = arith.constant 0 : i32
    return %arg0, %c0_i32, %c0_i32_0, %c0_i32_1 : i32, i32, i32, i32
  }
}

</mosaic_0001>

<llo_original>
// kernel: tpu_custom_call.1
$region0: #{tpu_custom_call.1}
  #allocation0 [shape = 'u32[]', space=smem, size = 0x4, offset = 0x4, fixed_abs, tag = 'smem constant byte address 0x4 - core index']
  #allocation1 [shape = 'u32[144,128]{1,0:T(1,128)}', space=vmem, size = 0x12000, scoped, tag = 'internal scratch']
  %s0 = inlined_call_operand.vmem [shape: f32[2,18,18,4], index: 0, kind: input, shape index: {}]
  %s1 = inlined_call_operand.vmem [shape: f32[3,3,4,8], index: 1, kind: input, shape index: {}]
  %s2 = inlined_call_operand.vmem [shape: f32[1,8], index: 2, kind: input, shape index: {}]
  %s3 = inlined_call_operand.vmem [shape: f32[4,8], index: 3, kind: input, shape index: {}]
  %s4 = inlined_call_operand.vmem [shape: f32[1,8], index: 4, kind: input, shape index: {}]
  %s5 = inlined_call_operand.vmem [shape: f32[2,16,16,8], index: 5, kind: output, shape index: {}]
  %s6 = sld [smem:[#allocation0]]
  $region53: #{tpu_custom_call.1} parent=0
    _
  %s8 = ssub.s32 1, %s6
  %s9 = scalar_select 0, %s8, %s6
  loop: start=0, step=1, limit=4
  $region2: #{tpu_custom_call.1} parent=0 // loop_pre_header
    _
  $region3: #{tpu_custom_call.1} parent=0 // loop_header
    %s11 = sphi 0, %s15
    %p12 = scmp.ge.s32.totalorder %s11, 4
    %s21 = sphi 0, %s23
    %s24 = sphi 0, %s21
    %s25 = sphi 0, %s24
    %s41 = sphi 0, %s25
    %s45 = sphi 0, %s45
    %s47 = sphi 0, %s45
    %s48 = sphi 0, %s47
    %s62 = sphi 0, %s48
    %s66 = sphi 0, %s66
    %s68 = sphi 0, %s66
    %s69 = sphi 0, %s68
    %s83 = sphi 0, %s69
    %s87 = sphi 0, %s87
    %s89 = sphi 0, %s87
    %s90 = sphi 0, %s89
    %s104 = sphi 0, %s90
    %s108 = sphi 0, %s108
    %s110 = sphi 0, %s108
    %s111 = sphi 0, %s110
    %s125 = sphi 0, %s111
    %s131 = sphi 0, %s133
    %s134 = sphi 0, %s131
    %s135 = sphi 0, %s134
    %s151 = sphi 0, %s135
  $region4: #{tpu_custom_call.1} parent=0 // loop_header_branch
    %14 = sbr.rel (%p12) target = $region8
  $region5: #{tpu_custom_call.1} parent=0 // loop_body
    %s16 = ssub.s32 %s11, 1
    %s17 = ssub.s32 %s11, 2
    %s18 = sadd.s32 %s11, 1
    %s19 = ssub.s32 %s11, %s18
    %p20 = scmp.eq.s32.totalorder %s19, 0
    %s22 = sadd.s32 %s21, 1
    %s23 = scalar_select %p20, %s21, %s22
    %p26 = pneg %p20
    %p27 = scmp.eq.s32.totalorder %s11, 1
    %p28 = por %p26, %p27
    %p29 = scmp.ne.s32.totalorder %s21, %s24
    %p30 = scmp.eq.s32.totalorder %s11, 0
    %p31 = por %p29, %p30
    %p32 = scmp.ne.s32.totalorder %s21, %s24
    %p33 = scmp.eq.s32.totalorder %s16, 1
    %p34 = por %p32, %p33
    %p35 = scmp.ne.s32.totalorder %s24, %s25
    %p36 = scmp.eq.s32.totalorder %s16, 0
    %p37 = por %p35, %p36
    %p38 = scmp.ne.s32.totalorder %s24, %s25
    %p39 = scmp.eq.s32.totalorder %s17, 1
    %p40 = por %p38, %p39
    %p42 = scmp.ne.s32.totalorder %s25, %s41
    %p43 = scmp.eq.s32.totalorder %s17, 0
    %p44 = por %p42, %p43
    %s46 = sadd.s32 %s45, 1
    %p49 = scmp.eq.s32.totalorder %s11, 1
    %p50 = scmp.ne.s32.totalorder %s45, %s47
    %p51 = scmp.eq.s32.totalorder %s11, 0
    %p52 = por %p50, %p51
    %p53 = scmp.ne.s32.totalorder %s45, %s47
    %p54 = scmp.eq.s32.totalorder %s16, 1
    %p55 = por %p53, %p54
    %p56 = scmp.ne.s32.totalorder %s47, %s48
    %p57 = scmp.eq.s32.totalorder %s16, 0
    %p58 = por %p56, %p57
    %p59 = scmp.ne.s32.totalorder %s47, %s48
    %p60 = scmp.eq.s32.totalorder %s17, 1
    %p61 = por %p59, %p60
    %p63 = scmp.ne.s32.totalorder %s48, %s62
    %p64 = scmp.eq.s32.totalorder %s17, 0
    %p65 = por %p63, %p64
    %s67 = sadd.s32 %s66, 1
    %p70 = scmp.eq.s32.totalorder %s11, 1
    %p71 = scmp.ne.s32.totalorder %s66, %s68
    %p72 = scmp.eq.s32.totalorder %s11, 0
    %p73 = por %p71, %p72
    %p74 = scmp.ne.s32.totalorder %s66, %s68
    %p75 = scmp.eq.s32.totalorder %s16, 1
    %p76 = por %p74, %p75
    %p77 = scmp.ne.s32.totalorder %s68, %s69
    %p78 = scmp.eq.s32.totalorder %s16, 0
    %p79 = por %p77, %p78
    %p80 = scmp.ne.s32.totalorder %s68, %s69
    %p81 = scmp.eq.s32.totalorder %s17, 1
    %p82 = por %p80, %p81
    %p84 = scmp.ne.s32.totalorder %s69, %s83
    %p85 = scmp.eq.s32.totalorder %s17, 0
    %p86 = por %p84, %p85
    %s88 = sadd.s32 %s87, 1
    %p91 = scmp.eq.s32.totalorder %s11, 1
    %p92 = scmp.ne.s32.totalorder %s87, %s89
    %p93 = scmp.eq.s32.totalorder %s11, 0
    %p94 = por %p92, %p93
    %p95 = scmp.ne.s32.totalorder %s87, %s89
    %p96 = scmp.eq.s32.totalorder %s16, 1
    %p97 = por %p95, %p96
    %p98 = scmp.ne.s32.totalorder %s89, %s90
    %p99 = scmp.eq.s32.totalorder %s16, 0
    %p100 = por %p98, %p99
    %p101 = scmp.ne.s32.totalorder %s89, %s90
    %p102 = scmp.eq.s32.totalorder %s17, 1
    %p103 = por %p101, %p102
    %p105 = scmp.ne.s32.totalorder %s90, %s104
    %p106 = scmp.eq.s32.totalorder %s17, 0
    %p107 = por %p105, %p106
    %s109 = sadd.s32 %s108, 1
    %p112 = scmp.eq.s32.totalorder %s11, 1
    %p113 = scmp.ne.s32.totalorder %s108, %s110
    %p114 = scmp.eq.s32.totalorder %s11, 0
    %p115 = por %p113, %p114
    %p116 = scmp.ne.s32.totalorder %s108, %s110
    %p117 = scmp.eq.s32.totalorder %s16, 1
    %p118 = por %p116, %p117
    %p119 = scmp.ne.s32.totalorder %s110, %s111
    %p120 = scmp.eq.s32.totalorder %s16, 0
    %p121 = por %p119, %p120
    %p122 = scmp.ne.s32.totalorder %s110, %s111
    %p123 = scmp.eq.s32.totalorder %s17, 1
    %p124 = por %p122, %p123
    %p126 = scmp.ne.s32.totalorder %s111, %s125
    %p127 = scmp.eq.s32.totalorder %s17, 0
    %p128 = por %p126, %p127
    %s129 = ssub.s32 %s11, %s18
    %p130 = scmp.eq.s32.totalorder %s129, 0
    %s132 = sadd.s32 %s131, 1
    %s133 = scalar_select %p130, %s131, %s132
    %p136 = pneg %p130
    %p137 = scmp.eq.s32.totalorder %s11, 1
    %p138 = por %p136, %p137
    %p139 = scmp.ne.s32.totalorder %s131, %s134
    %p140 = scmp.eq.s32.totalorder %s11, 0
    %p141 = por %p139, %p140
    %p142 = scmp.ne.s32.totalorder %s131, %s134
    %p143 = scmp.eq.s32.totalorder %s16, 1
    %p144 = por %p142, %p143
    %p145 = scmp.ne.s32.totalorder %s134, %s135
    %p146 = scmp.eq.s32.totalorder %s16, 0
    %p147 = por %p145, %p146
    %p148 = scmp.ne.s32.totalorder %s134, %s135
    %p149 = scmp.eq.s32.totalorder %s17, 1
    %p150 = por %p148, %p149
    %p152 = scmp.ne.s32.totalorder %s135, %s151
    %p153 = scmp.eq.s32.totalorder %s17, 0
    %p154 = por %p152, %p153
    %p155 = scmp.le.s32.totalorder 1, %s11
    %p156 = scmp.lt.s32.totalorder %s11, 3
    %p157 = pnand %p155, %p156
    %p158 = pneg %p157
    // Predicated region
    $region9: #{tpu_custom_call.1} parent=5 // pred_check
      _
    $region10: #{tpu_custom_call.1} parent=5 // pred_check_branch
      %160 = sbr.rel (%p157) target = $region12
    $region11: #{tpu_custom_call.1} parent=5 // pred_region
      %s161 = ssub.s32 %s11, 1
      // Predicated region
      $region13: #{tpu_custom_call.1} parent=11 // pred_check
        %p162 = pneg %p58
      $region14: #{tpu_custom_call.1} parent=11 // pred_check_branch
        %164 = sbr.rel (%p162) target = $region16
      $region15: #{tpu_custom_call.1} parent=11 // pred_region
        _
      $region16: #{tpu_custom_call.1} parent=11 // pred_fallthru
        _
      // Predicated region
      $region17: #{tpu_custom_call.1} parent=11 // pred_check
        %p165 = pneg %p79
      $region18: #{tpu_custom_call.1} parent=11 // pred_check_branch
        %167 = sbr.rel (%p165) target = $region20
      $region19: #{tpu_custom_call.1} parent=11 // pred_region
        _
      $region20: #{tpu_custom_call.1} parent=11 // pred_fallthru
        _
      // Predicated region
      $region21: #{tpu_custom_call.1} parent=11 // pred_check
        %p168 = pneg %p100
      $region22: #{tpu_custom_call.1} parent=11 // pred_check_branch
        %170 = sbr.rel (%p168) target = $region24
      $region23: #{tpu_custom_call.1} parent=11 // pred_region
        _
      $region24: #{tpu_custom_call.1} parent=11 // pred_fallthru
        _
      // Predicated region
      $region25: #{tpu_custom_call.1} parent=11 // pred_check
        %p171 = pneg %p121
      $region26: #{tpu_custom_call.1} parent=11 // pred_check_branch
        %173 = sbr.rel (%p171) target = $region28
      $region27: #{tpu_custom_call.1} parent=11 // pred_region
        _
      $region28: #{tpu_custom_call.1} parent=11 // pred_fallthru
        _
    $region12: #{tpu_custom_call.1} parent=5 // pred_fallthru
      _
    %p174 = scmp.lt.s32.totalorder %s11, 2
    // Predicated region
    $region29: #{tpu_custom_call.1} parent=5 // pred_check
      %p175 = pneg %p174
    $region30: #{tpu_custom_call.1} parent=5 // pred_check_branch
      %177 = sbr.rel (%p175) target = $region32
    $region31: #{tpu_custom_call.1} parent=5 // pred_region
      // Predicated region
      $region33: #{tpu_custom_call.1} parent=31 // pred_check
        %p178 = pneg %p31
      $region34: #{tpu_custom_call.1} parent=31 // pred_check_branch
        %180 = sbr.rel (%p178) target = $region36
      $region35: #{tpu_custom_call.1} parent=31 // pred_region
        %p181 = scmp.lt.s32.totalorder %s11, 1
        %s182 = scalar_select %p181, %s11, 1
        %s183 = smul.addr %s182, 54
        %s184 = smul.addr %s183, 8
        %s185 = scalar_lea.vmem %s0, %s184
      $region36: #{tpu_custom_call.1} parent=31 // pred_fallthru
        _
    $region32: #{tpu_custom_call.1} parent=5 // pred_fallthru
      _
    %p186 = scmp.le.s32.totalorder 1, %s11
    %p187 = scmp.lt.s32.totalorder %s11, 3
    %p188 = pnand %p186, %p187
    %p189 = pneg %p188
    // Predicated region
    $region37: #{tpu_custom_call.1} parent=5 // pred_check
      _
    $region38: #{tpu_custom_call.1} parent=5 // pred_check_branch
      %191 = sbr.rel (%p188) target = $region40
    $region39: #{tpu_custom_call.1} parent=5 // pred_region
      %s192 = ssub.s32 %s11, 1
      %p193 = scmp.lt.s32.totalorder %s16, 1
      %s194 = scalar_select %p193, %s16, 1
      %s195 = smul.addr %s194, 54
      %s196 = smul.addr %s195, 8
      %s197 = scalar_lea.vmem %s0, %s196
      %p198 = pneg %p37
      %p199 = pneg %p34
      %p200 = pneg %p58
      %p201 = pneg %p55
      %p202 = pneg %p79
      %p203 = pneg %p76
      %p204 = pneg %p100
      %p205 = pneg %p97
      %p206 = pneg %p121
      %p207 = pneg %p118
      %p208 = pneg %p147
      %p209 = pneg %p144
      %p210 = scmp.lt.s32.totalorder %s16, 1
      %s211 = scalar_select %p210, %s16, 1
      %s212 = smul.addr %s211, 32
      %s213 = smul.addr %s212, 8
      %s214 = scalar_lea.vmem %s5, %s213
      %p215 = scmp.lt.s32.totalorder %s16, 1
      %s216 = scalar_select %p215, %s16, 1
      %s217 = smul.addr %s216, 54
      %s218 = smul.addr %s217, 8
      %s219 = scalar_lea.vmem %s0, %s218
      %p220 = scmp.lt.s32.totalorder %s16, 1
      %s221 = scalar_select %p220, %s16, 1
      %s222 = smul.addr %s221, 32
      %s223 = smul.addr %s222, 8
      %s224 = scalar_lea.vmem %s5, %s223
      %v225 = vld [vmem:[%s219] sm:$0xff]
      %v226 = vld [vmem:[%s219 + $0x8] sm:$0xff]
      %v227 = vld [vmem:[%s219 + $0x10] sm:$0x3]
      %v228 = vld [vmem:[%s219 + $0x18] sm:$0xff]
      %v229 = vld [vmem:[%s219 + $0x20] sm:$0xff]
      %v230 = vld [vmem:[%s219 + $0x28] sm:$0x3]
      %v231 = vld [vmem:[%s219 + $0x30] sm:$0xff]
      %v232 = vld [vmem:[%s219 + $0x38] sm:$0xff]
      %v233 = vld [vmem:[%s219 + $0x40] sm:$0x3]
      %v234 = vld [vmem:[%s219 + $0x48] sm:$0xff]
      %v235 = vld [vmem:[%s219 + $0x50] sm:$0xff]
      %v236 = vld [vmem:[%s219 + $0x58] sm:$0x3]
      %v237 = vld [vmem:[%s219 + $0x60] sm:$0xff]
      %v238 = vld [vmem:[%s219 + $0x68] sm:$0xff]
      %v239 = vld [vmem:[%s219 + $0x70] sm:$0x3]
      %v240 = vld [vmem:[%s219 + $0x78] sm:$0xff]
      %v241 = vld [vmem:[%s219 + $0x80] sm:$0xff]
      %v242 = vld [vmem:[%s219 + $0x88] sm:$0x3]
      %v243 = vld [vmem:[%s219 + $0x90] sm:$0xff]
      %v244 = vld [vmem:[%s219 + $0x98] sm:$0xff]
      %v245 = vld [vmem:[%s219 + $0xa0] sm:$0x3]
      %v246 = vld [vmem:[%s219 + $0xa8] sm:$0xff]
      %v247 = vld [vmem:[%s219 + $0xb0] sm:$0xff]
      %v248 = vld [vmem:[%s219 + $0xb8] sm:$0x3]
      %v249 = vld [vmem:[%s219 + $0xc0] sm:$0xff]
      %v250 = vld [vmem:[%s219 + $0xc8] sm:$0xff]
      %v251 = vld [vmem:[%s219 + $0xd0] sm:$0x3]
      %v252 = vld [vmem:[%s219 + $0xd8] sm:$0xff]
      %v253 = vld [vmem:[%s219 + $0xe0] sm:$0xff]
      %v254 = vld [vmem:[%s219 + $0xe8] sm:$0x3]
      %v255 = vld [vmem:[%s219 + $0xf0] sm:$0xff]
      %v256 = vld [vmem:[%s219 + $0xf8] sm:$0xff]
      %v257 = vld [vmem:[%s219 + $0x100] sm:$0x3]
      %v258 = vld [vmem:[%s219 + $0x108] sm:$0xff]
      %v259 = vld [vmem:[%s219 + $0x110] sm:$0xff]
      %v260 = vld [vmem:[%s219 + $0x118] sm:$0x3]
      %v261 = vld [vmem:[%s219 + $0x120] sm:$0xff]
      %v262 = vld [vmem:[%s219 + $0x128] sm:$0xff]
      %v263 = vld [vmem:[%s219 + $0x130] sm:$0x3]
      %v264 = vld [vmem:[%s219 + $0x138] sm:$0xff]
      %v265 = vld [vmem:[%s219 + $0x140] sm:$0xff]
      %v266 = vld [vmem:[%s219 + $0x148] sm:$0x3]
      %v267 = vld [vmem:[%s219 + $0x150] sm:$0xff]
      %v268 = vld [vmem:[%s219 + $0x158] sm:$0xff]
      %v269 = vld [vmem:[%s219 + $0x160] sm:$0x3]
      %v270 = vld [vmem:[%s219 + $0x168] sm:$0xff]
      %v271 = vld [vmem:[%s219 + $0x170] sm:$0xff]
      %v272 = vld [vmem:[%s219 + $0x178] sm:$0x3]
      %v273 = vld [vmem:[%s219 + $0x180] sm:$0xff]
      %v274 = vld [vmem:[%s219 + $0x188] sm:$0xff]
      %v275 = vld [vmem:[%s219 + $0x190] sm:$0x3]
      %v276 = vld [vmem:[%s219 + $0x198] sm:$0xff]
      %v277 = vld [vmem:[%s219 + $0x1a0] sm:$0xff]
      %v278 = vld [vmem:[%s219 + $0x1a8] sm:$0x3]
      %v279 = vld [vmem:[%s1] sm:$0xf]
      %v280 = vld [vmem:[%s1 + $0x4] sm:$0xf]
      %v281 = vld [vmem:[%s1 + $0x8] sm:$0xf]
      %v282 = vld [vmem:[%s1 + $0xc] sm:$0xf]
      %v283 = vld [vmem:[%s1 + $0x10] sm:$0xf]
      %v284 = vld [vmem:[%s1 + $0x14] sm:$0xf]
      %v285 = vld [vmem:[%s1 + $0x18] sm:$0xf]
      %v286 = vld [vmem:[%s1 + $0x1c] sm:$0xf]
      %v287 = vld [vmem:[%s1 + $0x20] sm:$0xf]
      %vm336 = vcmask 1046528
      %v337 = vrot.slane %v228, 1
      %v338 = vrot.slane %v229, 1
      %v339 = vsel %vm336, %v337, %v338
      %v340 = vrot.slane %v230, 1
      %v341 = vsel %vm336, %v338, %v340
      %v342 = vrot.slane %v231, 1
      %v343 = vrot.slane %v232, 1
      %v344 = vsel %vm336, %v342, %v343
      %v345 = vrot.slane %v233, 1
      %v346 = vsel %vm336, %v343, %v345
      %v347 = vrot.slane %v234, 1
      %v348 = vrot.slane %v235, 1
      %v349 = vsel %vm336, %v347, %v348
      %v350 = vrot.slane %v236, 1
      %v351 = vsel %vm336, %v348, %v350
      %v352 = vrot.slane %v237, 1
      %v353 = vrot.slane %v238, 1
      %v354 = vsel %vm336, %v352, %v353
      %v355 = vrot.slane %v239, 1
      %v356 = vsel %vm336, %v353, %v355
      %v357 = vrot.slane %v240, 1
      %v358 = vrot.slane %v241, 1
      %v359 = vsel %vm336, %v357, %v358
      %v360 = vrot.slane %v242, 1
      %v361 = vsel %vm336, %v358, %v360
      %v362 = vrot.slane %v243, 1
      %v363 = vrot.slane %v244, 1
      %v364 = vsel %vm336, %v362, %v363
      %v365 = vrot.slane %v245, 1
      %v366 = vsel %vm336, %v363, %v365
      %v367 = vrot.slane %v246, 1
      %v368 = vrot.slane %v247, 1
      %v369 = vsel %vm336, %v367, %v368
      %v370 = vrot.slane %v248, 1
      %v371 = vsel %vm336, %v368, %v370
      %v372 = vrot.slane %v249, 1
      %v373 = vrot.slane %v250, 1
      %v374 = vsel %vm336, %v372, %v373
      %v375 = vrot.slane %v251, 1
      %v376 = vsel %vm336, %v373, %v375
      %v377 = vrot.slane %v252, 1
      %v378 = vrot.slane %v253, 1
      %v379 = vsel %vm336, %v377, %v378
      %v380 = vrot.slane %v254, 1
      %v381 = vsel %vm336, %v378, %v380
      %v382 = vrot.slane %v255, 1
      %v383 = vrot.slane %v256, 1
      %v384 = vsel %vm336, %v382, %v383
      %v385 = vrot.slane %v257, 1
      %v386 = vsel %vm336, %v383, %v385
      %v387 = vrot.slane %v258, 1
      %v388 = vrot.slane %v259, 1
      %v389 = vsel %vm336, %v387, %v388
      %v390 = vrot.slane %v260, 1
      %v391 = vsel %vm336, %v388, %v390
      %v392 = vrot.slane %v261, 1
      %v393 = vrot.slane %v262, 1
      %v394 = vsel %vm336, %v392, %v393
      %v395 = vrot.slane %v263, 1
      %v396 = vsel %vm336, %v393, %v395
      %v397 = vrot.slane %v264, 1
      %v398 = vrot.slane %v265, 1
      %v399 = vsel %vm336, %v397, %v398
      %v400 = vrot.slane %v266, 1
      %v401 = vsel %vm336, %v398, %v400
      %v402 = vrot.slane %v267, 1
      %v403 = vrot.slane %v268, 1
      %v404 = vsel %vm336, %v402, %v403
      %v405 = vrot.slane %v269, 1
      %v406 = vsel %vm336, %v403, %v405
      %v407 = vrot.slane %v270, 1
      %v408 = vrot.slane %v271, 1
      %v409 = vsel %vm336, %v407, %v408
      %v410 = vrot.slane %v272, 1
      %v411 = vsel %vm336, %v408, %v410
      %v412 = vrot.slane %v273, 1
      %v413 = vrot.slane %v274, 1
      %v414 = vsel %vm336, %v412, %v413
      %v415 = vrot.slane %v275, 1
      %v416 = vsel %vm336, %v413, %v415
      %v417 = vld [vmem:[%s3] sm:$0xf]
      %vm418 = vcmask 31744
      %v420 = vsel %vm418, %v225, 0
      %v423 = vsel %vm418, %v226, 0
      %v425 = vsel %vm418, %v228, 0
      %v427 = vsel %vm418, %v229, 0
      %v429 = vsel %vm418, %v231, 0
      %v431 = vsel %vm418, %v232, 0
      %v433 = vsel %vm418, %v234, 0
      %v435 = vsel %vm418, %v235, 0
      %v437 = vsel %vm418, %v237, 0
      %v439 = vsel %vm418, %v238, 0
      %v441 = vsel %vm418, %v240, 0
      %v443 = vsel %vm418, %v241, 0
      %v445 = vsel %vm418, %v243, 0
      %v447 = vsel %vm418, %v244, 0
      %v449 = vsel %vm418, %v246, 0
      %v451 = vsel %vm418, %v247, 0
      %v453 = vsel %vm418, %v249, 0
      %v455 = vsel %vm418, %v250, 0
      %v457 = vsel %vm418, %v252, 0
      %v459 = vsel %vm418, %v253, 0
      %v461 = vsel %vm418, %v255, 0
      %v463 = vsel %vm418, %v256, 0
      %v465 = vsel %vm418, %v258, 0
      %v467 = vsel %vm418, %v259, 0
      %v469 = vsel %vm418, %v261, 0
      %v471 = vsel %vm418, %v262, 0
      %v473 = vsel %vm418, %v264, 0
      %v475 = vsel %vm418, %v265, 0
      %v477 = vsel %vm418, %v267, 0
      %v479 = vsel %vm418, %v268, 0
      %v481 = vsel %vm418, %v270, 0
      %v483 = vsel %vm418, %v271, 0
      %vm485 = vcmask 1043456
      %v487 = vsel %vm485, %v279, 0
      %489 = vmatprep.subr.mxu0 0.0
      %490 = vmatpush1.msra.mxu0 %v487
      %491 = vmatprep.subr.mxu0 0.0
      %492 = vmatpush1.msra.mxu0 0.0
      %493 = vmatprep.subr.mxu0 0.0
      %494 = vmatpush1.msra.mxu0 0.0
      %495 = vmatprep.subr.mxu0 0.0
      %496 = vmatpush1.msra.mxu0 0.0
      %497 = vmatprep.subr.mxu0 0.0
      %498 = vmatpush1.msra.mxu0 0.0
      %499 = vmatprep.subr.mxu0 0.0
      %500 = vmatpush1.msra.mxu0 0.0
      %501 = vmatprep.subr.mxu0 0.0
      %502 = vmatpush1.msra.mxu0 0.0
      %503 = vmatprep.subr.mxu0 0.0
      %504 = vmatpush1.msra.mxu0 0.0
      %505 = vmatprep.subr.mxu0 0.0
      %506 = vmatpush1.msra.mxu0 0.0
      %507 = vmatprep.subr.mxu0 0.0
      %508 = vmatpush1.msra.mxu0 0.0
      %509 = vmatprep.subr.mxu0 0.0
      %510 = vmatpush1.msra.mxu0 0.0
      %511 = vmatprep.subr.mxu0 0.0
      %512 = vmatpush1.msra.mxu0 0.0
      %513 = vmatprep.subr.mxu0 0.0
      %514 = vmatpush1.msra.mxu0 0.0
      %515 = vmatprep.subr.mxu0 0.0
      %516 = vmatpush1.msra.mxu0 0.0
      %517 = vmatprep.subr.mxu0 0.0
      %518 = vmatpush1.msra.mxu0 0.0
      %519 = vmatprep.subr.mxu0 0.0
      %520 = vmatpush1.msra.mxu0 0.0
      %521 = vmatprep.subr.mxu0 0.0
      %522 = vmatpush1.msra.mxu0 0.0
      %523 = vmatprep.subr.mxu0 0.0
      %524 = vmatpush1.msra.mxu0 0.0
      %525 = vmatprep.subr.mxu0 0.0
      %526 = vmatpush1.msra.mxu0 0.0
      %527 = vmatprep.subr.mxu0 0.0
      %528 = vmatpush1.msra.mxu0 0.0
      %529 = vmatprep.subr.mxu0 0.0
      %530 = vmatpush1.msra.mxu0 0.0
      %531 = vmatprep.subr.mxu0 0.0
      %532 = vmatpush1.msra.mxu0 0.0
      %533 = vmatprep.subr.mxu0 0.0
      %534 = vmatpush1.msra.mxu0 0.0
      %535 = vmatprep.subr.mxu0 0.0
      %536 = vmatpush1.msra.mxu0 0.0
      %537 = vmatprep.subr.mxu0 0.0
      %538 = vmatpush1.msra.mxu0 0.0
      %539 = vmatprep.subr.mxu0 0.0
      %540 = vmatpush1.msra.mxu0 0.0
      %541 = vmatprep.subr.mxu0 0.0
      %542 = vmatpush1.msra.mxu0 0.0
      %543 = vmatprep.subr.mxu0 0.0
      %544 = vmatpush1.msra.mxu0 0.0
      %545 = vmatprep.subr.mxu0 0.0
      %546 = vmatpush1.msra.mxu0 0.0
      %547 = vmatprep.subr.mxu0 0.0
      %548 = vmatpush1.msra.mxu0 0.0
      %549 = vmatprep.subr.mxu0 0.0
      %550 = vmatpush1.msra.mxu0 0.0
      %551 = vmatprep.subr.mxu0 0.0
      %552 = vmatpush1.msra.mxu0 0.0
      %553 = vmatprep.mubr.f32.mxu0 0.0
      %554 = vmatmul.mubr.f32.gmra.mrb[0].mxu0 %v420
      %v555 = vpop.f32.mrb[0].mxu0
      %v556 = vadd.f32 0.0, %v555
      %v557 = vpop.f32.mrb[0].mxu0
      %558 = vmatprep.mubr.f32.mxu0 0.0
      %559 = vmatmul.mubr.f32.gmra.mrb[0].mxu0 %v423
      %v560 = vpop.f32.mrb[0].mxu0
      %v561 = vadd.f32 0.0, %v560
      %v562 = vpop.f32.mrb[0].mxu0
      %563 = vmatprep.mubr.f32.mxu0 0.0
      %564 = vmatmul.mubr.f32.gmra.mrb[0].mxu0 %v425
      %v565 = vpop.f32.mrb[0].mxu0
      %v566 = vadd.f32 0.0, %v565
      %v567 = vpop.f32.mrb[0].mxu0
      %568 = vmatprep.mubr.f32.mxu0 0.0
      %569 = vmatmul.mubr.f32.gmra.mrb[0].mxu0 %v427
      %v570 = vpop.f32.mrb[0].mxu0
      %v571 = vadd.f32 0.0, %v570
      %v572 = vpop.f32.mrb[0].mxu0
      %573 = vmatprep.mubr.f32.mxu0 0.0
      %574 = vmatmul.mubr.f32.gmra.mrb[0].mxu0 %v429
      %v575 = vpop.f32.mrb[0].mxu0
      %v576 = vadd.f32 0.0, %v575
      %v577 = vpop.f32.mrb[0].mxu0
      %578 = vmatprep.mubr.f32.mxu0 0.0
      %579 = vmatmul.mubr.f32.gmra.mrb[0].mxu0 %v431
      %v580 = vpop.f32.mrb[0].mxu0
      %v581 = vadd.f32 0.0, %v580
      %v582 = vpop.f32.mrb[0].mxu0
      %583 = vmatprep.mubr.f32.mxu0 0.0
      %584 = vmatmul.mubr.f32.gmra.mrb[0].mxu0 %v433
      %v585 = vpop.f32.mrb[0].mxu0
      %v586 = vadd.f32 0.0, %v585
      %v587 = vpop.f32.mrb[0].mxu0
      %588 = vmatprep.mubr.f32.mxu0 0.0
      %589 = vmatmul.mubr.f32.gmra.mrb[0].mxu0 %v435
      %v590 = vpop.f32.mrb[0].mxu0
      %v591 = vadd.f32 0.0, %v590
      %v592 = vpop.f32.mrb[0].mxu0
      %593 = vmatprep.mubr.f32.mxu0 0.0
      %594 = vmatmul.mubr.f32.gmra.mrb[0].mxu0 %v437
      %v595 = vpop.f32.mrb[0].mxu0
      %v596 = vadd.f32 0.0, %v595
      %v597 = vpop.f32.mrb[0].mxu0
      %598 = vmatprep.mubr.f32.mxu0 0.0
      %599 = vmatmul.mubr.f32.gmra.mrb[0].mxu0 %v439
      %v600 = vpop.f32.mrb[0].mxu0
      %v601 = vadd.f32 0.0, %v600
      %v602 = vpop.f32.mrb[0].mxu0
      %603 = vmatprep.mubr.f32.mxu0 0.0
      %604 = vmatmul.mubr.f32.gmra.mrb[0].mxu0 %v441
      %v605 = vpop.f32.mrb[0].mxu0
      %v606 = vadd.f32 0.0, %v605
      %v607 = vpop.f32.mrb[0].mxu0
      %608 = vmatprep.mubr.f32.mxu0 0.0
      %609 = vmatmul.mubr.f32.gmra.mrb[0].mxu0 %v443
      %v610 = vpop.f32.mrb[0].mxu0
      %v611 = vadd.f32 0.0, %v610
      %v612 = vpop.f32.mrb[0].mxu0
      %613 = vmatprep.mubr.f32.mxu0 0.0
      %614 = vmatmul.mubr.f32.gmra.mrb[0].mxu0 %v445
      %v615 = vpop.f32.mrb[0].mxu0
      %v616 = vadd.f32 0.0, %v615
      %v617 = vpop.f32.mrb[0].mxu0
      %618 = vmatprep.mubr.f32.mxu0 0.0
      %619 = vmatmul.mubr.f32.gmra.mrb[0].mxu0 %v447
      %v620 = vpop.f32.mrb[0].mxu0
      %v621 = vadd.f32 0.0, %v620
      %v622 = vpop.f32.mrb[0].mxu0
      %623 = vmatprep.mubr.f32.mxu0 0.0
      %624 = vmatmul.mubr.f32.gmra.mrb[0].mxu0 %v449
      %v625 = vpop.f32.mrb[0].mxu0
      %v626 = vadd.f32 0.0, %v625
      %v627 = vpop.f32.mrb[0].mxu0
      %628 = vmatprep.mubr.f32.mxu0 0.0
      %629 = vmatmul.mubr.f32.gmra.mrb[0].mxu0 %v451
      %v630 = vpop.f32.mrb[0].mxu0
      %v631 = vadd.f32 0.0, %v630
      %v632 = vpop.f32.mrb[0].mxu0
      %633 = vmatprep.mubr.f32.mxu0 0.0
      %634 = vmatmul.mubr.f32.gmra.mrb[0].mxu0 %v453
      %v635 = vpop.f32.mrb[0].mxu0
      %v636 = vadd.f32 0.0, %v635
      %v637 = vpop.f32.mrb[0].mxu0
      %638 = vmatprep.mubr.f32.mxu0 0.0
      %639 = vmatmul.mubr.f32.gmra.mrb[0].mxu0 %v455
      %v640 = vpop.f32.mrb[0].mxu0
      %v641 = vadd.f32 0.0, %v640
      %v642 = vpop.f32.mrb[0].mxu0
      %643 = vmatprep.mubr.f32.mxu0 0.0
      %644 = vmatmul.mubr.f32.gmra.mrb[0].mxu0 %v457
      %v645 = vpop.f32.mrb[0].mxu0
      %v646 = vadd.f32 0.0, %v645
      %v647 = vpop.f32.mrb[0].mxu0
      %648 = vmatprep.mubr.f32.mxu0 0.0
      %649 = vmatmul.mubr.f32.gmra.mrb[0].mxu0 %v459
      %v650 = vpop.f32.mrb[0].mxu0
      %v651 = vadd.f32 0.0, %v650
      %v652 = vpop.f32.mrb[0].mxu0
      %653 = vmatprep.mubr.f32.mxu0 0.0
      %654 = vmatmul.mubr.f32.gmra.mrb[0].mxu0 %v461
      %v655 = vpop.f32.mrb[0].mxu0
      %v656 = vadd.f32 0.0, %v655
      %v657 = vpop.f32.mrb[0].mxu0
      %658 = vmatprep.mubr.f32.mxu0 0.0
      %659 = vmatmul.mubr.f32.gmra.mrb[0].mxu0 %v463
      %v660 = vpop.f32.mrb[0].mxu0
      %v661 = vadd.f32 0.0, %v660
      %v662 = vpop.f32.mrb[0].mxu0
      %663 = vmatprep.mubr.f32.mxu0 0.0
      %664 = vmatmul.mubr.f32.gmra.mrb[0].mxu0 %v465
      %v665 = vpop.f32.mrb[0].mxu0
      %v666 = vadd.f32 0.0, %v665
      %v667 = vpop.f32.mrb[0].mxu0
      %668 = vmatprep.mubr.f32.mxu0 0.0
      %669 = vmatmul.mubr.f32.gmra.mrb[0].mxu0 %v467
      %v670 = vpop.f32.mrb[0].mxu0
      %v671 = vadd.f32 0.0, %v670
      %v672 = vpop.f32.mrb[0].mxu0
      %673 = vmatprep.mubr.f32.mxu0 0.0
      %674 = vmatmul.mubr.f32.gmra.mrb[0].mxu0 %v469
      %v675 = vpop.f32.mrb[0].mxu0
      %v676 = vadd.f32 0.0, %v675
      %v677 = vpop.f32.mrb[0].mxu0
      %678 = vmatprep.mubr.f32.mxu0 0.0
      %679 = vmatmul.mubr.f32.gmra.mrb[0].mxu0 %v471
      %v680 = vpop.f32.mrb[0].mxu0
      %v681 = vadd.f32 0.0, %v680
      %v682 = vpop.f32.mrb[0].mxu0
      %683 = vmatprep.mubr.f32.mxu0 0.0
      %684 = vmatmul.mubr.f32.gmra.mrb[0].mxu0 %v473
      %v685 = vpop.f32.mrb[0].mxu0
      %v686 = vadd.f32 0.0, %v685
      %v687 = vpop.f32.mrb[0].mxu0
      %688 = vmatprep.mubr.f32.mxu0 0.0
      %689 = vmatmul.mubr.f32.gmra.mrb[0].mxu0 %v475
      %v690 = vpop.f32.mrb[0].mxu0
      %v691 = vadd.f32 0.0, %v690
      %v692 = vpop.f32.mrb[0].mxu0
      %693 = vmatprep.mubr.f32.mxu0 0.0
      %694 = vmatmul.mubr.f32.gmra.mrb[0].mxu0 %v477
      %v695 = vpop.f32.mrb[0].mxu0
      %v696 = vadd.f32 0.0, %v695
      %v697 = vpop.f32.mrb[0].mxu0
      %698 = vmatprep.mubr.f32.mxu0 0.0
      %699 = vmatmul.mubr.f32.gmra.mrb[0].mxu0 %v479
      %v700 = vpop.f32.mrb[0].mxu0
      %v701 = vadd.f32 0.0, %v700
      %v702 = vpop.f32.mrb[0].mxu0
      %703 = vmatprep.mubr.f32.mxu0 0.0
      %704 = vmatmul.mubr.f32.gmra.mrb[0].mxu0 %v481
      %v705 = vpop.f32.mrb[0].mxu0
      %v706 = vadd.f32 0.0, %v705
      %v707 = vpop.f32.mrb[0].mxu0
      %708 = vmatprep.mubr.f32.mxu0 0.0
      %709 = vmatmul.mubr.f32.gmra.mrb[0].mxu0 %v483
      %v710 = vpop.f32.mrb[0].mxu0
      %v711 = vadd.f32 0.0, %v710
      %v712 = vpop.f32.mrb[0].mxu0
      %713 = vdwg.mxu0
      %v714 = vsel %vm418, %v339, 0
      %v716 = vsel %vm418, %v341, 0
      %v718 = vsel %vm418, %v344, 0
      %v720 = vsel %vm418, %v346, 0
      %v722 = vsel %vm418, %v349, 0
      %v724 = vsel %vm418, %v351, 0
      %v726 = vsel %vm418, %v354, 0
      %v728 = vsel %vm418, %v356, 0
      %v730 = vsel %vm418, %v359, 0
      %v732 = vsel %vm418, %v361, 0
      %v734 = vsel %vm418, %v364, 0
      %v736 = vsel %vm418, %v366, 0
      %v738 = vsel %vm418, %v369, 0
      %v740 = vsel %vm418, %v371, 0
      %v742 = vsel %vm418, %v374, 0
      %v744 = vsel %vm418, %v376, 0
      %v746 = vsel %vm418, %v379, 0
      %v748 = vsel %vm418, %v381, 0
      %v750 = vsel %vm418, %v384, 0
      %v752 = vsel %vm418, %v386, 0
      %v754 = vsel %vm418, %v389, 0
      %v756 = vsel %vm418, %v391, 0
      %v758 = vsel %vm418, %v394, 0
      %v760 = vsel %vm418, %v396, 0
      %v762 = vsel %vm418, %v399, 0
      %v764 = vsel %vm418, %v401, 0
      %v766 = vsel %vm418, %v404, 0
      %v768 = vsel %vm418, %v406, 0
      %v770 = vsel %vm418, %v409, 0
      %v772 = vsel %vm418, %v411, 0
      %v774 = vsel %vm418, %v414, 0
      %v776 = vsel %vm418, %v416, 0
      %v779 = vsel %vm485, %v417, 0
      %781 = vmatprep.subr.mxu0 0.0
      %782 = vmatpush1.msra.mxu0 %v779
      %783 = vmatprep.subr.mxu0 0.0
      %784 = vmatpush1.msra.mxu0 0.0
      %785 = vmatprep.subr.mxu0 0.0
      %786 = vmatpush1.msra.mxu0 0.0
      %787 = vmatprep.subr.mxu0 0.0
      %788 = vmatpush1.msra.mxu0 0.0
      %789 = vmatprep.subr.mxu0 0.0
      %790 = vmatpush1.msra.mxu0 0.0
      %791 = vmatprep.subr.mxu0 0.0
      %792 = vmatpush1.msra.mxu0 0.0
      %793 = vmatprep.subr.mxu0 0.0
      %794 = vmatpush1.msra.mxu0 0.0
      %795 = vmatprep.subr.mxu0 0.0
      %796 = vmatpush1.msra.mxu0 0.0
      %797 = vmatprep.subr.mxu0 0.0
      %798 = vmatpush1.msra.mxu0 0.0
      %799 = vmatprep.subr.mxu0 0.0
      %800 = vmatpush1.msra.mxu0 0.0
      %801 = vmatprep.subr.mxu0 0.0
      %802 = vmatpush1.msra.mxu0 0.0
      %803 = vmatprep.subr.mxu0 0.0
      %804 = vmatpush1.msra.mxu0 0.0
      %805 = vmatprep.subr.mxu0 0.0
      %806 = vmatpush1.msra.mxu0 0.0
      %807 = vmatprep.subr.mxu0 0.0
      %808 = vmatpush1.msra.mxu0 0.0
      %809 = vmatprep.subr.mxu0 0.0
      %810 = vmatpush1.msra.mxu0 0.0
      %811 = vmatprep.subr.mxu0 0.0
      %812 = vmatpush1.msra.mxu0 0.0
      %813 = vmatprep.subr.mxu0 0.0
      %814 = vmatpush1.msra.mxu0 0.0
      %815 = vmatprep.subr.mxu0 0.0
      %816 = vmatpush1.msra.mxu0 0.0
      %817 = vmatprep.subr.mxu0 0.0
      %818 = vmatpush1.msra.mxu0 0.0
      %819 = vmatprep.subr.mxu0 0.0
      %820 = vmatpush1.msra.mxu0 0.0
      %821 = vmatprep.subr.mxu0 0.0
      %822 = vmatpush1.msra.mxu0 0.0
      %823 = vmatprep.subr.mxu0 0.0
      %824 = vmatpush1.msra.mxu0 0.0
      %825 = vmatprep.subr.mxu0 0.0
      %826 = vmatpush1.msra.mxu0 0.0
      %827 = vmatprep.subr.mxu0 0.0
      %828 = vmatpush1.msra.mxu0 0.0
      %829 = vmatprep.subr.mxu0 0.0
      %830 = vmatpush1.msra.mxu0 0.0
      %831 = vmatprep.subr.mxu0 0.0
      %832 = vmatpush1.msra.mxu0 0.0
      %833 = vmatprep.subr.mxu0 0.0
      %834 = vmatpush1.msra.mxu0 0.0
      %835 = vmatprep.subr.mxu0 0.0
      %836 = vmatpush1.msra.mxu0 0.0
      %837 = vmatprep.subr.mxu0 0.0
      %838 = vmatpush1.msra.mxu0 0.0
      %839 = vmatprep.subr.mxu0 0.0
      %840 = vmatpush1.msra.mxu0 0.0
      %841 = vmatprep.subr.mxu0 0.0
      %842 = vmatpush1.msra.mxu0 0.0
      %843 = vmatprep.subr.mxu0 0.0
      %844 = vmatpush1.msra.mxu0 0.0
      %845 = vmatprep.mubr.f32.mxu0 0.0
      %846 = vmatmul.mubr.f32.gmra.mrb[0].mxu0 %v714
      %v847 = vpop.f32.mrb[0].mxu0
      %v848 = vadd.f32 %v556, %v847
      %v849 = vpop.f32.mrb[0].mxu0
      %850 = vmatprep.mubr.f32.mxu0 0.0
      %851 = vmatmul.mubr.f32.gmra.mrb[0].mxu0 %v716
      %v852 = vpop.f32.mrb[0].mxu0
      %v853 = vadd.f32 %v561, %v852
      %v854 = vpop.f32.mrb[0].mxu0
      %855 = vmatprep.mubr.f32.mxu0 0.0
      %856 = vmatmul.mubr.f32.gmra.mrb[0].mxu0 %v718
      %v857 = vpop.f32.mrb[0].mxu0
      %v858 = vadd.f32 %v566, %v857
      %v859 = vpop.f32.mrb[0].mxu0
      %860 = vmatprep.mubr.f32.mxu0 0.0
      %861 = vmatmul.mubr.f32.gmra.mrb[0].mxu0 %v720
      %v862 = vpop.f32.mrb[0].mxu0
      %v863 = vadd.f32 %v571, %v862
      %v864 = vpop.f32.mrb[0].mxu0
      %865 = vmatprep.mubr.f32.mxu0 0.0
      %866 = vmatmul.mubr.f32.gmra.mrb[0].mxu0 %v722
      %v867 = vpop.f32.mrb[0].mxu0
      %v868 = vadd.f32 %v576, %v867
      %v869 = vpop.f32.mrb[0].mxu0
      %870 = vmatprep.mubr.f32.mxu0 0.0
      %871 = vmatmul.mubr.f32.gmra.mrb[0].mxu0 %v724
      %v872 = vpop.f32.mrb[0].mxu0
      %v873 = vadd.f32 %v581, %v872
      %v874 = vpop.f32.mrb[0].mxu0
      %875 = vmatprep.mubr.f32.mxu0 0.0
      %876 = vmatmul.mubr.f32.gmra.mrb[0].mxu0 %v726
      %v877 = vpop.f32.mrb[0].mxu0
      %v878 = vadd.f32 %v586, %v877
      %v879 = vpop.f32.mrb[0].mxu0
      %880 = vmatprep.mubr.f32.mxu0 0.0
      %881 = vmatmul.mubr.f32.gmra.mrb[0].mxu0 %v728
      %v882 = vpop.f32.mrb[0].mxu0
      %v883 = vadd.f32 %v591, %v882
      %v884 = vpop.f32.mrb[0].mxu0
      %885 = vmatprep.mubr.f32.mxu0 0.0
      %886 = vmatmul.mubr.f32.gmra.mrb[0].mxu0 %v730
      %v887 = vpop.f32.mrb[0].mxu0
      %v888 = vadd.f32 %v596, %v887
      %v889 = vpop.f32.mrb[0].mxu0
      %890 = vmatprep.mubr.f32.mxu0 0.0
      %891 = vmatmul.mubr.f32.gmra.mrb[0].mxu0 %v732
      %v892 = vpop.f32.mrb[0].mxu0
      %v893 = vadd.f32 %v601, %v892
      %v894 = vpop.f32.mrb[0].mxu0
      %895 = vmatprep.mubr.f32.mxu0 0.0
      %896 = vmatmul.mubr.f32.gmra.mrb[0].mxu0 %v734
      %v897 = vpop.f32.mrb[0].mxu0
      %v898 = vadd.f32 %v606, %v897
      %v899 = vpop.f32.mrb[0].mxu0
      %900 = vmatprep.mubr.f32.mxu0 0.0
      %901 = vmatmul.mubr.f32.gmra.mrb[0].mxu0 %v736
      %v902 = vpop.f32.mrb[0].mxu0
      %v903 = vadd.f32 %v611, %v902
      %v904 = vpop.f32.mrb[0].mxu0
      %905 = vmatprep.mubr.f32.mxu0 0.0
      %906 = vmatmul.mubr.f32.gmra.mrb[0].mxu0 %v738
      %v907 = vpop.f32.mrb[0].mxu0
      %v908 = vadd.f32 %v616, %v907
      %v909 = vpop.f32.mrb[0].mxu0
      %910 = vmatprep.mubr.f32.mxu0 0.0
      %911 = vmatmul.mubr.f32.gmra.mrb[0].mxu0 %v740
      %v912 = vpop.f32.mrb[0].mxu0
      %v913 = vadd.f32 %v621, %v912
      %v914 = vpop.f32.mrb[0].mxu0
      %915 = vmatprep.mubr.f32.mxu0 0.0
      %916 = vmatmul.mubr.f32.gmra.mrb[0].mxu0 %v742
      %v917 = vpop.f32.mrb[0].mxu0
      %v918 = vadd.f32 %v626, %v917
      %v919 = vpop.f32.mrb[0].mxu0
      %920 = vmatprep.mubr.f32.mxu0 0.0
      %921 = vmatmul.mubr.f32.gmra.mrb[0].mxu0 %v744
      %v922 = vpop.f32.mrb[0].mxu0
      %v923 = vadd.f32 %v631, %v922
      %v924 = vpop.f32.mrb[0].mxu0
      %925 = vmatprep.mubr.f32.mxu0 0.0
      %926 = vmatmul.mubr.f32.gmra.mrb[0].mxu0 %v746
      %v927 = vpop.f32.mrb[0].mxu0
      %v928 = vadd.f32 %v636, %v927
      %v929 = vpop.f32.mrb[0].mxu0
      %930 = vmatprep.mubr.f32.mxu0 0.0
      %931 = vmatmul.mubr.f32.gmra.mrb[0].mxu0 %v748
      %v932 = vpop.f32.mrb[0].mxu0
      %v933 = vadd.f32 %v641, %v932
      %v934 = vpop.f32.mrb[0].mxu0
      %935 = vmatprep.mubr.f32.mxu0 0.0
      %936 = vmatmul.mubr.f32.gmra.mrb[0].mxu0 %v750
      %v937 = vpop.f32.mrb[0].mxu0
      %v938 = vadd.f32 %v646, %v937
      %v939 = vpop.f32.mrb[0].mxu0
      %940 = vmatprep.mubr.f32.mxu0 0.0
      %941 = vmatmul.mubr.f32.gmra.mrb[0].mxu0 %v752
      %v942 = vpop.f32.mrb[0].mxu0
      %v943 = vadd.f32 %v651, %v942
      %v944 = vpop.f32.mrb[0].mxu0
      %945 = vmatprep.mubr.f32.mxu0 0.0
      %946 = vmatmul.mubr.f32.gmra.mrb[0].mxu0 %v754
      %v947 = vpop.f32.mrb[0].mxu0
      %v948 = vadd.f32 %v656, %v947
      %v949 = vpop.f32.mrb[0].mxu0
      %950 = vmatprep.mubr.f32.mxu0 0.0
      %951 = vmatmul.mubr.f32.gmra.mrb[0].mxu0 %v756
      %v952 = vpop.f32.mrb[0].mxu0
      %v953 = vadd.f32 %v661, %v952
      %v954 = vpop.f32.mrb[0].mxu0
      %955 = vmatprep.mubr.f32.mxu0 0.0
      %956 = vmatmul.mubr.f32.gmra.mrb[0].mxu0 %v758
      %v957 = vpop.f32.mrb[0].mxu0
      %v958 = vadd.f32 %v666, %v957
      %v959 = vpop.f32.mrb[0].mxu0
      %960 = vmatprep.mubr.f32.mxu0 0.0
      %961 = vmatmul.mubr.f32.gmra.mrb[0].mxu0 %v760
      %v962 = vpop.f32.mrb[0].mxu0
      %v963 = vadd.f32 %v671, %v962
      %v964 = vpop.f32.mrb[0].mxu0
      %965 = vmatprep.mubr.f32.mxu0 0.0
      %966 = vmatmul.mubr.f32.gmra.mrb[0].mxu0 %v762
      %v967 = vpop.f32.mrb[0].mxu0
      %v968 = vadd.f32 %v676, %v967
      %v969 = vpop.f32.mrb[0].mxu0
      %970 = vmatprep.mubr.f32.mxu0 0.0
      %971 = vmatmul.mubr.f32.gmra.mrb[0].mxu0 %v764
      %v972 = vpop.f32.mrb[0].mxu0
      %v973 = vadd.f32 %v681, %v972
      %v974 = vpop.f32.mrb[0].mxu0
      %975 = vmatprep.mubr.f32.mxu0 0.0
      %976 = vmatmul.mubr.f32.gmra.mrb[0].mxu0 %v766
      %v977 = vpop.f32.mrb[0].mxu0
      %v978 = vadd.f32 %v686, %v977
      %v979 = vpop.f32.mrb[0].mxu0
      %980 = vmatprep.mubr.f32.mxu0 0.0
      %981 = vmatmul.mubr.f32.gmra.mrb[0].mxu0 %v768
      %v982 = vpop.f32.mrb[0].mxu0
      %v983 = vadd.f32 %v691, %v982
      %v984 = vpop.f32.mrb[0].mxu0
      %985 = vmatprep.mubr.f32.mxu0 0.0
      %986 = vmatmul.mubr.f32.gmra.mrb[0].mxu0 %v770
      %v987 = vpop.f32.mrb[0].mxu0
      %v988 = vadd.f32 %v696, %v987
      %v989 = vpop.f32.mrb[0].mxu0
      %990 = vmatprep.mubr.f32.mxu0 0.0
      %991 = vmatmul.mubr.f32.gmra.mrb[0].mxu0 %v772
      %v992 = vpop.f32.mrb[0].mxu0
      %v993 = vadd.f32 %v701, %v992
      %v994 = vpop.f32.mrb[0].mxu0
      %995 = vmatprep.mubr.f32.mxu0 0.0
      %996 = vmatmul.mubr.f32.gmra.mrb[0].mxu0 %v774
      %v997 = vpop.f32.mrb[0].mxu0
      %v998 = vadd.f32 %v706, %v997
      %v999 = vpop.f32.mrb[0].mxu0
      %1000 = vmatprep.mubr.f32.mxu0 0.0
      %1001 = vmatmul.mubr.f32.gmra.mrb[0].mxu0 %v776
      %v1002 = vpop.f32.mrb[0].mxu0
      %v1003 = vadd.f32 %v711, %v1002
      %v1004 = vpop.f32.mrb[0].mxu0
      %1005 = vdwg.mxu0
      %v1007 = vrot.slane %v225, 1
      %v1008 = vrot.slane %v226, 1
      %v1009 = vsel %vm336, %v1007, %v1008
      %v1010 = vrot.slane %v227, 1
      %v1011 = vsel %vm336, %v1008, %v1010
      %v1012 = vsel %vm418, %v1009, 0
      %v1014 = vsel %vm418, %v1011, 0
      %v1017 = vsel %vm485, %v280, 0
      %1019 = vmatprep.subr.mxu0 0.0
      %1020 = vmatpush1.msra.mxu0 %v1017
      %1021 = vmatprep.subr.mxu0 0.0
      %1022 = vmatpush1.msra.mxu0 0.0
      %1023 = vmatprep.subr.mxu0 0.0
      %1024 = vmatpush1.msra.mxu0 0.0
      %1025 = vmatprep.subr.mxu0 0.0
      %1026 = vmatpush1.msra.mxu0 0.0
      %1027 = vmatprep.subr.mxu0 0.0
      %1028 = vmatpush1.msra.mxu0 0.0
      %1029 = vmatprep.subr.mxu0 0.0
      %1030 = vmatpush1.msra.mxu0 0.0
      %1031 = vmatprep.subr.mxu0 0.0
      %1032 = vmatpush1.msra.mxu0 0.0
      %1033 = vmatprep.subr.mxu0 0.0
      %1034 = vmatpush1.msra.mxu0 0.0
      %1035 = vmatprep.subr.mxu0 0.0
      %1036 = vmatpush1.msra.mxu0 0.0
      %1037 = vmatprep.subr.mxu0 0.0
      %1038 = vmatpush1.msra.mxu0 0.0
      %1039 = vmatprep.subr.mxu0 0.0
      %1040 = vmatpush1.msra.mxu0 0.0
      %1041 = vmatprep.subr.mxu0 0.0
      %1042 = vmatpush1.msra.mxu0 0.0
      %1043 = vmatprep.subr.mxu0 0.0
      %1044 = vmatpush1.msra.mxu0 0.0
      %1045 = vmatprep.subr.mxu0 0.0
      %1046 = vmatpush1.msra.mxu0 0.0
      %1047 = vmatprep.subr.mxu0 0.0
      %1048 = vmatpush1.msra.mxu0 0.0
      %1049 = vmatprep.subr.mxu0 0.0
      %1050 = vmatpush1.msra.mxu0 0.0
      %1051 = vmatprep.subr.mxu0 0.0
      %1052 = vmatpush1.msra.mxu0 0.0
      %1053 = vmatprep.subr.mxu0 0.0
      %1054 = vmatpush1.msra.mxu0 0.0
      %1055 = vmatprep.subr.mxu0 0.0
      %1056 = vmatpush1.msra.mxu0 0.0
      %1057 = vmatprep.subr.mxu0 0.0
      %1058 = vmatpush1.msra.mxu0 0.0
      %1059 = vmatprep.subr.mxu0 0.0
      %1060 = vmatpush1.msra.mxu0 0.0
      %1061 = vmatprep.subr.mxu0 0.0
      %1062 = vmatpush1.msra.mxu0 0.0
      %1063 = vmatprep.subr.mxu0 0.0
      %1064 = vmatpush1.msra.mxu0 0.0
      %1065 = vmatprep.subr.mxu0 0.0
      %1066 = vmatpush1.msra.mxu0 0.0
      %1067 = vmatprep.subr.mxu0 0.0
      %1068 = vmatpush1.msra.mxu0 0.0
      %1069 = vmatprep.subr.mxu0 0.0
      %1070 = vmatpush1.msra.mxu0 0.0
      %1071 = vmatprep.subr.mxu0 0.0
      %1072 = vmatpush1.msra.mxu0 0.0
      %1073 = vmatprep.subr.mxu0 0.0
      %1074 = vmatpush1.msra.mxu0 0.0
      %1075 = vmatprep.subr.mxu0 0.0
      %1076 = vmatpush1.msra.mxu0 0.0
      %1077 = vmatprep.subr.mxu0 0.0
      %1078 = vmatpush1.msra.mxu0 0.0
      %1079 = vmatprep.subr.mxu0 0.0
      %1080 = vmatpush1.msra.mxu0 0.0
      %1081 = vmatprep.subr.mxu0 0.0
      %1082 = vmatpush1.msra.mxu0 0.0
      %1083 = vmatprep.mubr.f32.mxu0 0.0
      %1084 = vmatmul.mubr.f32.gmra.mrb[0].mxu0 %v1012
      %v1085 = vpop.f32.mrb[0].mxu0
      %v1086 = vadd.f32 0.0, %v1085
      %v1087 = vpop.f32.mrb[0].mxu0
      %1088 = vmatprep.mubr.f32.mxu0 0.0
      %1089 = vmatmul.mubr.f32.gmra.mrb[0].mxu0 %v1014
      %v1090 = vpop.f32.mrb[0].mxu0
      %v1091 = vadd.f32 0.0, %v1090
      %v1092 = vpop.f32.mrb[0].mxu0
      %1093 = vmatprep.mubr.f32.mxu0 0.0
      %1094 = vmatmul.mubr.f32.gmra.mrb[0].mxu0 %v714
      %v1095 = vpop.f32.mrb[0].mxu0
      %v1096 = vadd.f32 0.0, %v1095
      %v1097 = vpop.f32.mrb[0].mxu0
      %1098 = vmatprep.mubr.f32.mxu0 0.0
      %1099 = vmatmul.mubr.f32.gmra.mrb[0].mxu0 %v716
      %v1100 = vpop.f32.mrb[0].mxu0
      %v1101 = vadd.f32 0.0, %v1100
      %v1102 = vpop.f32.mrb[0].mxu0
      %1103 = vmatprep.mubr.f32.mxu0 0.0
      %1104 = vmatmul.mubr.f32.gmra.mrb[0].mxu0 %v718
      %v1105 = vpop.f32.mrb[0].mxu0
      %v1106 = vadd.f32 0.0, %v1105
      %v1107 = vpop.f32.mrb[0].mxu0
      %1108 = vmatprep.mubr.f32.mxu0 0.0
      %1109 = vmatmul.mubr.f32.gmra.mrb[0].mxu0 %v720
      %v1110 = vpop.f32.mrb[0].mxu0
      %v1111 = vadd.f32 0.0, %v1110
      %v1112 = vpop.f32.mrb[0].mxu0
      %1113 = vmatprep.mubr.f32.mxu0 0.0
      %1114 = vmatmul.mubr.f32.gmra.mrb[0].mxu0 %v722
      %v1115 = vpop.f32.mrb[0].mxu0
      %v1116 = vadd.f32 0.0, %v1115
      %v1117 = vpop.f32.mrb[0].mxu0
      %1118 = vmatprep.mubr.f32.mxu0 0.0
      %1119 = vmatmul.mubr.f32.gmra.mrb[0].mxu0 %v724
      %v1120 = vpop.f32.mrb[0].mxu0
      %v1121 = vadd.f32 0.0, %v1120
      %v1122 = vpop.f32.mrb[0].mxu0
      %1123 = vmatprep.mubr.f32.mxu0 0.0
      %1124 = vmatmul.mubr.f32.gmra.mrb[0].mxu0 %v726
      %v1125 = vpop.f32.mrb[0].mxu0
      %v1126 = vadd.f32 0.0, %v1125
      %v1127 = vpop.f32.mrb[0].mxu0
      %1128 = vmatprep.mubr.f32.mxu0 0.0
      %1129 = vmatmul.mubr.f32.gmra.mrb[0].mxu0 %v728
      %v1130 = vpop.f32.mrb[0].mxu0
      %v1131 = vadd.f32 0.0, %v1130
      %v1132 = vpop.f32.mrb[0].mxu0
      %1133 = vmatprep.mubr.f32.mxu0 0.0
      %1134 = vmatmul.mubr.f32.gmra.mrb[0].mxu0 %v730
      %v1135 = vpop.f32.mrb[0].mxu0
      %v1136 = vadd.f32 0.0, %v1135
      %v1137 = vpop.f32.mrb[0].mxu0
      %1138 = vmatprep.mubr.f32.mxu0 0.0
      %1139 = vmatmul.mubr.f32.gmra.mrb[0].mxu0 %v732
      %v1140 = vpop.f32.mrb[0].mxu0
      %v1141 = vadd.f32 0.0, %v1140
      %v1142 = vpop.f32.mrb[0].mxu0
      %1143 = vmatprep.mubr.f32.mxu0 0.0
      %1144 = vmatmul.mubr.f32.gmra.mrb[0].mxu0 %v734
      %v1145 = vpop.f32.mrb[0].mxu0
      %v1146 = vadd.f32 0.0, %v1145
      %v1147 = vpop.f32.mrb[0].mxu0
      %1148 = vmatprep.mubr.f32.mxu0 0.0
      %1149 = vmatmul.mubr.f32.gmra.mrb[0].mxu0 %v736
      %v1150 = vpop.f32.mrb[0].mxu0
      %v1151 = vadd.f32 0.0, %v1150
      %v1152 = vpop.f32.mrb[0].mxu0
      %1153 = vmatprep.mubr.f32.mxu0 0.0
      %1154 = vmatmul.mubr.f32.gmra.mrb[0].mxu0 %v738
      %v1155 = vpop.f32.mrb[0].mxu0
      %v1156 = vadd.f32 0.0, %v1155
      %v1157 = vpop.f32.mrb[0].mxu0
      %1158 = vmatprep.mubr.f32.mxu0 0.0
      %1159 = vmatmul.mubr.f32.gmra.mrb[0].mxu0 %v740
      %v1160 = vpop.f32.mrb[0].mxu0
      %v1161 = vadd.f32 0.0, %v1160
      %v1162 = vpop.f32.mrb[0].mxu0
      %1163 = vmatprep.mubr.f32.mxu0 0.0
      %1164 = vmatmul.mubr.f32.gmra.mrb[0].mxu0 %v742
      %v1165 = vpop.f32.mrb[0].mxu0
      %v1166 = vadd.f32 0.0, %v1165
      %v1167 = vpop.f32.mrb[0].mxu0
      %1168 = vmatprep.mubr.f32.mxu0 0.0
      %1169 = vmatmul.mubr.f32.gmra.mrb[0].mxu0 %v744
      %v1170 = vpop.f32.mrb[0].mxu0
      %v1171 = vadd.f32 0.0, %v1170
      %v1172 = vpop.f32.mrb[0].mxu0
      %1173 = vmatprep.mubr.f32.mxu0 0.0
      %1174 = vmatmul.mubr.f32.gmra.mrb[0].mxu0 %v746
      %v1175 = vpop.f32.mrb[0].mxu0
      %v1176 = vadd.f32 0.0, %v1175
      %v1177 = vpop.f32.mrb[0].mxu0
      %1178 = vmatprep.mubr.f32.mxu0 0.0
      %1179 = vmatmul.mubr.f32.gmra.mrb[0].mxu0 %v748
      %v1180 = vpop.f32.mrb[0].mxu0
      %v1181 = vadd.f32 0.0, %v1180
      %v1182 = vpop.f32.mrb[0].mxu0
      %1183 = vmatprep.mubr.f32.mxu0 0.0
      %1184 = vmatmul.mubr.f32.gmra.mrb[0].mxu0 %v750
      %v1185 = vpop.f32.mrb[0].mxu0
      %v1186 = vadd.f32 0.0, %v1185
      %v1187 = vpop.f32.mrb[0].mxu0
      %1188 = vmatprep.mubr.f32.mxu0 0.0
      %1189 = vmatmul.mubr.f32.gmra.mrb[0].mxu0 %v752
      %v1190 = vpop.f32.mrb[0].mxu0
      %v1191 = vadd.f32 0.0, %v1190
      %v1192 = vpop.f32.mrb[0].mxu0
      %1193 = vmatprep.mubr.f32.mxu0 0.0
      %1194 = vmatmul.mubr.f32.gmra.mrb[0].mxu0 %v754
      %v1195 = vpop.f32.mrb[0].mxu0
      %v1196 = vadd.f32 0.0, %v1195
      %v1197 = vpop.f32.mrb[0].mxu0
      %1198 = vmatprep.mubr.f32.mxu0 0.0
      %1199 = vmatmul.mubr.f32.gmra.mrb[0].mxu0 %v756
      %v1200 = vpop.f32.mrb[0].mxu0
      %v1201 = vadd.f32 0.0, %v1200
      %v1202 = vpop.f32.mrb[0].mxu0
      %1203 = vmatprep.mubr.f32.mxu0 0.0
      %1204 = vmatmul.mubr.f32.gmra.mrb[0].mxu0 %v758
      %v1205 = vpop.f32.mrb[0].mxu0
      %v1206 = vadd.f32 0.0, %v1205
      %v1207 = vpop.f32.mrb[0].mxu0
      %1208 = vmatprep.mubr.f32.mxu0 0.0
      %1209 = vmatmul.mubr.f32.gmra.mrb[0].mxu0 %v760
      %v1210 = vpop.f32.mrb[0].mxu0
      %v1211 = vadd.f32 0.0, %v1210
      %v1212 = vpop.f32.mrb[0].mxu0
      %1213 = vmatprep.mubr.f32.mxu0 0.0
      %1214 = vmatmul.mubr.f32.gmra.mrb[0].mxu0 %v762
      %v1215 = vpop.f32.mrb[0].mxu0
      %v1216 = vadd.f32 0.0, %v1215
      %v1217 = vpop.f32.mrb[0].mxu0
      %1218 = vmatprep.mubr.f32.mxu0 0.0
      %1219 = vmatmul.mubr.f32.gmra.mrb[0].mxu0 %v764
      %v1220 = vpop.f32.mrb[0].mxu0
      %v1221 = vadd.f32 0.0, %v1220
      %v1222 = vpop.f32.mrb[0].mxu0
      %1223 = vmatprep.mubr.f32.mxu0 0.0
      %1224 = vmatmul.mubr.f32.gmra.mrb[0].mxu0 %v766
      %v1225 = vpop.f32.mrb[0].mxu0
      %v1226 = vadd.f32 0.0, %v1225
      %v1227 = vpop.f32.mrb[0].mxu0
      %1228 = vmatprep.mubr.f32.mxu0 0.0
      %1229 = vmatmul.mubr.f32.gmra.mrb[0].mxu0 %v768
      %v1230 = vpop.f32.mrb[0].mxu0
      %v1231 = vadd.f32 0.0, %v1230
      %v1232 = vpop.f32.mrb[0].mxu0
      %1233 = vmatprep.mubr.f32.mxu0 0.0
      %1234 = vmatmul.mubr.f32.gmra.mrb[0].mxu0 %v770
      %v1235 = vpop.f32.mrb[0].mxu0
      %v1236 = vadd.f32 0.0, %v1235
      %v1237 = vpop.f32.mrb[0].mxu0
      %1238 = vmatprep.mubr.f32.mxu0 0.0
      %1239 = vmatmul.mubr.f32.gmra.mrb[0].mxu0 %v772
      %v1240 = vpop.f32.mrb[0].mxu0
      %v1241 = vadd.f32 0.0, %v1240
      %v1242 = vpop.f32.mrb[0].mxu0
      %1243 = vdwg.mxu0
      %v1244 = vadd.f32 %v848, %v1086
      %v1245 = vadd.f32 %v853, %v1091
      %v1246 = vadd.f32 %v858, %v1096
      %v1247 = vadd.f32 %v863, %v1101
      %v1248 = vadd.f32 %v868, %v1106
      %v1249 = vadd.f32 %v873, %v1111
      %v1250 = vadd.f32 %v878, %v1116
      %v1251 = vadd.f32 %v883, %v1121
      %v1252 = vadd.f32 %v888, %v1126
      %v1253 = vadd.f32 %v893, %v1131
      %v1254 = vadd.f32 %v898, %v1136
      %v1255 = vadd.f32 %v903, %v1141
      %v1256 = vadd.f32 %v908, %v1146
      %v1257 = vadd.f32 %v913, %v1151
      %v1258 = vadd.f32 %v918, %v1156
      %v1259 = vadd.f32 %v923, %v1161
      %v1260 = vadd.f32 %v928, %v1166
      %v1261 = vadd.f32 %v933, %v1171
      %v1262 = vadd.f32 %v938, %v1176
      %v1263 = vadd.f32 %v943, %v1181
      %v1264 = vadd.f32 %v948, %v1186
      %v1265 = vadd.f32 %v953, %v1191
      %v1266 = vadd.f32 %v958, %v1196
      %v1267 = vadd.f32 %v963, %v1201
      %v1268 = vadd.f32 %v968, %v1206
      %v1269 = vadd.f32 %v973, %v1211
      %v1270 = vadd.f32 %v978, %v1216
      %v1271 = vadd.f32 %v983, %v1221
      %v1272 = vadd.f32 %v988, %v1226
      %v1273 = vadd.f32 %v993, %v1231
      %v1274 = vadd.f32 %v998, %v1236
      %v1275 = vadd.f32 %v1003, %v1241
      %vm1276 = vcmask 1045504
      %v1277 = vrot.slane %v225, 2
      %v1278 = vrot.slane %v226, 2
      %v1279 = vsel %vm1276, %v1277, %v1278
      %v1280 = vrot.slane %v227, 2
      %v1281 = vsel %vm1276, %v1278, %v1280
      %v1282 = vrot.slane %v228, 2
      %v1283 = vrot.slane %v229, 2
      %v1284 = vsel %vm1276, %v1282, %v1283
      %v1285 = vrot.slane %v230, 2
      %v1286 = vsel %vm1276, %v1283, %v1285
      %v1287 = vrot.slane %v231, 2
      %v1288 = vrot.slane %v232, 2
      %v1289 = vsel %vm1276, %v1287, %v1288
      %v1290 = vrot.slane %v233, 2
      %v1291 = vsel %vm1276, %v1288, %v1290
      %v1292 = vrot.slane %v234, 2
      %v1293 = vrot.slane %v235, 2
      %v1294 = vsel %vm1276, %v1292, %v1293
      %v1295 = vrot.slane %v236, 2
      %v1296 = vsel %vm1276, %v1293, %v1295
      %v1297 = vrot.slane %v237, 2
      %v1298 = vrot.slane %v238, 2
      %v1299 = vsel %vm1276, %v1297, %v1298
      %v1300 = vrot.slane %v239, 2
      %v1301 = vsel %vm1276, %v1298, %v1300
      %v1302 = vrot.slane %v240, 2
      %v1303 = vrot.slane %v241, 2
      %v1304 = vsel %vm1276, %v1302, %v1303
      %v1305 = vrot.slane %v242, 2
      %v1306 = vsel %vm1276, %v1303, %v1305
      %v1307 = vrot.slane %v243, 2
      %v1308 = vrot.slane %v244, 2
      %v1309 = vsel %vm1276, %v1307, %v1308
      %v1310 = vrot.slane %v245, 2
      %v1311 = vsel %vm1276, %v1308, %v1310
      %v1312 = vrot.slane %v246, 2
      %v1313 = vrot.slane %v247, 2
      %v1314 = vsel %vm1276, %v1312, %v1313
      %v1315 = vrot.slane %v248, 2
      %v1316 = vsel %vm1276, %v1313, %v1315
      %v1317 = vrot.slane %v249, 2
      %v1318 = vrot.slane %v250, 2
      %v1319 = vsel %vm1276, %v1317, %v1318
      %v1320 = vrot.slane %v251, 2
      %v1321 = vsel %vm1276, %v1318, %v1320
      %v1322 = vrot.slane %v252, 2
      %v1323 = vrot.slane %v253, 2
      %v1324 = vsel %vm1276, %v1322, %v1323
      %v1325 = vrot.slane %v254, 2
      %v1326 = vsel %vm1276, %v1323, %v1325
      %v1327 = vrot.slane %v255, 2
      %v1328 = vrot.slane %v256, 2
      %v1329 = vsel %vm1276, %v1327, %v1328
      %v1330 = vrot.slane %v257, 2
      %v1331 = vsel %vm1276, %v1328, %v1330
      %v1332 = vrot.slane %v258, 2
      %v1333 = vrot.slane %v259, 2
      %v1334 = vsel %vm1276, %v1332, %v1333
      %v1335 = vrot.slane %v260, 2
      %v1336 = vsel %vm1276, %v1333, %v1335
      %v1337 = vrot.slane %v261, 2
      %v1338 = vrot.slane %v262, 2
      %v1339 = vsel %vm1276, %v1337, %v1338
      %v1340 = vrot.slane %v263, 2
      %v1341 = vsel %vm1276, %v1338, %v1340
      %v1342 = vrot.slane %v264, 2
      %v1343 = vrot.slane %v265, 2
      %v1344 = vsel %vm1276, %v1342, %v1343
      %v1345 = vrot.slane %v266, 2
      %v1346 = vsel %vm1276, %v1343, %v1345
      %v1347 = vrot.slane %v267, 2
      %v1348 = vrot.slane %v268, 2
      %v1349 = vsel %vm1276, %v1347, %v1348
      %v1350 = vrot.slane %v269, 2
      %v1351 = vsel %vm1276, %v1348, %v1350
      %v1352 = vrot.slane %v270, 2
      %v1353 = vrot.slane %v271, 2
      %v1354 = vsel %vm1276, %v1352, %v1353
      %v1355 = vrot.slane %v272, 2
      %v1356 = vsel %vm1276, %v1353, %v1355
      %v1357 = vsel %vm418, %v1279, 0
      %v1359 = vsel %vm418, %v1281, 0
      %v1361 = vsel %vm418, %v1284, 0
      %v1363 = vsel %vm418, %v1286, 0
      %v1365 = vsel %vm418, %v1289, 0
      %v1367 = vsel %vm418, %v1291, 0
      %v1369 = vsel %vm418, %v1294, 0
      %v1371 = vsel %vm418, %v1296, 0
      %v1373 = vsel %vm418, %v1299, 0
      %v1375 = vsel %vm418, %v1301, 0
      %v1377 = vsel %vm418, %v1304, 0
      %v1379 = vsel %vm418, %v1306, 0
      %v1381 = vsel %vm418, %v1309, 0
      %v1383 = vsel %vm418, %v1311, 0
      %v1385 = vsel %vm418, %v1314, 0
      %v1387 = vsel %vm418, %v1316, 0
      %v1389 = vsel %vm418, %v1319, 0
      %v1391 = vsel %vm418, %v1321, 0
      %v1393 = vsel %vm418, %v1324, 0
      %v1395 = vsel %vm418, %v1326, 0
      %v1397 = vsel %vm418, %v1329, 0
      %v1399 = vsel %vm418, %v1331, 0
      %v1401 = vsel %vm418, %v1334, 0
      %v1403 = vsel %vm418, %v1336, 0
      %v1405 = vsel %vm418, %v1339, 0
      %v1407 = vsel %vm418, %v1341, 0
      %v1409 = vsel %vm418, %v1344, 0
      %v1411 = vsel %vm418, %v1346, 0
      %v1413 = vsel %vm418, %v1349, 0
      %v1415 = vsel %vm418, %v1351, 0
      %v1417 = vsel %vm418, %v1354, 0
      %v1419 = vsel %vm418, %v1356, 0
      %v1422 = vsel %vm485, %v281, 0
      %1424 = vmatprep.subr.mxu0 0.0
      %1425 = vmatpush1.msra.mxu0 %v1422
      %1426 = vmatprep.subr.mxu0 0.0
      %1427 = vmatpush1.msra.mxu0 0.0
      %1428 = vmatprep.subr.mxu0 0.0
      %1429 = vmatpush1.msra.mxu0 0.0
      %1430 = vmatprep.subr.mxu0 0.0
      %1431 = vmatpush1.msra.mxu0 0.0
      %1432 = vmatprep.subr.mxu0 0.0
      %1433 = vmatpush1.msra.mxu0 0.0
      %1434 = vmatprep.subr.mxu0 0.0
      %1435 = vmatpush1.msra.mxu0 0.0
      %1436 = vmatprep.subr.mxu0 0.0
      %1437 = vmatpush1.msra.mxu0 0.0
      %1438 = vmatprep.subr.mxu0 0.0
      %1439 = vmatpush1.msra.mxu0 0.0
      %1440 = vmatprep.subr.mxu0 0.0
      %1441 = vmatpush1.msra.mxu0 0.0
      %1442 = vmatprep.subr.mxu0 0.0
      %1443 = vmatpush1.msra.mxu0 0.0
      %1444 = vmatprep.subr.mxu0 0.0
      %1445 = vmatpush1.msra.mxu0 0.0
      %1446 = vmatprep.subr.mxu0 0.0
      %1447 = vmatpush1.msra.mxu0 0.0
      %1448 = vmatprep.subr.mxu0 0.0
      %1449 = vmatpush1.msra.mxu0 0.0
      %1450 = vmatprep.subr.mxu0 0.0
      %1451 = vmatpush1.msra.mxu0 0.0
      %1452 = vmatprep.subr.mxu0 0.0
      %1453 = vmatpush1.msra.mxu0 0.0
      %1454 = vmatprep.subr.mxu0 0.0
      %1455 = vmatpush1.msra.mxu0 0.0
      %1456 = vmatprep.subr.mxu0 0.0
      %1457 = vmatpush1.msra.mxu0 0.0
      %1458 = vmatprep.subr.mxu0 0.0
      %1459 = vmatpush1.msra.mxu0 0.0
      %1460 = vmatprep.subr.mxu0 0.0
      %1461 = vmatpush1.msra.mxu0 0.0
      %1462 = vmatprep.subr.mxu0 0.0
      %1463 = vmatpush1.msra.mxu0 0.0
      %1464 = vmatprep.subr.mxu0 0.0
      %1465 = vmatpush1.msra.mxu0 0.0
      %1466 = vmatprep.subr.mxu0 0.0
      %1467 = vmatpush1.msra.mxu0 0.0
      %1468 = vmatprep.subr.mxu0 0.0
      %1469 = vmatpush1.msra.mxu0 0.0
      %1470 = vmatprep.subr.mxu0 0.0
      %1471 = vmatpush1.msra.mxu0 0.0
      %1472 = vmatprep.subr.mxu0 0.0
      %1473 = vmatpush1.msra.mxu0 0.0
      %1474 = vmatprep.subr.mxu0 0.0
      %1475 = vmatpush1.msra.mxu0 0.0
      %1476 = vmatprep.subr.mxu0 0.0
      %1477 = vmatpush1.msra.mxu0 0.0
      %1478 = vmatprep.subr.mxu0 0.0
      %1479 = vmatpush1.msra.mxu0 0.0
      %1480 = vmatprep.subr.mxu0 0.0
      %1481 = vmatpush1.msra.mxu0 0.0
      %1482 = vmatprep.subr.mxu0 0.0
      %1483 = vmatpush1.msra.mxu0 0.0
      %1484 = vmatprep.subr.mxu0 0.0
      %1485 = vmatpush1.msra.mxu0 0.0
      %1486 = vmatprep.subr.mxu0 0.0
      %1487 = vmatpush1.msra.mxu0 0.0
      %1488 = vmatprep.mubr.f32.mxu0 0.0
      %1489 = vmatmul.mubr.f32.gmra.mrb[0].mxu0 %v1357
      %v1490 = vpop.f32.mrb[0].mxu0
      %v1491 = vadd.f32 0.0, %v1490
      %v1492 = vpop.f32.mrb[0].mxu0
      %1493 = vmatprep.mubr.f32.mxu0 0.0
      %1494 = vmatmul.mubr.f32.gmra.mrb[0].mxu0 %v1359
      %v1495 = vpop.f32.mrb[0].mxu0
      %v1496 = vadd.f32 0.0, %v1495
      %v1497 = vpop.f32.mrb[0].mxu0
      %1498 = vmatprep.mubr.f32.mxu0 0.0
      %1499 = vmatmul.mubr.f32.gmra.mrb[0].mxu0 %v1361
      %v1500 = vpop.f32.mrb[0].mxu0
      %v1501 = vadd.f32 0.0, %v1500
      %v1502 = vpop.f32.mrb[0].mxu0
      %1503 = vmatprep.mubr.f32.mxu0 0.0
      %1504 = vmatmul.mubr.f32.gmra.mrb[0].mxu0 %v1363
      %v1505 = vpop.f32.mrb[0].mxu0
      %v1506 = vadd.f32 0.0, %v1505
      %v1507 = vpop.f32.mrb[0].mxu0
      %1508 = vmatprep.mubr.f32.mxu0 0.0
      %1509 = vmatmul.mubr.f32.gmra.mrb[0].mxu0 %v1365
      %v1510 = vpop.f32.mrb[0].mxu0
      %v1511 = vadd.f32 0.0, %v1510
      %v1512 = vpop.f32.mrb[0].mxu0
      %1513 = vmatprep.mubr.f32.mxu0 0.0
      %1514 = vmatmul.mubr.f32.gmra.mrb[0].mxu0 %v1367
      %v1515 = vpop.f32.mrb[0].mxu0
      %v1516 = vadd.f32 0.0, %v1515
      %v1517 = vpop.f32.mrb[0].mxu0
      %1518 = vmatprep.mubr.f32.mxu0 0.0
      %1519 = vmatmul.mubr.f32.gmra.mrb[0].mxu0 %v1369
      %v1520 = vpop.f32.mrb[0].mxu0
      %v1521 = vadd.f32 0.0, %v1520
      %v1522 = vpop.f32.mrb[0].mxu0
      %1523 = vmatprep.mubr.f32.mxu0 0.0
      %1524 = vmatmul.mubr.f32.gmra.mrb[0].mxu0 %v1371
      %v1525 = vpop.f32.mrb[0].mxu0
      %v1526 = vadd.f32 0.0, %v1525
      %v1527 = vpop.f32.mrb[0].mxu0
      %1528 = vmatprep.mubr.f32.mxu0 0.0
      %1529 = vmatmul.mubr.f32.gmra.mrb[0].mxu0 %v1373
      %v1530 = vpop.f32.mrb[0].mxu0
      %v1531 = vadd.f32 0.0, %v1530
      %v1532 = vpop.f32.mrb[0].mxu0
      %1533 = vmatprep.mubr.f32.mxu0 0.0
      %1534 = vmatmul.mubr.f32.gmra.mrb[0].mxu0 %v1375
      %v1535 = vpop.f32.mrb[0].mxu0
      %v1536 = vadd.f32 0.0, %v1535
      %v1537 = vpop.f32.mrb[0].mxu0
      %1538 = vmatprep.mubr.f32.mxu0 0.0
      %1539 = vmatmul.mubr.f32.gmra.mrb[0].mxu0 %v1377
      %v1540 = vpop.f32.mrb[0].mxu0
      %v1541 = vadd.f32 0.0, %v1540
      %v1542 = vpop.f32.mrb[0].mxu0
      %1543 = vmatprep.mubr.f32.mxu0 0.0
      %1544 = vmatmul.mubr.f32.gmra.mrb[0].mxu0 %v1379
      %v1545 = vpop.f32.mrb[0].mxu0
      %v1546 = vadd.f32 0.0, %v1545
      %v1547 = vpop.f32.mrb[0].mxu0
      %1548 = vmatprep.mubr.f32.mxu0 0.0
      %1549 = vmatmul.mubr.f32.gmra.mrb[0].mxu0 %v1381
      %v1550 = vpop.f32.mrb[0].mxu0
      %v1551 = vadd.f32 0.0, %v1550
      %v1552 = vpop.f32.mrb[0].mxu0
      %1553 = vmatprep.mubr.f32.mxu0 0.0
      %1554 = vmatmul.mubr.f32.gmra.mrb[0].mxu0 %v1383
      %v1555 = vpop.f32.mrb[0].mxu0
      %v1556 = vadd.f32 0.0, %v1555
      %v1557 = vpop.f32.mrb[0].mxu0
      %1558 = vmatprep.mubr.f32.mxu0 0.0
      %1559 = vmatmul.mubr.f32.gmra.mrb[0].mxu0 %v1385
      %v1560 = vpop.f32.mrb[0].mxu0
      %v1561 = vadd.f32 0.0, %v1560
      %v1562 = vpop.f32.mrb[0].mxu0
      %1563 = vmatprep.mubr.f32.mxu0 0.0
      %1564 = vmatmul.mubr.f32.gmra.mrb[0].mxu0 %v1387
      %v1565 = vpop.f32.mrb[0].mxu0
      %v1566 = vadd.f32 0.0, %v1565
      %v1567 = vpop.f32.mrb[0].mxu0
      %1568 = vmatprep.mubr.f32.mxu0 0.0
      %1569 = vmatmul.mubr.f32.gmra.mrb[0].mxu0 %v1389
      %v1570 = vpop.f32.mrb[0].mxu0
      %v1571 = vadd.f32 0.0, %v1570
      %v1572 = vpop.f32.mrb[0].mxu0
      %1573 = vmatprep.mubr.f32.mxu0 0.0
      %1574 = vmatmul.mubr.f32.gmra.mrb[0].mxu0 %v1391
      %v1575 = vpop.f32.mrb[0].mxu0
      %v1576 = vadd.f32 0.0, %v1575
      %v1577 = vpop.f32.mrb[0].mxu0
      %1578 = vmatprep.mubr.f32.mxu0 0.0
      %1579 = vmatmul.mubr.f32.gmra.mrb[0].mxu0 %v1393
      %v1580 = vpop.f32.mrb[0].mxu0
      %v1581 = vadd.f32 0.0, %v1580
      %v1582 = vpop.f32.mrb[0].mxu0
      %1583 = vmatprep.mubr.f32.mxu0 0.0
      %1584 = vmatmul.mubr.f32.gmra.mrb[0].mxu0 %v1395
      %v1585 = vpop.f32.mrb[0].mxu0
      %v1586 = vadd.f32 0.0, %v1585
      %v1587 = vpop.f32.mrb[0].mxu0
      %1588 = vmatprep.mubr.f32.mxu0 0.0
      %1589 = vmatmul.mubr.f32.gmra.mrb[0].mxu0 %v1397
      %v1590 = vpop.f32.mrb[0].mxu0
      %v1591 = vadd.f32 0.0, %v1590
      %v1592 = vpop.f32.mrb[0].mxu0
      %1593 = vmatprep.mubr.f32.mxu0 0.0
      %1594 = vmatmul.mubr.f32.gmra.mrb[0].mxu0 %v1399
      %v1595 = vpop.f32.mrb[0].mxu0
      %v1596 = vadd.f32 0.0, %v1595
      %v1597 = vpop.f32.mrb[0].mxu0
      %1598 = vmatprep.mubr.f32.mxu0 0.0
      %1599 = vmatmul.mubr.f32.gmra.mrb[0].mxu0 %v1401
      %v1600 = vpop.f32.mrb[0].mxu0
      %v1601 = vadd.f32 0.0, %v1600
      %v1602 = vpop.f32.mrb[0].mxu0
      %1603 = vmatprep.mubr.f32.mxu0 0.0
      %1604 = vmatmul.mubr.f32.gmra.mrb[0].mxu0 %v1403
      %v1605 = vpop.f32.mrb[0].mxu0
      %v1606 = vadd.f32 0.0, %v1605
      %v1607 = vpop.f32.mrb[0].mxu0
      %1608 = vmatprep.mubr.f32.mxu0 0.0
      %1609 = vmatmul.mubr.f32.gmra.mrb[0].mxu0 %v1405
      %v1610 = vpop.f32.mrb[0].mxu0
      %v1611 = vadd.f32 0.0, %v1610
      %v1612 = vpop.f32.mrb[0].mxu0
      %1613 = vmatprep.mubr.f32.mxu0 0.0
      %1614 = vmatmul.mubr.f32.gmra.mrb[0].mxu0 %v1407
      %v1615 = vpop.f32.mrb[0].mxu0
      %v1616 = vadd.f32 0.0, %v1615
      %v1617 = vpop.f32.mrb[0].mxu0
      %1618 = vmatprep.mubr.f32.mxu0 0.0
      %1619 = vmatmul.mubr.f32.gmra.mrb[0].mxu0 %v1409
      %v1620 = vpop.f32.mrb[0].mxu0
      %v1621 = vadd.f32 0.0, %v1620
      %v1622 = vpop.f32.mrb[0].mxu0
      %1623 = vmatprep.mubr.f32.mxu0 0.0
      %1624 = vmatmul.mubr.f32.gmra.mrb[0].mxu0 %v1411
      %v1625 = vpop.f32.mrb[0].mxu0
      %v1626 = vadd.f32 0.0, %v1625
      %v1627 = vpop.f32.mrb[0].mxu0
      %1628 = vmatprep.mubr.f32.mxu0 0.0
      %1629 = vmatmul.mubr.f32.gmra.mrb[0].mxu0 %v1413
      %v1630 = vpop.f32.mrb[0].mxu0
      %v1631 = vadd.f32 0.0, %v1630
      %v1632 = vpop.f32.mrb[0].mxu0
      %1633 = vmatprep.mubr.f32.mxu0 0.0
      %1634 = vmatmul.mubr.f32.gmra.mrb[0].mxu0 %v1415
      %v1635 = vpop.f32.mrb[0].mxu0
      %v1636 = vadd.f32 0.0, %v1635
      %v1637 = vpop.f32.mrb[0].mxu0
      %1638 = vmatprep.mubr.f32.mxu0 0.0
      %1639 = vmatmul.mubr.f32.gmra.mrb[0].mxu0 %v1417
      %v1640 = vpop.f32.mrb[0].mxu0
      %v1641 = vadd.f32 0.0, %v1640
      %v1642 = vpop.f32.mrb[0].mxu0
      %1643 = vmatprep.mubr.f32.mxu0 0.0
      %1644 = vmatmul.mubr.f32.gmra.mrb[0].mxu0 %v1419
      %v1645 = vpop.f32.mrb[0].mxu0
      %v1646 = vadd.f32 0.0, %v1645
      %v1647 = vpop.f32.mrb[0].mxu0
      %1648 = vdwg.mxu0
      %v1649 = vadd.f32 %v1244, %v1491
      %v1650 = vadd.f32 %v1245, %v1496
      %v1651 = vadd.f32 %v1246, %v1501
      %v1652 = vadd.f32 %v1247, %v1506
      %v1653 = vadd.f32 %v1248, %v1511
      %v1654 = vadd.f32 %v1249, %v1516
      %v1655 = vadd.f32 %v1250, %v1521
      %v1656 = vadd.f32 %v1251, %v1526
      %v1657 = vadd.f32 %v1252, %v1531
      %v1658 = vadd.f32 %v1253, %v1536
      %v1659 = vadd.f32 %v1254, %v1541
      %v1660 = vadd.f32 %v1255, %v1546
      %v1661 = vadd.f32 %v1256, %v1551
      %v1662 = vadd.f32 %v1257, %v1556
      %v1663 = vadd.f32 %v1258, %v1561
      %v1664 = vadd.f32 %v1259, %v1566
      %v1665 = vadd.f32 %v1260, %v1571
      %v1666 = vadd.f32 %v1261, %v1576
      %v1667 = vadd.f32 %v1262, %v1581
      %v1668 = vadd.f32 %v1263, %v1586
      %v1669 = vadd.f32 %v1264, %v1591
      %v1670 = vadd.f32 %v1265, %v1596
      %v1671 = vadd.f32 %v1266, %v1601
      %v1672 = vadd.f32 %v1267, %v1606
      %v1673 = vadd.f32 %v1268, %v1611
      %v1674 = vadd.f32 %v1269, %v1616
      %v1675 = vadd.f32 %v1270, %v1621
      %v1676 = vadd.f32 %v1271, %v1626
      %v1677 = vadd.f32 %v1272, %v1631
      %v1678 = vadd.f32 %v1273, %v1636
      %v1679 = vadd.f32 %v1274, %v1641
      %v1680 = vadd.f32 %v1275, %v1646
      %v1681 = vsel %vm418, %v273, 0
      %v1683 = vsel %vm418, %v274, 0
      %v1686 = vsel %vm485, %v282, 0
      %1688 = vmatprep.subr.mxu0 0.0
      %1689 = vmatpush1.msra.mxu0 %v1686
      %1690 = vmatprep.subr.mxu0 0.0
      %1691 = vmatpush1.msra.mxu0 0.0
      %1692 = vmatprep.subr.mxu0 0.0
      %1693 = vmatpush1.msra.mxu0 0.0
      %1694 = vmatprep.subr.mxu0 0.0
      %1695 = vmatpush1.msra.mxu0 0.0
      %1696 = vmatprep.subr.mxu0 0.0
      %1697 = vmatpush1.msra.mxu0 0.0
      %1698 = vmatprep.subr.mxu0 0.0
      %1699 = vmatpush1.msra.mxu0 0.0
      %1700 = vmatprep.subr.mxu0 0.0
      %1701 = vmatpush1.msra.mxu0 0.0
      %1702 = vmatprep.subr.mxu0 0.0
      %1703 = vmatpush1.msra.mxu0 0.0
      %1704 = vmatprep.subr.mxu0 0.0
      %1705 = vmatpush1.msra.mxu0 0.0
      %1706 = vmatprep.subr.mxu0 0.0
      %1707 = vmatpush1.msra.mxu0 0.0
      %1708 = vmatprep.subr.mxu0 0.0
      %1709 = vmatpush1.msra.mxu0 0.0
      %1710 = vmatprep.subr.mxu0 0.0
      %1711 = vmatpush1.msra.mxu0 0.0
      %1712 = vmatprep.subr.mxu0 0.0
      %1713 = vmatpush1.msra.mxu0 0.0
      %1714 = vmatprep.subr.mxu0 0.0
      %1715 = vmatpush1.msra.mxu0 0.0
      %1716 = vmatprep.subr.mxu0 0.0
      %1717 = vmatpush1.msra.mxu0 0.0
      %1718 = vmatprep.subr.mxu0 0.0
      %1719 = vmatpush1.msra.mxu0 0.0
      %1720 = vmatprep.subr.mxu0 0.0
      %1721 = vmatpush1.msra.mxu0 0.0
      %1722 = vmatprep.subr.mxu0 0.0
      %1723 = vmatpush1.msra.mxu0 0.0
      %1724 = vmatprep.subr.mxu0 0.0
      %1725 = vmatpush1.msra.mxu0 0.0
      %1726 = vmatprep.subr.mxu0 0.0
      %1727 = vmatpush1.msra.mxu0 0.0
      %1728 = vmatprep.subr.mxu0 0.0
      %1729 = vmatpush1.msra.mxu0 0.0
      %1730 = vmatprep.subr.mxu0 0.0
      %1731 = vmatpush1.msra.mxu0 0.0
      %1732 = vmatprep.subr.mxu0 0.0
      %1733 = vmatpush1.msra.mxu0 0.0
      %1734 = vmatprep.subr.mxu0 0.0
      %1735 = vmatpush1.msra.mxu0 0.0
      %1736 = vmatprep.subr.mxu0 0.0
      %1737 = vmatpush1.msra.mxu0 0.0
      %1738 = vmatprep.subr.mxu0 0.0
      %1739 = vmatpush1.msra.mxu0 0.0
      %1740 = vmatprep.subr.mxu0 0.0
      %1741 = vmatpush1.msra.mxu0 0.0
      %1742 = vmatprep.subr.mxu0 0.0
      %1743 = vmatpush1.msra.mxu0 0.0
      %1744 = vmatprep.subr.mxu0 0.0
      %1745 = vmatpush1.msra.mxu0 0.0
      %1746 = vmatprep.subr.mxu0 0.0
      %1747 = vmatpush1.msra.mxu0 0.0
      %1748 = vmatprep.subr.mxu0 0.0
      %1749 = vmatpush1.msra.mxu0 0.0
      %1750 = vmatprep.subr.mxu0 0.0
      %1751 = vmatpush1.msra.mxu0 0.0
      %1752 = vmatprep.mubr.f32.mxu0 0.0
      %1753 = vmatmul.mubr.f32.gmra.mrb[0].mxu0 %v425
      %v1754 = vpop.f32.mrb[0].mxu0
      %v1755 = vadd.f32 0.0, %v1754
      %v1756 = vpop.f32.mrb[0].mxu0
      %1757 = vmatprep.mubr.f32.mxu0 0.0
      %1758 = vmatmul.mubr.f32.gmra.mrb[0].mxu0 %v427
      %v1759 = vpop.f32.mrb[0].mxu0
      %v1760 = vadd.f32 0.0, %v1759
      %v1761 = vpop.f32.mrb[0].mxu0
      %1762 = vmatprep.mubr.f32.mxu0 0.0
      %1763 = vmatmul.mubr.f32.gmra.mrb[0].mxu0 %v429
      %v1764 = vpop.f32.mrb[0].mxu0
      %v1765 = vadd.f32 0.0, %v1764
      %v1766 = vpop.f32.mrb[0].mxu0
      %1767 = vmatprep.mubr.f32.mxu0 0.0
      %1768 = vmatmul.mubr.f32.gmra.mrb[0].mxu0 %v431
      %v1769 = vpop.f32.mrb[0].mxu0
      %v1770 = vadd.f32 0.0, %v1769
      %v1771 = vpop.f32.mrb[0].mxu0
      %1772 = vmatprep.mubr.f32.mxu0 0.0
      %1773 = vmatmul.mubr.f32.gmra.mrb[0].mxu0 %v433
      %v1774 = vpop.f32.mrb[0].mxu0
      %v1775 = vadd.f32 0.0, %v1774
      %v1776 = vpop.f32.mrb[0].mxu0
      %1777 = vmatprep.mubr.f32.mxu0 0.0
      %1778 = vmatmul.mubr.f32.gmra.mrb[0].mxu0 %v435
      %v1779 = vpop.f32.mrb[0].mxu0
      %v1780 = vadd.f32 0.0, %v1779
      %v1781 = vpop.f32.mrb[0].mxu0
      %1782 = vmatprep.mubr.f32.mxu0 0.0
      %1783 = vmatmul.mubr.f32.gmra.mrb[0].mxu0 %v437
      %v1784 = vpop.f32.mrb[0].mxu0
      %v1785 = vadd.f32 0.0, %v1784
      %v1786 = vpop.f32.mrb[0].mxu0
      %1787 = vmatprep.mubr.f32.mxu0 0.0
      %1788 = vmatmul.mubr.f32.gmra.mrb[0].mxu0 %v439
      %v1789 = vpop.f32.mrb[0].mxu0
      %v1790 = vadd.f32 0.0, %v1789
      %v1791 = vpop.f32.mrb[0].mxu0
      %1792 = vmatprep.mubr.f32.mxu0 0.0
      %1793 = vmatmul.mubr.f32.gmra.mrb[0].mxu0 %v441
      %v1794 = vpop.f32.mrb[0].mxu0
      %v1795 = vadd.f32 0.0, %v1794
      %v1796 = vpop.f32.mrb[0].mxu0
      %1797 = vmatprep.mubr.f32.mxu0 0.0
      %1798 = vmatmul.mubr.f32.gmra.mrb[0].mxu0 %v443
      %v1799 = vpop.f32.mrb[0].mxu0
      %v1800 = vadd.f32 0.0, %v1799
      %v1801 = vpop.f32.mrb[0].mxu0
      %1802 = vmatprep.mubr.f32.mxu0 0.0
      %1803 = vmatmul.mubr.f32.gmra.mrb[0].mxu0 %v445
      %v1804 = vpop.f32.mrb[0].mxu0
      %v1805 = vadd.f32 0.0, %v1804
      %v1806 = vpop.f32.mrb[0].mxu0
      %1807 = vmatprep.mubr.f32.mxu0 0.0
      %1808 = vmatmul.mubr.f32.gmra.mrb[0].mxu0 %v447
      %v1809 = vpop.f32.mrb[0].mxu0
      %v1810 = vadd.f32 0.0, %v1809
      %v1811 = vpop.f32.mrb[0].mxu0
      %1812 = vmatprep.mubr.f32.mxu0 0.0
      %1813 = vmatmul.mubr.f32.gmra.mrb[0].mxu0 %v449
      %v1814 = vpop.f32.mrb[0].mxu0
      %v1815 = vadd.f32 0.0, %v1814
      %v1816 = vpop.f32.mrb[0].mxu0
      %1817 = vmatprep.mubr.f32.mxu0 0.0
      %1818 = vmatmul.mubr.f32.gmra.mrb[0].mxu0 %v451
      %v1819 = vpop.f32.mrb[0].mxu0
      %v1820 = vadd.f32 0.0, %v1819
      %v1821 = vpop.f32.mrb[0].mxu0
      %1822 = vmatprep.mubr.f32.mxu0 0.0
      %1823 = vmatmul.mubr.f32.gmra.mrb[0].mxu0 %v453
      %v1824 = vpop.f32.mrb[0].mxu0
      %v1825 = vadd.f32 0.0, %v1824
      %v1826 = vpop.f32.mrb[0].mxu0
      %1827 = vmatprep.mubr.f32.mxu0 0.0
      %1828 = vmatmul.mubr.f32.gmra.mrb[0].mxu0 %v455
      %v1829 = vpop.f32.mrb[0].mxu0
      %v1830 = vadd.f32 0.0, %v1829
      %v1831 = vpop.f32.mrb[0].mxu0
      %1832 = vmatprep.mubr.f32.mxu0 0.0
      %1833 = vmatmul.mubr.f32.gmra.mrb[0].mxu0 %v457
      %v1834 = vpop.f32.mrb[0].mxu0
      %v1835 = vadd.f32 0.0, %v1834
      %v1836 = vpop.f32.mrb[0].mxu0
      %1837 = vmatprep.mubr.f32.mxu0 0.0
      %1838 = vmatmul.mubr.f32.gmra.mrb[0].mxu0 %v459
      %v1839 = vpop.f32.mrb[0].mxu0
      %v1840 = vadd.f32 0.0, %v1839
      %v1841 = vpop.f32.mrb[0].mxu0
      %1842 = vmatprep.mubr.f32.mxu0 0.0
      %1843 = vmatmul.mubr.f32.gmra.mrb[0].mxu0 %v461
      %v1844 = vpop.f32.mrb[0].mxu0
      %v1845 = vadd.f32 0.0, %v1844
      %v1846 = vpop.f32.mrb[0].mxu0
      %1847 = vmatprep.mubr.f32.mxu0 0.0
      %1848 = vmatmul.mubr.f32.gmra.mrb[0].mxu0 %v463
      %v1849 = vpop.f32.mrb[0].mxu0
      %v1850 = vadd.f32 0.0, %v1849
      %v1851 = vpop.f32.mrb[0].mxu0
      %1852 = vmatprep.mubr.f32.mxu0 0.0
      %1853 = vmatmul.mubr.f32.gmra.mrb[0].mxu0 %v465
      %v1854 = vpop.f32.mrb[0].mxu0
      %v1855 = vadd.f32 0.0, %v1854
      %v1856 = vpop.f32.mrb[0].mxu0
      %1857 = vmatprep.mubr.f32.mxu0 0.0
      %1858 = vmatmul.mubr.f32.gmra.mrb[0].mxu0 %v467
      %v1859 = vpop.f32.mrb[0].mxu0
      %v1860 = vadd.f32 0.0, %v1859
      %v1861 = vpop.f32.mrb[0].mxu0
      %1862 = vmatprep.mubr.f32.mxu0 0.0
      %1863 = vmatmul.mubr.f32.gmra.mrb[0].mxu0 %v469
      %v1864 = vpop.f32.mrb[0].mxu0
      %v1865 = vadd.f32 0.0, %v1864
      %v1866 = vpop.f32.mrb[0].mxu0
      %1867 = vmatprep.mubr.f32.mxu0 0.0
      %1868 = vmatmul.mubr.f32.gmra.mrb[0].mxu0 %v471
      %v1869 = vpop.f32.mrb[0].mxu0
      %v1870 = vadd.f32 0.0, %v1869
      %v1871 = vpop.f32.mrb[0].mxu0
      %1872 = vmatprep.mubr.f32.mxu0 0.0
      %1873 = vmatmul.mubr.f32.gmra.mrb[0].mxu0 %v473
      %v1874 = vpop.f32.mrb[0].mxu0
      %v1875 = vadd.f32 0.0, %v1874
      %v1876 = vpop.f32.mrb[0].mxu0
      %1877 = vmatprep.mubr.f32.mxu0 0.0
      %1878 = vmatmul.mubr.f32.gmra.mrb[0].mxu0 %v475
      %v1879 = vpop.f32.mrb[0].mxu0
      %v1880 = vadd.f32 0.0, %v1879
      %v1881 = vpop.f32.mrb[0].mxu0
      %1882 = vmatprep.mubr.f32.mxu0 0.0
      %1883 = vmatmul.mubr.f32.gmra.mrb[0].mxu0 %v477
      %v1884 = vpop.f32.mrb[0].mxu0
      %v1885 = vadd.f32 0.0, %v1884
      %v1886 = vpop.f32.mrb[0].mxu0
      %1887 = vmatprep.mubr.f32.mxu0 0.0
      %1888 = vmatmul.mubr.f32.gmra.mrb[0].mxu0 %v479
      %v1889 = vpop.f32.mrb[0].mxu0
      %v1890 = vadd.f32 0.0, %v1889
      %v1891 = vpop.f32.mrb[0].mxu0
      %1892 = vmatprep.mubr.f32.mxu0 0.0
      %1893 = vmatmul.mubr.f32.gmra.mrb[0].mxu0 %v481
      %v1894 = vpop.f32.mrb[0].mxu0
      %v1895 = vadd.f32 0.0, %v1894
      %v1896 = vpop.f32.mrb[0].mxu0
      %1897 = vmatprep.mubr.f32.mxu0 0.0
      %1898 = vmatmul.mubr.f32.gmra.mrb[0].mxu0 %v483
      %v1899 = vpop.f32.mrb[0].mxu0
      %v1900 = vadd.f32 0.0, %v1899
      %v1901 = vpop.f32.mrb[0].mxu0
      %1902 = vmatprep.mubr.f32.mxu0 0.0
      %1903 = vmatmul.mubr.f32.gmra.mrb[0].mxu0 %v1681
      %v1904 = vpop.f32.mrb[0].mxu0
      %v1905 = vadd.f32 0.0, %v1904
      %v1906 = vpop.f32.mrb[0].mxu0
      %1907 = vmatprep.mubr.f32.mxu0 0.0
      %1908 = vmatmul.mubr.f32.gmra.mrb[0].mxu0 %v1683
      %v1909 = vpop.f32.mrb[0].mxu0
      %v1910 = vadd.f32 0.0, %v1909
      %v1911 = vpop.f32.mrb[0].mxu0
      %1912 = vdwg.mxu0
      %v1913 = vadd.f32 %v1649, %v1755
      %v1914 = vadd.f32 %v1650, %v1760
      %v1915 = vadd.f32 %v1651, %v1765
      %v1916 = vadd.f32 %v1652, %v1770
      %v1917 = vadd.f32 %v1653, %v1775
      %v1918 = vadd.f32 %v1654, %v1780
      %v1919 = vadd.f32 %v1655, %v1785
      %v1920 = vadd.f32 %v1656, %v1790
      %v1921 = vadd.f32 %v1657, %v1795
      %v1922 = vadd.f32 %v1658, %v1800
      %v1923 = vadd.f32 %v1659, %v1805
      %v1924 = vadd.f32 %v1660, %v1810
      %v1925 = vadd.f32 %v1661, %v1815
      %v1926 = vadd.f32 %v1662, %v1820
      %v1927 = vadd.f32 %v1663, %v1825
      %v1928 = vadd.f32 %v1664, %v1830
      %v1929 = vadd.f32 %v1665, %v1835
      %v1930 = vadd.f32 %v1666, %v1840
      %v1931 = vadd.f32 %v1667, %v1845
      %v1932 = vadd.f32 %v1668, %v1850
      %v1933 = vadd.f32 %v1669, %v1855
      %v1934 = vadd.f32 %v1670, %v1860
      %v1935 = vadd.f32 %v1671, %v1865
      %v1936 = vadd.f32 %v1672, %v1870
      %v1937 = vadd.f32 %v1673, %v1875
      %v1938 = vadd.f32 %v1674, %v1880
      %v1939 = vadd.f32 %v1675, %v1885
      %v1940 = vadd.f32 %v1676, %v1890
      %v1941 = vadd.f32 %v1677, %v1895
      %v1942 = vadd.f32 %v1678, %v1900
      %v1943 = vadd.f32 %v1679, %v1905
      %v1944 = vadd.f32 %v1680, %v1910
      %v1946 = vsel %vm485, %v283, 0
      %1948 = vmatprep.subr.mxu0 0.0
      %1949 = vmatpush1.msra.mxu0 %v1946
      %1950 = vmatprep.subr.mxu0 0.0
      %1951 = vmatpush1.msra.mxu0 0.0
      %1952 = vmatprep.subr.mxu0 0.0
      %1953 = vmatpush1.msra.mxu0 0.0
      %1954 = vmatprep.subr.mxu0 0.0
      %1955 = vmatpush1.msra.mxu0 0.0
      %1956 = vmatprep.subr.mxu0 0.0
      %1957 = vmatpush1.msra.mxu0 0.0
      %1958 = vmatprep.subr.mxu0 0.0
      %1959 = vmatpush1.msra.mxu0 0.0
      %1960 = vmatprep.subr.mxu0 0.0
      %1961 = vmatpush1.msra.mxu0 0.0
      %1962 = vmatprep.subr.mxu0 0.0
      %1963 = vmatpush1.msra.mxu0 0.0
      %1964 = vmatprep.subr.mxu0 0.0
      %1965 = vmatpush1.msra.mxu0 0.0
      %1966 = vmatprep.subr.mxu0 0.0
      %1967 = vmatpush1.msra.mxu0 0.0
      %1968 = vmatprep.subr.mxu0 0.0
      %1969 = vmatpush1.msra.mxu0 0.0
      %1970 = vmatprep.subr.mxu0 0.0
      %1971 = vmatpush1.msra.mxu0 0.0
      %1972 = vmatprep.subr.mxu0 0.0
      %1973 = vmatpush1.msra.mxu0 0.0
      %1974 = vmatprep.subr.mxu0 0.0
      %1975 = vmatpush1.msra.mxu0 0.0
      %1976 = vmatprep.subr.mxu0 0.0
      %1977 = vmatpush1.msra.mxu0 0.0
      %1978 = vmatprep.subr.mxu0 0.0
      %1979 = vmatpush1.msra.mxu0 0.0
      %1980 = vmatprep.subr.mxu0 0.0
      %1981 = vmatpush1.msra.mxu0 0.0
      %1982 = vmatprep.subr.mxu0 0.0
      %1983 = vmatpush1.msra.mxu0 0.0
      %1984 = vmatprep.subr.mxu0 0.0
      %1985 = vmatpush1.msra.mxu0 0.0
      %1986 = vmatprep.subr.mxu0 0.0
      %1987 = vmatpush1.msra.mxu0 0.0
      %1988 = vmatprep.subr.mxu0 0.0
      %1989 = vmatpush1.msra.mxu0 0.0
      %1990 = vmatprep.subr.mxu0 0.0
      %1991 = vmatpush1.msra.mxu0 0.0
      %1992 = vmatprep.subr.mxu0 0.0
      %1993 = vmatpush1.msra.mxu0 0.0
      %1994 = vmatprep.subr.mxu0 0.0
      %1995 = vmatpush1.msra.mxu0 0.0
      %1996 = vmatprep.subr.mxu0 0.0
      %1997 = vmatpush1.msra.mxu0 0.0
      %1998 = vmatprep.subr.mxu0 0.0
      %1999 = vmatpush1.msra.mxu0 0.0
      %2000 = vmatprep.subr.mxu0 0.0
      %2001 = vmatpush1.msra.mxu0 0.0
      %2002 = vmatprep.subr.mxu0 0.0
      %2003 = vmatpush1.msra.mxu0 0.0
      %2004 = vmatprep.subr.mxu0 0.0
      %2005 = vmatpush1.msra.mxu0 0.0
      %2006 = vmatprep.subr.mxu0 0.0
      %2007 = vmatpush1.msra.mxu0 0.0
      %2008 = vmatprep.subr.mxu0 0.0
      %2009 = vmatpush1.msra.mxu0 0.0
      %2010 = vmatprep.subr.mxu0 0.0
      %2011 = vmatpush1.msra.mxu0 0.0
      %2012 = vmatprep.mubr.f32.mxu0 0.0
      %2013 = vmatmul.mubr.f32.gmra.mrb[0].mxu0 %v714
      %v2014 = vpop.f32.mrb[0].mxu0
      %v2015 = vadd.f32 0.0, %v2014
      %v2016 = vpop.f32.mrb[0].mxu0
      %2017 = vmatprep.mubr.f32.mxu0 0.0
      %2018 = vmatmul.mubr.f32.gmra.mrb[0].mxu0 %v716
      %v2019 = vpop.f32.mrb[0].mxu0
      %v2020 = vadd.f32 0.0, %v2019
      %v2021 = vpop.f32.mrb[0].mxu0
      %2022 = vmatprep.mubr.f32.mxu0 0.0
      %2023 = vmatmul.mubr.f32.gmra.mrb[0].mxu0 %v718
      %v2024 = vpop.f32.mrb[0].mxu0
      %v2025 = vadd.f32 0.0, %v2024
      %v2026 = vpop.f32.mrb[0].mxu0
      %2027 = vmatprep.mubr.f32.mxu0 0.0
      %2028 = vmatmul.mubr.f32.gmra.mrb[0].mxu0 %v720
      %v2029 = vpop.f32.mrb[0].mxu0
      %v2030 = vadd.f32 0.0, %v2029
      %v2031 = vpop.f32.mrb[0].mxu0
      %2032 = vmatprep.mubr.f32.mxu0 0.0
      %2033 = vmatmul.mubr.f32.gmra.mrb[0].mxu0 %v722
      %v2034 = vpop.f32.mrb[0].mxu0
      %v2035 = vadd.f32 0.0, %v2034
      %v2036 = vpop.f32.mrb[0].mxu0
      %2037 = vmatprep.mubr.f32.mxu0 0.0
      %2038 = vmatmul.mubr.f32.gmra.mrb[0].mxu0 %v724
      %v2039 = vpop.f32.mrb[0].mxu0
      %v2040 = vadd.f32 0.0, %v2039
      %v2041 = vpop.f32.mrb[0].mxu0
      %2042 = vmatprep.mubr.f32.mxu0 0.0
      %2043 = vmatmul.mubr.f32.gmra.mrb[0].mxu0 %v726
      %v2044 = vpop.f32.mrb[0].mxu0
      %v2045 = vadd.f32 0.0, %v2044
      %v2046 = vpop.f32.mrb[0].mxu0
      %2047 = vmatprep.mubr.f32.mxu0 0.0
      %2048 = vmatmul.mubr.f32.gmra.mrb[0].mxu0 %v728
      %v2049 = vpop.f32.mrb[0].mxu0
      %v2050 = vadd.f32 0.0, %v2049
      %v2051 = vpop.f32.mrb[0].mxu0
      %2052 = vmatprep.mubr.f32.mxu0 0.0
      %2053 = vmatmul.mubr.f32.gmra.mrb[0].mxu0 %v730
      %v2054 = vpop.f32.mrb[0].mxu0
      %v2055 = vadd.f32 0.0, %v2054
      %v2056 = vpop.f32.mrb[0].mxu0
      %2057 = vmatprep.mubr.f32.mxu0 0.0
      %2058 = vmatmul.mubr.f32.gmra.mrb[0].mxu0 %v732
      %v2059 = vpop.f32.mrb[0].mxu0
      %v2060 = vadd.f32 0.0, %v2059
      %v2061 = vpop.f32.mrb[0].mxu0
      %2062 = vmatprep.mubr.f32.mxu0 0.0
      %2063 = vmatmul.mubr.f32.gmra.mrb[0].mxu0 %v734
      %v2064 = vpop.f32.mrb[0].mxu0
      %v2065 = vadd.f32 0.0, %v2064
      %v2066 = vpop.f32.mrb[0].mxu0
      %2067 = vmatprep.mubr.f32.mxu0 0.0
      %2068 = vmatmul.mubr.f32.gmra.mrb[0].mxu0 %v736
      %v2069 = vpop.f32.mrb[0].mxu0
      %v2070 = vadd.f32 0.0, %v2069
      %v2071 = vpop.f32.mrb[0].mxu0
      %2072 = vmatprep.mubr.f32.mxu0 0.0
      %2073 = vmatmul.mubr.f32.gmra.mrb[0].mxu0 %v738
      %v2074 = vpop.f32.mrb[0].mxu0
      %v2075 = vadd.f32 0.0, %v2074
      %v2076 = vpop.f32.mrb[0].mxu0
      %2077 = vmatprep.mubr.f32.mxu0 0.0
      %2078 = vmatmul.mubr.f32.gmra.mrb[0].mxu0 %v740
      %v2079 = vpop.f32.mrb[0].mxu0
      %v2080 = vadd.f32 0.0, %v2079
      %v2081 = vpop.f32.mrb[0].mxu0
      %2082 = vmatprep.mubr.f32.mxu0 0.0
      %2083 = vmatmul.mubr.f32.gmra.mrb[0].mxu0 %v742
      %v2084 = vpop.f32.mrb[0].mxu0
      %v2085 = vadd.f32 0.0, %v2084
      %v2086 = vpop.f32.mrb[0].mxu0
      %2087 = vmatprep.mubr.f32.mxu0 0.0
      %2088 = vmatmul.mubr.f32.gmra.mrb[0].mxu0 %v744
      %v2089 = vpop.f32.mrb[0].mxu0
      %v2090 = vadd.f32 0.0, %v2089
      %v2091 = vpop.f32.mrb[0].mxu0
      %2092 = vmatprep.mubr.f32.mxu0 0.0
      %2093 = vmatmul.mubr.f32.gmra.mrb[0].mxu0 %v746
      %v2094 = vpop.f32.mrb[0].mxu0
      %v2095 = vadd.f32 0.0, %v2094
      %v2096 = vpop.f32.mrb[0].mxu0
      %2097 = vmatprep.mubr.f32.mxu0 0.0
      %2098 = vmatmul.mubr.f32.gmra.mrb[0].mxu0 %v748
      %v2099 = vpop.f32.mrb[0].mxu0
      %v2100 = vadd.f32 0.0, %v2099
      %v2101 = vpop.f32.mrb[0].mxu0
      %2102 = vmatprep.mubr.f32.mxu0 0.0
      %2103 = vmatmul.mubr.f32.gmra.mrb[0].mxu0 %v750
      %v2104 = vpop.f32.mrb[0].mxu0
      %v2105 = vadd.f32 0.0, %v2104
      %v2106 = vpop.f32.mrb[0].mxu0
      %2107 = vmatprep.mubr.f32.mxu0 0.0
      %2108 = vmatmul.mubr.f32.gmra.mrb[0].mxu0 %v752
      %v2109 = vpop.f32.mrb[0].mxu0
      %v2110 = vadd.f32 0.0, %v2109
      %v2111 = vpop.f32.mrb[0].mxu0
      %2112 = vmatprep.mubr.f32.mxu0 0.0
      %2113 = vmatmul.mubr.f32.gmra.mrb[0].mxu0 %v754
      %v2114 = vpop.f32.mrb[0].mxu0
      %v2115 = vadd.f32 0.0, %v2114
      %v2116 = vpop.f32.mrb[0].mxu0
      %2117 = vmatprep.mubr.f32.mxu0 0.0
      %2118 = vmatmul.mubr.f32.gmra.mrb[0].mxu0 %v756
      %v2119 = vpop.f32.mrb[0].mxu0
      %v2120 = vadd.f32 0.0, %v2119
      %v2121 = vpop.f32.mrb[0].mxu0
      %2122 = vmatprep.mubr.f32.mxu0 0.0
      %2123 = vmatmul.mubr.f32.gmra.mrb[0].mxu0 %v758
      %v2124 = vpop.f32.mrb[0].mxu0
      %v2125 = vadd.f32 0.0, %v2124
      %v2126 = vpop.f32.mrb[0].mxu0
      %2127 = vmatprep.mubr.f32.mxu0 0.0
      %2128 = vmatmul.mubr.f32.gmra.mrb[0].mxu0 %v760
      %v2129 = vpop.f32.mrb[0].mxu0
      %v2130 = vadd.f32 0.0, %v2129
      %v2131 = vpop.f32.mrb[0].mxu0
      %2132 = vmatprep.mubr.f32.mxu0 0.0
      %2133 = vmatmul.mubr.f32.gmra.mrb[0].mxu0 %v762
      %v2134 = vpop.f32.mrb[0].mxu0
      %v2135 = vadd.f32 0.0, %v2134
      %v2136 = vpop.f32.mrb[0].mxu0
      %2137 = vmatprep.mubr.f32.mxu0 0.0
      %2138 = vmatmul.mubr.f32.gmra.mrb[0].mxu0 %v764
      %v2139 = vpop.f32.mrb[0].mxu0
      %v2140 = vadd.f32 0.0, %v2139
      %v2141 = vpop.f32.mrb[0].mxu0
      %2142 = vmatprep.mubr.f32.mxu0 0.0
      %2143 = vmatmul.mubr.f32.gmra.mrb[0].mxu0 %v766
      %v2144 = vpop.f32.mrb[0].mxu0
      %v2145 = vadd.f32 0.0, %v2144
      %v2146 = vpop.f32.mrb[0].mxu0
      %2147 = vmatprep.mubr.f32.mxu0 0.0
      %2148 = vmatmul.mubr.f32.gmra.mrb[0].mxu0 %v768
      %v2149 = vpop.f32.mrb[0].mxu0
      %v2150 = vadd.f32 0.0, %v2149
      %v2151 = vpop.f32.mrb[0].mxu0
      %2152 = vmatprep.mubr.f32.mxu0 0.0
      %2153 = vmatmul.mubr.f32.gmra.mrb[0].mxu0 %v770
      %v2154 = vpop.f32.mrb[0].mxu0
      %v2155 = vadd.f32 0.0, %v2154
      %v2156 = vpop.f32.mrb[0].mxu0
      %2157 = vmatprep.mubr.f32.mxu0 0.0
      %2158 = vmatmul.mubr.f32.gmra.mrb[0].mxu0 %v772
      %v2159 = vpop.f32.mrb[0].mxu0
      %v2160 = vadd.f32 0.0, %v2159
      %v2161 = vpop.f32.mrb[0].mxu0
      %2162 = vmatprep.mubr.f32.mxu0 0.0
      %2163 = vmatmul.mubr.f32.gmra.mrb[0].mxu0 %v774
      %v2164 = vpop.f32.mrb[0].mxu0
      %v2165 = vadd.f32 0.0, %v2164
      %v2166 = vpop.f32.mrb[0].mxu0
      %2167 = vmatprep.mubr.f32.mxu0 0.0
      %2168 = vmatmul.mubr.f32.gmra.mrb[0].mxu0 %v776
      %v2169 = vpop.f32.mrb[0].mxu0
      %v2170 = vadd.f32 0.0, %v2169
      %v2171 = vpop.f32.mrb[0].mxu0
      %2172 = vdwg.mxu0
      %v2173 = vadd.f32 %v1913, %v2015
      %v2174 = vadd.f32 %v1914, %v2020
      %v2175 = vadd.f32 %v1915, %v2025
      %v2176 = vadd.f32 %v1916, %v2030
      %v2177 = vadd.f32 %v1917, %v2035
      %v2178 = vadd.f32 %v1918, %v2040
      %v2179 = vadd.f32 %v1919, %v2045
      %v2180 = vadd.f32 %v1920, %v2050
      %v2181 = vadd.f32 %v1921, %v2055
      %v2182 = vadd.f32 %v1922, %v2060
      %v2183 = vadd.f32 %v1923, %v2065
      %v2184 = vadd.f32 %v1924, %v2070
      %v2185 = vadd.f32 %v1925, %v2075
      %v2186 = vadd.f32 %v1926, %v2080
      %v2187 = vadd.f32 %v1927, %v2085
      %v2188 = vadd.f32 %v1928, %v2090
      %v2189 = vadd.f32 %v1929, %v2095
      %v2190 = vadd.f32 %v1930, %v2100
      %v2191 = vadd.f32 %v1931, %v2105
      %v2192 = vadd.f32 %v1932, %v2110
      %v2193 = vadd.f32 %v1933, %v2115
      %v2194 = vadd.f32 %v1934, %v2120
      %v2195 = vadd.f32 %v1935, %v2125
      %v2196 = vadd.f32 %v1936, %v2130
      %v2197 = vadd.f32 %v1937, %v2135
      %v2198 = vadd.f32 %v1938, %v2140
      %v2199 = vadd.f32 %v1939, %v2145
      %v2200 = vadd.f32 %v1940, %v2150
      %v2201 = vadd.f32 %v1941, %v2155
      %v2202 = vadd.f32 %v1942, %v2160
      %v2203 = vadd.f32 %v1943, %v2165
      %v2204 = vadd.f32 %v1944, %v2170
      %v2205 = vrot.slane %v273, 2
      %v2206 = vrot.slane %v274, 2
      %v2207 = vsel %vm1276, %v2205, %v2206
      %v2208 = vrot.slane %v275, 2
      %v2209 = vsel %vm1276, %v2206, %v2208
      %v2210 = vsel %vm418, %v2207, 0
      %v2212 = vsel %vm418, %v2209, 0
      %v2215 = vsel %vm485, %v284, 0
      %2217 = vmatprep.subr.mxu0 0.0
      %2218 = vmatpush1.msra.mxu0 %v2215
      %2219 = vmatprep.subr.mxu0 0.0
      %2220 = vmatpush1.msra.mxu0 0.0
      %2221 = vmatprep.subr.mxu0 0.0
      %2222 = vmatpush1.msra.mxu0 0.0
      %2223 = vmatprep.subr.mxu0 0.0
      %2224 = vmatpush1.msra.mxu0 0.0
      %2225 = vmatprep.subr.mxu0 0.0
      %2226 = vmatpush1.msra.mxu0 0.0
      %2227 = vmatprep.subr.mxu0 0.0
      %2228 = vmatpush1.msra.mxu0 0.0
      %2229 = vmatprep.subr.mxu0 0.0
      %2230 = vmatpush1.msra.mxu0 0.0
      %2231 = vmatprep.subr.mxu0 0.0
      %2232 = vmatpush1.msra.mxu0 0.0
      %2233 = vmatprep.subr.mxu0 0.0
      %2234 = vmatpush1.msra.mxu0 0.0
      %2235 = vmatprep.subr.mxu0 0.0
      %2236 = vmatpush1.msra.mxu0 0.0
      %2237 = vmatprep.subr.mxu0 0.0
      %2238 = vmatpush1.msra.mxu0 0.0
      %2239 = vmatprep.subr.mxu0 0.0
      %2240 = vmatpush1.msra.mxu0 0.0
      %2241 = vmatprep.subr.mxu0 0.0
      %2242 = vmatpush1.msra.mxu0 0.0
      %2243 = vmatprep.subr.mxu0 0.0
      %2244 = vmatpush1.msra.mxu0 0.0
      %2245 = vmatprep.subr.mxu0 0.0
      %2246 = vmatpush1.msra.mxu0 0.0
      %2247 = vmatprep.subr.mxu0 0.0
      %2248 = vmatpush1.msra.mxu0 0.0
      %2249 = vmatprep.subr.mxu0 0.0
      %2250 = vmatpush1.msra.mxu0 0.0
      %2251 = vmatprep.subr.mxu0 0.0
      %2252 = vmatpush1.msra.mxu0 0.0
      %2253 = vmatprep.subr.mxu0 0.0
      %2254 = vmatpush1.msra.mxu0 0.0
      %2255 = vmatprep.subr.mxu0 0.0
      %2256 = vmatpush1.msra.mxu0 0.0
      %2257 = vmatprep.subr.mxu0 0.0
      %2258 = vmatpush1.msra.mxu0 0.0
      %2259 = vmatprep.subr.mxu0 0.0
      %2260 = vmatpush1.msra.mxu0 0.0
      %2261 = vmatprep.subr.mxu0 0.0
      %2262 = vmatpush1.msra.mxu0 0.0
      %2263 = vmatprep.subr.mxu0 0.0
      %2264 = vmatpush1.msra.mxu0 0.0
      %2265 = vmatprep.subr.mxu0 0.0
      %2266 = vmatpush1.msra.mxu0 0.0
      %2267 = vmatprep.subr.mxu0 0.0
      %2268 = vmatpush1.msra.mxu0 0.0
      %2269 = vmatprep.subr.mxu0 0.0
      %2270 = vmatpush1.msra.mxu0 0.0
      %2271 = vmatprep.subr.mxu0 0.0
      %2272 = vmatpush1.msra.mxu0 0.0
      %2273 = vmatprep.subr.mxu0 0.0
      %2274 = vmatpush1.msra.mxu0 0.0
      %2275 = vmatprep.subr.mxu0 0.0
      %2276 = vmatpush1.msra.mxu0 0.0
      %2277 = vmatprep.subr.mxu0 0.0
      %2278 = vmatpush1.msra.mxu0 0.0
      %2279 = vmatprep.subr.mxu0 0.0
      %2280 = vmatpush1.msra.mxu0 0.0
      %2281 = vmatprep.mubr.f32.mxu0 0.0
      %2282 = vmatmul.mubr.f32.gmra.mrb[0].mxu0 %v1361
      %v2283 = vpop.f32.mrb[0].mxu0
      %v2284 = vadd.f32 0.0, %v2283
      %v2285 = vpop.f32.mrb[0].mxu0
      %2286 = vmatprep.mubr.f32.mxu0 0.0
      %2287 = vmatmul.mubr.f32.gmra.mrb[0].mxu0 %v1363
      %v2288 = vpop.f32.mrb[0].mxu0
      %v2289 = vadd.f32 0.0, %v2288
      %v2290 = vpop.f32.mrb[0].mxu0
      %2291 = vmatprep.mubr.f32.mxu0 0.0
      %2292 = vmatmul.mubr.f32.gmra.mrb[0].mxu0 %v1365
      %v2293 = vpop.f32.mrb[0].mxu0
      %v2294 = vadd.f32 0.0, %v2293
      %v2295 = vpop.f32.mrb[0].mxu0
      %2296 = vmatprep.mubr.f32.mxu0 0.0
      %2297 = vmatmul.mubr.f32.gmra.mrb[0].mxu0 %v1367
      %v2298 = vpop.f32.mrb[0].mxu0
      %v2299 = vadd.f32 0.0, %v2298
      %v2300 = vpop.f32.mrb[0].mxu0
      %2301 = vmatprep.mubr.f32.mxu0 0.0
      %2302 = vmatmul.mubr.f32.gmra.mrb[0].mxu0 %v1369
      %v2303 = vpop.f32.mrb[0].mxu0
      %v2304 = vadd.f32 0.0, %v2303
      %v2305 = vpop.f32.mrb[0].mxu0
      %2306 = vmatprep.mubr.f32.mxu0 0.0
      %2307 = vmatmul.mubr.f32.gmra.mrb[0].mxu0 %v1371
      %v2308 = vpop.f32.mrb[0].mxu0
      %v2309 = vadd.f32 0.0, %v2308
      %v2310 = vpop.f32.mrb[0].mxu0
      %2311 = vmatprep.mubr.f32.mxu0 0.0
      %2312 = vmatmul.mubr.f32.gmra.mrb[0].mxu0 %v1373
      %v2313 = vpop.f32.mrb[0].mxu0
      %v2314 = vadd.f32 0.0, %v2313
      %v2315 = vpop.f32.mrb[0].mxu0
      %2316 = vmatprep.mubr.f32.mxu0 0.0
      %2317 = vmatmul.mubr.f32.gmra.mrb[0].mxu0 %v1375
      %v2318 = vpop.f32.mrb[0].mxu0
      %v2319 = vadd.f32 0.0, %v2318
      %v2320 = vpop.f32.mrb[0].mxu0
      %2321 = vmatprep.mubr.f32.mxu0 0.0
      %2322 = vmatmul.mubr.f32.gmra.mrb[0].mxu0 %v1377
      %v2323 = vpop.f32.mrb[0].mxu0
      %v2324 = vadd.f32 0.0, %v2323
      %v2325 = vpop.f32.mrb[0].mxu0
      %2326 = vmatprep.mubr.f32.mxu0 0.0
      %2327 = vmatmul.mubr.f32.gmra.mrb[0].mxu0 %v1379
      %v2328 = vpop.f32.mrb[0].mxu0
      %v2329 = vadd.f32 0.0, %v2328
      %v2330 = vpop.f32.mrb[0].mxu0
      %2331 = vmatprep.mubr.f32.mxu0 0.0
      %2332 = vmatmul.mubr.f32.gmra.mrb[0].mxu0 %v1381
      %v2333 = vpop.f32.mrb[0].mxu0
      %v2334 = vadd.f32 0.0, %v2333
      %v2335 = vpop.f32.mrb[0].mxu0
      %2336 = vmatprep.mubr.f32.mxu0 0.0
      %2337 = vmatmul.mubr.f32.gmra.mrb[0].mxu0 %v1383
      %v2338 = vpop.f32.mrb[0].mxu0
      %v2339 = vadd.f32 0.0, %v2338
      %v2340 = vpop.f32.mrb[0].mxu0
      %2341 = vmatprep.mubr.f32.mxu0 0.0
      %2342 = vmatmul.mubr.f32.gmra.mrb[0].mxu0 %v1385
      %v2343 = vpop.f32.mrb[0].mxu0
      %v2344 = vadd.f32 0.0, %v2343
      %v2345 = vpop.f32.mrb[0].mxu0
      %2346 = vmatprep.mubr.f32.mxu0 0.0
      %2347 = vmatmul.mubr.f32.gmra.mrb[0].mxu0 %v1387
      %v2348 = vpop.f32.mrb[0].mxu0
      %v2349 = vadd.f32 0.0, %v2348
      %v2350 = vpop.f32.mrb[0].mxu0
      %2351 = vmatprep.mubr.f32.mxu0 0.0
      %2352 = vmatmul.mubr.f32.gmra.mrb[0].mxu0 %v1389
      %v2353 = vpop.f32.mrb[0].mxu0
      %v2354 = vadd.f32 0.0, %v2353
      %v2355 = vpop.f32.mrb[0].mxu0
      %2356 = vmatprep.mubr.f32.mxu0 0.0
      %2357 = vmatmul.mubr.f32.gmra.mrb[0].mxu0 %v1391
      %v2358 = vpop.f32.mrb[0].mxu0
      %v2359 = vadd.f32 0.0, %v2358
      %v2360 = vpop.f32.mrb[0].mxu0
      %2361 = vmatprep.mubr.f32.mxu0 0.0
      %2362 = vmatmul.mubr.f32.gmra.mrb[0].mxu0 %v1393
      %v2363 = vpop.f32.mrb[0].mxu0
      %v2364 = vadd.f32 0.0, %v2363
      %v2365 = vpop.f32.mrb[0].mxu0
      %2366 = vmatprep.mubr.f32.mxu0 0.0
      %2367 = vmatmul.mubr.f32.gmra.mrb[0].mxu0 %v1395
      %v2368 = vpop.f32.mrb[0].mxu0
      %v2369 = vadd.f32 0.0, %v2368
      %v2370 = vpop.f32.mrb[0].mxu0
      %2371 = vmatprep.mubr.f32.mxu0 0.0
      %2372 = vmatmul.mubr.f32.gmra.mrb[0].mxu0 %v1397
      %v2373 = vpop.f32.mrb[0].mxu0
      %v2374 = vadd.f32 0.0, %v2373
      %v2375 = vpop.f32.mrb[0].mxu0
      %2376 = vmatprep.mubr.f32.mxu0 0.0
      %2377 = vmatmul.mubr.f32.gmra.mrb[0].mxu0 %v1399
      %v2378 = vpop.f32.mrb[0].mxu0
      %v2379 = vadd.f32 0.0, %v2378
      %v2380 = vpop.f32.mrb[0].mxu0
      %2381 = vmatprep.mubr.f32.mxu0 0.0
      %2382 = vmatmul.mubr.f32.gmra.mrb[0].mxu0 %v1401
      %v2383 = vpop.f32.mrb[0].mxu0
      %v2384 = vadd.f32 0.0, %v2383
      %v2385 = vpop.f32.mrb[0].mxu0
      %2386 = vmatprep.mubr.f32.mxu0 0.0
      %2387 = vmatmul.mubr.f32.gmra.mrb[0].mxu0 %v1403
      %v2388 = vpop.f32.mrb[0].mxu0
      %v2389 = vadd.f32 0.0, %v2388
      %v2390 = vpop.f32.mrb[0].mxu0
      %2391 = vmatprep.mubr.f32.mxu0 0.0
      %2392 = vmatmul.mubr.f32.gmra.mrb[0].mxu0 %v1405
      %v2393 = vpop.f32.mrb[0].mxu0
      %v2394 = vadd.f32 0.0, %v2393
      %v2395 = vpop.f32.mrb[0].mxu0
      %2396 = vmatprep.mubr.f32.mxu0 0.0
      %2397 = vmatmul.mubr.f32.gmra.mrb[0].mxu0 %v1407
      %v2398 = vpop.f32.mrb[0].mxu0
      %v2399 = vadd.f32 0.0, %v2398
      %v2400 = vpop.f32.mrb[0].mxu0
      %2401 = vmatprep.mubr.f32.mxu0 0.0
      %2402 = vmatmul.mubr.f32.gmra.mrb[0].mxu0 %v1409
      %v2403 = vpop.f32.mrb[0].mxu0
      %v2404 = vadd.f32 0.0, %v2403
      %v2405 = vpop.f32.mrb[0].mxu0
      %2406 = vmatprep.mubr.f32.mxu0 0.0
      %2407 = vmatmul.mubr.f32.gmra.mrb[0].mxu0 %v1411
      %v2408 = vpop.f32.mrb[0].mxu0
      %v2409 = vadd.f32 0.0, %v2408
      %v2410 = vpop.f32.mrb[0].mxu0
      %2411 = vmatprep.mubr.f32.mxu0 0.0
      %2412 = vmatmul.mubr.f32.gmra.mrb[0].mxu0 %v1413
      %v2413 = vpop.f32.mrb[0].mxu0
      %v2414 = vadd.f32 0.0, %v2413
      %v2415 = vpop.f32.mrb[0].mxu0
      %2416 = vmatprep.mubr.f32.mxu0 0.0
      %2417 = vmatmul.mubr.f32.gmra.mrb[0].mxu0 %v1415
      %v2418 = vpop.f32.mrb[0].mxu0
      %v2419 = vadd.f32 0.0, %v2418
      %v2420 = vpop.f32.mrb[0].mxu0
      %2421 = vmatprep.mubr.f32.mxu0 0.0
      %2422 = vmatmul.mubr.f32.gmra.mrb[0].mxu0 %v1417
      %v2423 = vpop.f32.mrb[0].mxu0
      %v2424 = vadd.f32 0.0, %v2423
      %v2425 = vpop.f32.mrb[0].mxu0
      %2426 = vmatprep.mubr.f32.mxu0 0.0
      %2427 = vmatmul.mubr.f32.gmra.mrb[0].mxu0 %v1419
      %v2428 = vpop.f32.mrb[0].mxu0
      %v2429 = vadd.f32 0.0, %v2428
      %v2430 = vpop.f32.mrb[0].mxu0
      %2431 = vmatprep.mubr.f32.mxu0 0.0
      %2432 = vmatmul.mubr.f32.gmra.mrb[0].mxu0 %v2210
      %v2433 = vpop.f32.mrb[0].mxu0
      %v2434 = vadd.f32 0.0, %v2433
      %v2435 = vpop.f32.mrb[0].mxu0
      %2436 = vmatprep.mubr.f32.mxu0 0.0
      %2437 = vmatmul.mubr.f32.gmra.mrb[0].mxu0 %v2212
      %v2438 = vpop.f32.mrb[0].mxu0
      %v2439 = vadd.f32 0.0, %v2438
      %v2440 = vpop.f32.mrb[0].mxu0
      %2441 = vdwg.mxu0
      %v2442 = vadd.f32 %v2173, %v2284
      %v2443 = vadd.f32 %v2174, %v2289
      %v2444 = vadd.f32 %v2175, %v2294
      %v2445 = vadd.f32 %v2176, %v2299
      %v2446 = vadd.f32 %v2177, %v2304
      %v2447 = vadd.f32 %v2178, %v2309
      %v2448 = vadd.f32 %v2179, %v2314
      %v2449 = vadd.f32 %v2180, %v2319
      %v2450 = vadd.f32 %v2181, %v2324
      %v2451 = vadd.f32 %v2182, %v2329
      %v2452 = vadd.f32 %v2183, %v2334
      %v2453 = vadd.f32 %v2184, %v2339
      %v2454 = vadd.f32 %v2185, %v2344
      %v2455 = vadd.f32 %v2186, %v2349
      %v2456 = vadd.f32 %v2187, %v2354
      %v2457 = vadd.f32 %v2188, %v2359
      %v2458 = vadd.f32 %v2189, %v2364
      %v2459 = vadd.f32 %v2190, %v2369
      %v2460 = vadd.f32 %v2191, %v2374
      %v2461 = vadd.f32 %v2192, %v2379
      %v2462 = vadd.f32 %v2193, %v2384
      %v2463 = vadd.f32 %v2194, %v2389
      %v2464 = vadd.f32 %v2195, %v2394
      %v2465 = vadd.f32 %v2196, %v2399
      %v2466 = vadd.f32 %v2197, %v2404
      %v2467 = vadd.f32 %v2198, %v2409
      %v2468 = vadd.f32 %v2199, %v2414
      %v2469 = vadd.f32 %v2200, %v2419
      %v2470 = vadd.f32 %v2201, %v2424
      %v2471 = vadd.f32 %v2202, %v2429
      %v2472 = vadd.f32 %v2203, %v2434
      %v2473 = vadd.f32 %v2204, %v2439
      %v2475 = vsel %vm418, %v276, 0
      %v2478 = vsel %vm418, %v277, 0
      %v2481 = vsel %vm485, %v285, 0
      %2483 = vmatprep.subr.mxu0 0.0
      %2484 = vmatpush1.msra.mxu0 %v2481
      %2485 = vmatprep.subr.mxu0 0.0
      %2486 = vmatpush1.msra.mxu0 0.0
      %2487 = vmatprep.subr.mxu0 0.0
      %2488 = vmatpush1.msra.mxu0 0.0
      %2489 = vmatprep.subr.mxu0 0.0
      %2490 = vmatpush1.msra.mxu0 0.0
      %2491 = vmatprep.subr.mxu0 0.0
      %2492 = vmatpush1.msra.mxu0 0.0
      %2493 = vmatprep.subr.mxu0 0.0
      %2494 = vmatpush1.msra.mxu0 0.0
      %2495 = vmatprep.subr.mxu0 0.0
      %2496 = vmatpush1.msra.mxu0 0.0
      %2497 = vmatprep.subr.mxu0 0.0
      %2498 = vmatpush1.msra.mxu0 0.0
      %2499 = vmatprep.subr.mxu0 0.0
      %2500 = vmatpush1.msra.mxu0 0.0
      %2501 = vmatprep.subr.mxu0 0.0
      %2502 = vmatpush1.msra.mxu0 0.0
      %2503 = vmatprep.subr.mxu0 0.0
      %2504 = vmatpush1.msra.mxu0 0.0
      %2505 = vmatprep.subr.mxu0 0.0
      %2506 = vmatpush1.msra.mxu0 0.0
      %2507 = vmatprep.subr.mxu0 0.0
      %2508 = vmatpush1.msra.mxu0 0.0
      %2509 = vmatprep.subr.mxu0 0.0
      %2510 = vmatpush1.msra.mxu0 0.0
      %2511 = vmatprep.subr.mxu0 0.0
      %2512 = vmatpush1.msra.mxu0 0.0
      %2513 = vmatprep.subr.mxu0 0.0
      %2514 = vmatpush1.msra.mxu0 0.0
      %2515 = vmatprep.subr.mxu0 0.0
      %2516 = vmatpush1.msra.mxu0 0.0
      %2517 = vmatprep.subr.mxu0 0.0
      %2518 = vmatpush1.msra.mxu0 0.0
      %2519 = vmatprep.subr.mxu0 0.0
      %2520 = vmatpush1.msra.mxu0 0.0
      %2521 = vmatprep.subr.mxu0 0.0
      %2522 = vmatpush1.msra.mxu0 0.0
      %2523 = vmatprep.subr.mxu0 0.0
      %2524 = vmatpush1.msra.mxu0 0.0
      %2525 = vmatprep.subr.mxu0 0.0
      %2526 = vmatpush1.msra.mxu0 0.0
      %2527 = vmatprep.subr.mxu0 0.0
      %2528 = vmatpush1.msra.mxu0 0.0
      %2529 = vmatprep.subr.mxu0 0.0
      %2530 = vmatpush1.msra.mxu0 0.0
      %2531 = vmatprep.subr.mxu0 0.0
      %2532 = vmatpush1.msra.mxu0 0.0
      %2533 = vmatprep.subr.mxu0 0.0
      %2534 = vmatpush1.msra.mxu0 0.0
      %2535 = vmatprep.subr.mxu0 0.0
      %2536 = vmatpush1.msra.mxu0 0.0
      %2537 = vmatprep.subr.mxu0 0.0
      %2538 = vmatpush1.msra.mxu0 0.0
      %2539 = vmatprep.subr.mxu0 0.0
      %2540 = vmatpush1.msra.mxu0 0.0
      %2541 = vmatprep.subr.mxu0 0.0
      %2542 = vmatpush1.msra.mxu0 0.0
      %2543 = vmatprep.subr.mxu0 0.0
      %2544 = vmatpush1.msra.mxu0 0.0
      %2545 = vmatprep.subr.mxu0 0.0
      %2546 = vmatpush1.msra.mxu0 0.0
      %2547 = vmatprep.mubr.f32.mxu0 0.0
      %2548 = vmatmul.mubr.f32.gmra.mrb[0].mxu0 %v429
      %v2549 = vpop.f32.mrb[0].mxu0
      %v2550 = vadd.f32 0.0, %v2549
      %v2551 = vpop.f32.mrb[0].mxu0
      %2552 = vmatprep.mubr.f32.mxu0 0.0
      %2553 = vmatmul.mubr.f32.gmra.mrb[0].mxu0 %v431
      %v2554 = vpop.f32.mrb[0].mxu0
      %v2555 = vadd.f32 0.0, %v2554
      %v2556 = vpop.f32.mrb[0].mxu0
      %2557 = vmatprep.mubr.f32.mxu0 0.0
      %2558 = vmatmul.mubr.f32.gmra.mrb[0].mxu0 %v433
      %v2559 = vpop.f32.mrb[0].mxu0
      %v2560 = vadd.f32 0.0, %v2559
      %v2561 = vpop.f32.mrb[0].mxu0
      %2562 = vmatprep.mubr.f32.mxu0 0.0
      %2563 = vmatmul.mubr.f32.gmra.mrb[0].mxu0 %v435
      %v2564 = vpop.f32.mrb[0].mxu0
      %v2565 = vadd.f32 0.0, %v2564
      %v2566 = vpop.f32.mrb[0].mxu0
      %2567 = vmatprep.mubr.f32.mxu0 0.0
      %2568 = vmatmul.mubr.f32.gmra.mrb[0].mxu0 %v437
      %v2569 = vpop.f32.mrb[0].mxu0
      %v2570 = vadd.f32 0.0, %v2569
      %v2571 = vpop.f32.mrb[0].mxu0
      %2572 = vmatprep.mubr.f32.mxu0 0.0
      %2573 = vmatmul.mubr.f32.gmra.mrb[0].mxu0 %v439
      %v2574 = vpop.f32.mrb[0].mxu0
      %v2575 = vadd.f32 0.0, %v2574
      %v2576 = vpop.f32.mrb[0].mxu0
      %2577 = vmatprep.mubr.f32.mxu0 0.0
      %2578 = vmatmul.mubr.f32.gmra.mrb[0].mxu0 %v441
      %v2579 = vpop.f32.mrb[0].mxu0
      %v2580 = vadd.f32 0.0, %v2579
      %v2581 = vpop.f32.mrb[0].mxu0
      %2582 = vmatprep.mubr.f32.mxu0 0.0
      %2583 = vmatmul.mubr.f32.gmra.mrb[0].mxu0 %v443
      %v2584 = vpop.f32.mrb[0].mxu0
      %v2585 = vadd.f32 0.0, %v2584
      %v2586 = vpop.f32.mrb[0].mxu0
      %2587 = vmatprep.mubr.f32.mxu0 0.0
      %2588 = vmatmul.mubr.f32.gmra.mrb[0].mxu0 %v445
      %v2589 = vpop.f32.mrb[0].mxu0
      %v2590 = vadd.f32 0.0, %v2589
      %v2591 = vpop.f32.mrb[0].mxu0
      %2592 = vmatprep.mubr.f32.mxu0 0.0
      %2593 = vmatmul.mubr.f32.gmra.mrb[0].mxu0 %v447
      %v2594 = vpop.f32.mrb[0].mxu0
      %v2595 = vadd.f32 0.0, %v2594
      %v2596 = vpop.f32.mrb[0].mxu0
      %2597 = vmatprep.mubr.f32.mxu0 0.0
      %2598 = vmatmul.mubr.f32.gmra.mrb[0].mxu0 %v449
      %v2599 = vpop.f32.mrb[0].mxu0
      %v2600 = vadd.f32 0.0, %v2599
      %v2601 = vpop.f32.mrb[0].mxu0
      %2602 = vmatprep.mubr.f32.mxu0 0.0
      %2603 = vmatmul.mubr.f32.gmra.mrb[0].mxu0 %v451
      %v2604 = vpop.f32.mrb[0].mxu0
      %v2605 = vadd.f32 0.0, %v2604
      %v2606 = vpop.f32.mrb[0].mxu0
      %2607 = vmatprep.mubr.f32.mxu0 0.0
      %2608 = vmatmul.mubr.f32.gmra.mrb[0].mxu0 %v453
      %v2609 = vpop.f32.mrb[0].mxu0
      %v2610 = vadd.f32 0.0, %v2609
      %v2611 = vpop.f32.mrb[0].mxu0
      %2612 = vmatprep.mubr.f32.mxu0 0.0
      %2613 = vmatmul.mubr.f32.gmra.mrb[0].mxu0 %v455
      %v2614 = vpop.f32.mrb[0].mxu0
      %v2615 = vadd.f32 0.0, %v2614
      %v2616 = vpop.f32.mrb[0].mxu0
      %2617 = vmatprep.mubr.f32.mxu0 0.0
      %2618 = vmatmul.mubr.f32.gmra.mrb[0].mxu0 %v457
      %v2619 = vpop.f32.mrb[0].mxu0
      %v2620 = vadd.f32 0.0, %v2619
      %v2621 = vpop.f32.mrb[0].mxu0
      %2622 = vmatprep.mubr.f32.mxu0 0.0
      %2623 = vmatmul.mubr.f32.gmra.mrb[0].mxu0 %v459
      %v2624 = vpop.f32.mrb[0].mxu0
      %v2625 = vadd.f32 0.0, %v2624
      %v2626 = vpop.f32.mrb[0].mxu0
      %2627 = vmatprep.mubr.f32.mxu0 0.0
      %2628 = vmatmul.mubr.f32.gmra.mrb[0].mxu0 %v461
      %v2629 = vpop.f32.mrb[0].mxu0
      %v2630 = vadd.f32 0.0, %v2629
      %v2631 = vpop.f32.mrb[0].mxu0
      %2632 = vmatprep.mubr.f32.mxu0 0.0
      %2633 = vmatmul.mubr.f32.gmra.mrb[0].mxu0 %v463
      %v2634 = vpop.f32.mrb[0].mxu0
      %v2635 = vadd.f32 0.0, %v2634
      %v2636 = vpop.f32.mrb[0].mxu0
      %2637 = vmatprep.mubr.f32.mxu0 0.0
      %2638 = vmatmul.mubr.f32.gmra.mrb[0].mxu0 %v465
      %v2639 = vpop.f32.mrb[0].mxu0
      %v2640 = vadd.f32 0.0, %v2639
      %v2641 = vpop.f32.mrb[0].mxu0
      %2642 = vmatprep.mubr.f32.mxu0 0.0
      %2643 = vmatmul.mubr.f32.gmra.mrb[0].mxu0 %v467
      %v2644 = vpop.f32.mrb[0].mxu0
      %v2645 = vadd.f32 0.0, %v2644
      %v2646 = vpop.f32.mrb[0].mxu0
      %2647 = vmatprep.mubr.f32.mxu0 0.0
      %2648 = vmatmul.mubr.f32.gmra.mrb[0].mxu0 %v469
      %v2649 = vpop.f32.mrb[0].mxu0
      %v2650 = vadd.f32 0.0, %v2649
      %v2651 = vpop.f32.mrb[0].mxu0
      %2652 = vmatprep.mubr.f32.mxu0 0.0
      %2653 = vmatmul.mubr.f32.gmra.mrb[0].mxu0 %v471
      %v2654 = vpop.f32.mrb[0].mxu0
      %v2655 = vadd.f32 0.0, %v2654
      %v2656 = vpop.f32.mrb[0].mxu0
      %2657 = vmatprep.mubr.f32.mxu0 0.0
      %2658 = vmatmul.mubr.f32.gmra.mrb[0].mxu0 %v473
      %v2659 = vpop.f32.mrb[0].mxu0
      %v2660 = vadd.f32 0.0, %v2659
      %v2661 = vpop.f32.mrb[0].mxu0
      %2662 = vmatprep.mubr.f32.mxu0 0.0
      %2663 = vmatmul.mubr.f32.gmra.mrb[0].mxu0 %v475
      %v2664 = vpop.f32.mrb[0].mxu0
      %v2665 = vadd.f32 0.0, %v2664
      %v2666 = vpop.f32.mrb[0].mxu0
      %2667 = vmatprep.mubr.f32.mxu0 0.0
      %2668 = vmatmul.mubr.f32.gmra.mrb[0].mxu0 %v477
      %v2669 = vpop.f32.mrb[0].mxu0
      %v2670 = vadd.f32 0.0, %v2669
      %v2671 = vpop.f32.mrb[0].mxu0
      %2672 = vmatprep.mubr.f32.mxu0 0.0
      %2673 = vmatmul.mubr.f32.gmra.mrb[0].mxu0 %v479
      %v2674 = vpop.f32.mrb[0].mxu0
      %v2675 = vadd.f32 0.0, %v2674
      %v2676 = vpop.f32.mrb[0].mxu0
      %2677 = vmatprep.mubr.f32.mxu0 0.0
      %2678 = vmatmul.mubr.f32.gmra.mrb[0].mxu0 %v481
      %v2679 = vpop.f32.mrb[0].mxu0
      %v2680 = vadd.f32 0.0, %v2679
      %v2681 = vpop.f32.mrb[0].mxu0
      %2682 = vmatprep.mubr.f32.mxu0 0.0
      %2683 = vmatmul.mubr.f32.gmra.mrb[0].mxu0 %v483
      %v2684 = vpop.f32.mrb[0].mxu0
      %v2685 = vadd.f32 0.0, %v2684
      %v2686 = vpop.f32.mrb[0].mxu0
      %2687 = vmatprep.mubr.f32.mxu0 0.0
      %2688 = vmatmul.mubr.f32.gmra.mrb[0].mxu0 %v1681
      %v2689 = vpop.f32.mrb[0].mxu0
      %v2690 = vadd.f32 0.0, %v2689
      %v2691 = vpop.f32.mrb[0].mxu0
      %2692 = vmatprep.mubr.f32.mxu0 0.0
      %2693 = vmatmul.mubr.f32.gmra.mrb[0].mxu0 %v1683
      %v2694 = vpop.f32.mrb[0].mxu0
      %v2695 = vadd.f32 0.0, %v2694
      %v2696 = vpop.f32.mrb[0].mxu0
      %2697 = vmatprep.mubr.f32.mxu0 0.0
      %2698 = vmatmul.mubr.f32.gmra.mrb[0].mxu0 %v2475
      %v2699 = vpop.f32.mrb[0].mxu0
      %v2700 = vadd.f32 0.0, %v2699
      %v2701 = vpop.f32.mrb[0].mxu0
      %2702 = vmatprep.mubr.f32.mxu0 0.0
      %2703 = vmatmul.mubr.f32.gmra.mrb[0].mxu0 %v2478
      %v2704 = vpop.f32.mrb[0].mxu0
      %v2705 = vadd.f32 0.0, %v2704
      %v2706 = vpop.f32.mrb[0].mxu0
      %2707 = vdwg.mxu0
      %v2708 = vadd.f32 %v2442, %v2550
      %v2709 = vadd.f32 %v2443, %v2555
      %v2710 = vadd.f32 %v2444, %v2560
      %v2711 = vadd.f32 %v2445, %v2565
      %v2712 = vadd.f32 %v2446, %v2570
      %v2713 = vadd.f32 %v2447, %v2575
      %v2714 = vadd.f32 %v2448, %v2580
      %v2715 = vadd.f32 %v2449, %v2585
      %v2716 = vadd.f32 %v2450, %v2590
      %v2717 = vadd.f32 %v2451, %v2595
      %v2718 = vadd.f32 %v2452, %v2600
      %v2719 = vadd.f32 %v2453, %v2605
      %v2720 = vadd.f32 %v2454, %v2610
      %v2721 = vadd.f32 %v2455, %v2615
      %v2722 = vadd.f32 %v2456, %v2620
      %v2723 = vadd.f32 %v2457, %v2625
      %v2724 = vadd.f32 %v2458, %v2630
      %v2725 = vadd.f32 %v2459, %v2635
      %v2726 = vadd.f32 %v2460, %v2640
      %v2727 = vadd.f32 %v2461, %v2645
      %v2728 = vadd.f32 %v2462, %v2650
      %v2729 = vadd.f32 %v2463, %v2655
      %v2730 = vadd.f32 %v2464, %v2660
      %v2731 = vadd.f32 %v2465, %v2665
      %v2732 = vadd.f32 %v2466, %v2670
      %v2733 = vadd.f32 %v2467, %v2675
      %v2734 = vadd.f32 %v2468, %v2680
      %v2735 = vadd.f32 %v2469, %v2685
      %v2736 = vadd.f32 %v2470, %v2690
      %v2737 = vadd.f32 %v2471, %v2695
      %v2738 = vadd.f32 %v2472, %v2700
      %v2739 = vadd.f32 %v2473, %v2705
      %v2741 = vrot.slane %v276, 1
      %v2742 = vrot.slane %v277, 1
      %v2743 = vsel %vm336, %v2741, %v2742
      %v2744 = vrot.slane %v278, 1
      %v2745 = vsel %vm336, %v2742, %v2744
      %v2746 = vsel %vm418, %v2743, 0
      %v2748 = vsel %vm418, %v2745, 0
      %v2751 = vsel %vm485, %v286, 0
      %2753 = vmatprep.subr.mxu0 0.0
      %2754 = vmatpush1.msra.mxu0 %v2751
      %2755 = vmatprep.subr.mxu0 0.0
      %2756 = vmatpush1.msra.mxu0 0.0
      %2757 = vmatprep.subr.mxu0 0.0
      %2758 = vmatpush1.msra.mxu0 0.0
      %2759 = vmatprep.subr.mxu0 0.0
      %2760 = vmatpush1.msra.mxu0 0.0
      %2761 = vmatprep.subr.mxu0 0.0
      %2762 = vmatpush1.msra.mxu0 0.0
      %2763 = vmatprep.subr.mxu0 0.0
      %2764 = vmatpush1.msra.mxu0 0.0
      %2765 = vmatprep.subr.mxu0 0.0
      %2766 = vmatpush1.msra.mxu0 0.0
      %2767 = vmatprep.subr.mxu0 0.0
      %2768 = vmatpush1.msra.mxu0 0.0
      %2769 = vmatprep.subr.mxu0 0.0
      %2770 = vmatpush1.msra.mxu0 0.0
      %2771 = vmatprep.subr.mxu0 0.0
      %2772 = vmatpush1.msra.mxu0 0.0
      %2773 = vmatprep.subr.mxu0 0.0
      %2774 = vmatpush1.msra.mxu0 0.0
      %2775 = vmatprep.subr.mxu0 0.0
      %2776 = vmatpush1.msra.mxu0 0.0
      %2777 = vmatprep.subr.mxu0 0.0
      %2778 = vmatpush1.msra.mxu0 0.0
      %2779 = vmatprep.subr.mxu0 0.0
      %2780 = vmatpush1.msra.mxu0 0.0
      %2781 = vmatprep.subr.mxu0 0.0
      %2782 = vmatpush1.msra.mxu0 0.0
      %2783 = vmatprep.subr.mxu0 0.0
      %2784 = vmatpush1.msra.mxu0 0.0
      %2785 = vmatprep.subr.mxu0 0.0
      %2786 = vmatpush1.msra.mxu0 0.0
      %2787 = vmatprep.subr.mxu0 0.0
      %2788 = vmatpush1.msra.mxu0 0.0
      %2789 = vmatprep.subr.mxu0 0.0
      %2790 = vmatpush1.msra.mxu0 0.0
      %2791 = vmatprep.subr.mxu0 0.0
      %2792 = vmatpush1.msra.mxu0 0.0
      %2793 = vmatprep.subr.mxu0 0.0
      %2794 = vmatpush1.msra.mxu0 0.0
      %2795 = vmatprep.subr.mxu0 0.0
      %2796 = vmatpush1.msra.mxu0 0.0
      %2797 = vmatprep.subr.mxu0 0.0
      %2798 = vmatpush1.msra.mxu0 0.0
      %2799 = vmatprep.subr.mxu0 0.0
      %2800 = vmatpush1.msra.mxu0 0.0
      %2801 = vmatprep.subr.mxu0 0.0
      %2802 = vmatpush1.msra.mxu0 0.0
      %2803 = vmatprep.subr.mxu0 0.0
      %2804 = vmatpush1.msra.mxu0 0.0
      %2805 = vmatprep.subr.mxu0 0.0
      %2806 = vmatpush1.msra.mxu0 0.0
      %2807 = vmatprep.subr.mxu0 0.0
      %2808 = vmatpush1.msra.mxu0 0.0
      %2809 = vmatprep.subr.mxu0 0.0
      %2810 = vmatpush1.msra.mxu0 0.0
      %2811 = vmatprep.subr.mxu0 0.0
      %2812 = vmatpush1.msra.mxu0 0.0
      %2813 = vmatprep.subr.mxu0 0.0
      %2814 = vmatpush1.msra.mxu0 0.0
      %2815 = vmatprep.subr.mxu0 0.0
      %2816 = vmatpush1.msra.mxu0 0.0
      %2817 = vmatprep.mubr.f32.mxu0 0.0
      %2818 = vmatmul.mubr.f32.gmra.mrb[0].mxu0 %v718
      %v2819 = vpop.f32.mrb[0].mxu0
      %v2820 = vadd.f32 0.0, %v2819
      %v2821 = vpop.f32.mrb[0].mxu0
      %2822 = vmatprep.mubr.f32.mxu0 0.0
      %2823 = vmatmul.mubr.f32.gmra.mrb[0].mxu0 %v720
      %v2824 = vpop.f32.mrb[0].mxu0
      %v2825 = vadd.f32 0.0, %v2824
      %v2826 = vpop.f32.mrb[0].mxu0
      %2827 = vmatprep.mubr.f32.mxu0 0.0
      %2828 = vmatmul.mubr.f32.gmra.mrb[0].mxu0 %v722
      %v2829 = vpop.f32.mrb[0].mxu0
      %v2830 = vadd.f32 0.0, %v2829
      %v2831 = vpop.f32.mrb[0].mxu0
      %2832 = vmatprep.mubr.f32.mxu0 0.0
      %2833 = vmatmul.mubr.f32.gmra.mrb[0].mxu0 %v724
      %v2834 = vpop.f32.mrb[0].mxu0
      %v2835 = vadd.f32 0.0, %v2834
      %v2836 = vpop.f32.mrb[0].mxu0
      %2837 = vmatprep.mubr.f32.mxu0 0.0
      %2838 = vmatmul.mubr.f32.gmra.mrb[0].mxu0 %v726
      %v2839 = vpop.f32.mrb[0].mxu0
      %v2840 = vadd.f32 0.0, %v2839
      %v2841 = vpop.f32.mrb[0].mxu0
      %2842 = vmatprep.mubr.f32.mxu0 0.0
      %2843 = vmatmul.mubr.f32.gmra.mrb[0].mxu0 %v728
      %v2844 = vpop.f32.mrb[0].mxu0
      %v2845 = vadd.f32 0.0, %v2844
      %v2846 = vpop.f32.mrb[0].mxu0
      %2847 = vmatprep.mubr.f32.mxu0 0.0
      %2848 = vmatmul.mubr.f32.gmra.mrb[0].mxu0 %v730
      %v2849 = vpop.f32.mrb[0].mxu0
      %v2850 = vadd.f32 0.0, %v2849
      %v2851 = vpop.f32.mrb[0].mxu0
      %2852 = vmatprep.mubr.f32.mxu0 0.0
      %2853 = vmatmul.mubr.f32.gmra.mrb[0].mxu0 %v732
      %v2854 = vpop.f32.mrb[0].mxu0
      %v2855 = vadd.f32 0.0, %v2854
      %v2856 = vpop.f32.mrb[0].mxu0
      %2857 = vmatprep.mubr.f32.mxu0 0.0
      %2858 = vmatmul.mubr.f32.gmra.mrb[0].mxu0 %v734
      %v2859 = vpop.f32.mrb[0].mxu0
      %v2860 = vadd.f32 0.0, %v2859
      %v2861 = vpop.f32.mrb[0].mxu0
      %2862 = vmatprep.mubr.f32.mxu0 0.0
      %2863 = vmatmul.mubr.f32.gmra.mrb[0].mxu0 %v736
      %v2864 = vpop.f32.mrb[0].mxu0
      %v2865 = vadd.f32 0.0, %v2864
      %v2866 = vpop.f32.mrb[0].mxu0
      %2867 = vmatprep.mubr.f32.mxu0 0.0
      %2868 = vmatmul.mubr.f32.gmra.mrb[0].mxu0 %v738
      %v2869 = vpop.f32.mrb[0].mxu0
      %v2870 = vadd.f32 0.0, %v2869
      %v2871 = vpop.f32.mrb[0].mxu0
      %2872 = vmatprep.mubr.f32.mxu0 0.0
      %2873 = vmatmul.mubr.f32.gmra.mrb[0].mxu0 %v740
      %v2874 = vpop.f32.mrb[0].mxu0
      %v2875 = vadd.f32 0.0, %v2874
      %v2876 = vpop.f32.mrb[0].mxu0
      %2877 = vmatprep.mubr.f32.mxu0 0.0
      %2878 = vmatmul.mubr.f32.gmra.mrb[0].mxu0 %v742
      %v2879 = vpop.f32.mrb[0].mxu0
      %v2880 = vadd.f32 0.0, %v2879
      %v2881 = vpop.f32.mrb[0].mxu0
      %2882 = vmatprep.mubr.f32.mxu0 0.0
      %2883 = vmatmul.mubr.f32.gmra.mrb[0].mxu0 %v744
      %v2884 = vpop.f32.mrb[0].mxu0
      %v2885 = vadd.f32 0.0, %v2884
      %v2886 = vpop.f32.mrb[0].mxu0
      %2887 = vmatprep.mubr.f32.mxu0 0.0
      %2888 = vmatmul.mubr.f32.gmra.mrb[0].mxu0 %v746
      %v2889 = vpop.f32.mrb[0].mxu0
      %v2890 = vadd.f32 0.0, %v2889
      %v2891 = vpop.f32.mrb[0].mxu0
      %2892 = vmatprep.mubr.f32.mxu0 0.0
      %2893 = vmatmul.mubr.f32.gmra.mrb[0].mxu0 %v748
      %v2894 = vpop.f32.mrb[0].mxu0
      %v2895 = vadd.f32 0.0, %v2894
      %v2896 = vpop.f32.mrb[0].mxu0
      %2897 = vmatprep.mubr.f32.mxu0 0.0
      %2898 = vmatmul.mubr.f32.gmra.mrb[0].mxu0 %v750
      %v2899 = vpop.f32.mrb[0].mxu0
      %v2900 = vadd.f32 0.0, %v2899
      %v2901 = vpop.f32.mrb[0].mxu0
      %2902 = vmatprep.mubr.f32.mxu0 0.0
      %2903 = vmatmul.mubr.f32.gmra.mrb[0].mxu0 %v752
      %v2904 = vpop.f32.mrb[0].mxu0
      %v2905 = vadd.f32 0.0, %v2904
      %v2906 = vpop.f32.mrb[0].mxu0
      %2907 = vmatprep.mubr.f32.mxu0 0.0
      %2908 = vmatmul.mubr.f32.gmra.mrb[0].mxu0 %v754
      %v2909 = vpop.f32.mrb[0].mxu0
      %v2910 = vadd.f32 0.0, %v2909
      %v2911 = vpop.f32.mrb[0].mxu0
      %2912 = vmatprep.mubr.f32.mxu0 0.0
      %2913 = vmatmul.mubr.f32.gmra.mrb[0].mxu0 %v756
      %v2914 = vpop.f32.mrb[0].mxu0
      %v2915 = vadd.f32 0.0, %v2914
      %v2916 = vpop.f32.mrb[0].mxu0
      %2917 = vmatprep.mubr.f32.mxu0 0.0
      %2918 = vmatmul.mubr.f32.gmra.mrb[0].mxu0 %v758
      %v2919 = vpop.f32.mrb[0].mxu0
      %v2920 = vadd.f32 0.0, %v2919
      %v2921 = vpop.f32.mrb[0].mxu0
      %2922 = vmatprep.mubr.f32.mxu0 0.0
      %2923 = vmatmul.mubr.f32.gmra.mrb[0].mxu0 %v760
      %v2924 = vpop.f32.mrb[0].mxu0
      %v2925 = vadd.f32 0.0, %v2924
      %v2926 = vpop.f32.mrb[0].mxu0
      %2927 = vmatprep.mubr.f32.mxu0 0.0
      %2928 = vmatmul.mubr.f32.gmra.mrb[0].mxu0 %v762
      %v2929 = vpop.f32.mrb[0].mxu0
      %v2930 = vadd.f32 0.0, %v2929
      %v2931 = vpop.f32.mrb[0].mxu0
      %2932 = vmatprep.mubr.f32.mxu0 0.0
      %2933 = vmatmul.mubr.f32.gmra.mrb[0].mxu0 %v764
      %v2934 = vpop.f32.mrb[0].mxu0
      %v2935 = vadd.f32 0.0, %v2934
      %v2936 = vpop.f32.mrb[0].mxu0
      %2937 = vmatprep.mubr.f32.mxu0 0.0
      %2938 = vmatmul.mubr.f32.gmra.mrb[0].mxu0 %v766
      %v2939 = vpop.f32.mrb[0].mxu0
      %v2940 = vadd.f32 0.0, %v2939
      %v2941 = vpop.f32.mrb[0].mxu0
      %2942 = vmatprep.mubr.f32.mxu0 0.0
      %2943 = vmatmul.mubr.f32.gmra.mrb[0].mxu0 %v768
      %v2944 = vpop.f32.mrb[0].mxu0
      %v2945 = vadd.f32 0.0, %v2944
      %v2946 = vpop.f32.mrb[0].mxu0
      %2947 = vmatprep.mubr.f32.mxu0 0.0
      %2948 = vmatmul.mubr.f32.gmra.mrb[0].mxu0 %v770
      %v2949 = vpop.f32.mrb[0].mxu0
      %v2950 = vadd.f32 0.0, %v2949
      %v2951 = vpop.f32.mrb[0].mxu0
      %2952 = vmatprep.mubr.f32.mxu0 0.0
      %2953 = vmatmul.mubr.f32.gmra.mrb[0].mxu0 %v772
      %v2954 = vpop.f32.mrb[0].mxu0
      %v2955 = vadd.f32 0.0, %v2954
      %v2956 = vpop.f32.mrb[0].mxu0
      %2957 = vmatprep.mubr.f32.mxu0 0.0
      %2958 = vmatmul.mubr.f32.gmra.mrb[0].mxu0 %v774
      %v2959 = vpop.f32.mrb[0].mxu0
      %v2960 = vadd.f32 0.0, %v2959
      %v2961 = vpop.f32.mrb[0].mxu0
      %2962 = vmatprep.mubr.f32.mxu0 0.0
      %2963 = vmatmul.mubr.f32.gmra.mrb[0].mxu0 %v776
      %v2964 = vpop.f32.mrb[0].mxu0
      %v2965 = vadd.f32 0.0, %v2964
      %v2966 = vpop.f32.mrb[0].mxu0
      %2967 = vmatprep.mubr.f32.mxu0 0.0
      %2968 = vmatmul.mubr.f32.gmra.mrb[0].mxu0 %v2746
      %v2969 = vpop.f32.mrb[0].mxu0
      %v2970 = vadd.f32 0.0, %v2969
      %v2971 = vpop.f32.mrb[0].mxu0
      %2972 = vmatprep.mubr.f32.mxu0 0.0
      %2973 = vmatmul.mubr.f32.gmra.mrb[0].mxu0 %v2748
      %v2974 = vpop.f32.mrb[0].mxu0
      %v2975 = vadd.f32 0.0, %v2974
      %v2976 = vpop.f32.mrb[0].mxu0
      %2977 = vdwg.mxu0
      %v2978 = vadd.f32 %v2708, %v2820
      %v2979 = vadd.f32 %v2709, %v2825
      %v2980 = vadd.f32 %v2710, %v2830
      %v2981 = vadd.f32 %v2711, %v2835
      %v2982 = vadd.f32 %v2712, %v2840
      %v2983 = vadd.f32 %v2713, %v2845
      %v2984 = vadd.f32 %v2714, %v2850
      %v2985 = vadd.f32 %v2715, %v2855
      %v2986 = vadd.f32 %v2716, %v2860
      %v2987 = vadd.f32 %v2717, %v2865
      %v2988 = vadd.f32 %v2718, %v2870
      %v2989 = vadd.f32 %v2719, %v2875
      %v2990 = vadd.f32 %v2720, %v2880
      %v2991 = vadd.f32 %v2721, %v2885
      %v2992 = vadd.f32 %v2722, %v2890
      %v2993 = vadd.f32 %v2723, %v2895
      %v2994 = vadd.f32 %v2724, %v2900
      %v2995 = vadd.f32 %v2725, %v2905
      %v2996 = vadd.f32 %v2726, %v2910
      %v2997 = vadd.f32 %v2727, %v2915
      %v2998 = vadd.f32 %v2728, %v2920
      %v2999 = vadd.f32 %v2729, %v2925
      %v3000 = vadd.f32 %v2730, %v2930
      %v3001 = vadd.f32 %v2731, %v2935
      %v3002 = vadd.f32 %v2732, %v2940
      %v3003 = vadd.f32 %v2733, %v2945
      %v3004 = vadd.f32 %v2734, %v2950
      %v3005 = vadd.f32 %v2735, %v2955
      %v3006 = vadd.f32 %v2736, %v2960
      %v3007 = vadd.f32 %v2737, %v2965
      %v3008 = vadd.f32 %v2738, %v2970
      %v3009 = vadd.f32 %v2739, %v2975
      %v3010 = vrot.slane %v276, 2
      %v3011 = vrot.slane %v277, 2
      %v3012 = vsel %vm1276, %v3010, %v3011
      %v3013 = vrot.slane %v278, 2
      %v3014 = vsel %vm1276, %v3011, %v3013
      %v3015 = vsel %vm418, %v3012, 0
      %v3017 = vsel %vm418, %v3014, 0
      %v3020 = vsel %vm485, %v287, 0
      %3022 = vmatprep.subr.mxu0 0.0
      %3023 = vmatpush1.msra.mxu0 %v3020
      %3024 = vmatprep.subr.mxu0 0.0
      %3025 = vmatpush1.msra.mxu0 0.0
      %3026 = vmatprep.subr.mxu0 0.0
      %3027 = vmatpush1.msra.mxu0 0.0
      %3028 = vmatprep.subr.mxu0 0.0
      %3029 = vmatpush1.msra.mxu0 0.0
      %3030 = vmatprep.subr.mxu0 0.0
      %3031 = vmatpush1.msra.mxu0 0.0
      %3032 = vmatprep.subr.mxu0 0.0
      %3033 = vmatpush1.msra.mxu0 0.0
      %3034 = vmatprep.subr.mxu0 0.0
      %3035 = vmatpush1.msra.mxu0 0.0
      %3036 = vmatprep.subr.mxu0 0.0
      %3037 = vmatpush1.msra.mxu0 0.0
      %3038 = vmatprep.subr.mxu0 0.0
      %3039 = vmatpush1.msra.mxu0 0.0
      %3040 = vmatprep.subr.mxu0 0.0
      %3041 = vmatpush1.msra.mxu0 0.0
      %3042 = vmatprep.subr.mxu0 0.0
      %3043 = vmatpush1.msra.mxu0 0.0
      %3044 = vmatprep.subr.mxu0 0.0
      %3045 = vmatpush1.msra.mxu0 0.0
      %3046 = vmatprep.subr.mxu0 0.0
      %3047 = vmatpush1.msra.mxu0 0.0
      %3048 = vmatprep.subr.mxu0 0.0
      %3049 = vmatpush1.msra.mxu0 0.0
      %3050 = vmatprep.subr.mxu0 0.0
      %3051 = vmatpush1.msra.mxu0 0.0
      %3052 = vmatprep.subr.mxu0 0.0
      %3053 = vmatpush1.msra.mxu0 0.0
      %3054 = vmatprep.subr.mxu0 0.0
      %3055 = vmatpush1.msra.mxu0 0.0
      %3056 = vmatprep.subr.mxu0 0.0
      %3057 = vmatpush1.msra.mxu0 0.0
      %3058 = vmatprep.subr.mxu0 0.0
      %3059 = vmatpush1.msra.mxu0 0.0
      %3060 = vmatprep.subr.mxu0 0.0
      %3061 = vmatpush1.msra.mxu0 0.0
      %3062 = vmatprep.subr.mxu0 0.0
      %3063 = vmatpush1.msra.mxu0 0.0
      %3064 = vmatprep.subr.mxu0 0.0
      %3065 = vmatpush1.msra.mxu0 0.0
      %3066 = vmatprep.subr.mxu0 0.0
      %3067 = vmatpush1.msra.mxu0 0.0
      %3068 = vmatprep.subr.mxu0 0.0
      %3069 = vmatpush1.msra.mxu0 0.0
      %3070 = vmatprep.subr.mxu0 0.0
      %3071 = vmatpush1.msra.mxu0 0.0
      %3072 = vmatprep.subr.mxu0 0.0
      %3073 = vmatpush1.msra.mxu0 0.0
      %3074 = vmatprep.subr.mxu0 0.0
      %3075 = vmatpush1.msra.mxu0 0.0
      %3076 = vmatprep.subr.mxu0 0.0
      %3077 = vmatpush1.msra.mxu0 0.0
      %3078 = vmatprep.subr.mxu0 0.0
      %3079 = vmatpush1.msra.mxu0 0.0
      %3080 = vmatprep.subr.mxu0 0.0
      %3081 = vmatpush1.msra.mxu0 0.0
      %3082 = vmatprep.subr.mxu0 0.0
      %3083 = vmatpush1.msra.mxu0 0.0
      %3084 = vmatprep.subr.mxu0 0.0
      %3085 = vmatpush1.msra.mxu0 0.0
      %3086 = vmatprep.mubr.f32.mxu0 0.0
      %3087 = vmatmul.mubr.f32.gmra.mrb[0].mxu0 %v1365
      %v3088 = vpop.f32.mrb[0].mxu0
      %v3089 = vadd.f32 0.0, %v3088
      %v3090 = vpop.f32.mrb[0].mxu0
      %3091 = vmatprep.mubr.f32.mxu0 0.0
      %3092 = vmatmul.mubr.f32.gmra.mrb[0].mxu0 %v1367
      %v3093 = vpop.f32.mrb[0].mxu0
      %v3094 = vadd.f32 0.0, %v3093
      %v3095 = vpop.f32.mrb[0].mxu0
      %3096 = vmatprep.mubr.f32.mxu0 0.0
      %3097 = vmatmul.mubr.f32.gmra.mrb[0].mxu0 %v1369
      %v3098 = vpop.f32.mrb[0].mxu0
      %v3099 = vadd.f32 0.0, %v3098
      %v3100 = vpop.f32.mrb[0].mxu0
      %3101 = vmatprep.mubr.f32.mxu0 0.0
      %3102 = vmatmul.mubr.f32.gmra.mrb[0].mxu0 %v1371
      %v3103 = vpop.f32.mrb[0].mxu0
      %v3104 = vadd.f32 0.0, %v3103
      %v3105 = vpop.f32.mrb[0].mxu0
      %3106 = vmatprep.mubr.f32.mxu0 0.0
      %3107 = vmatmul.mubr.f32.gmra.mrb[0].mxu0 %v1373
      %v3108 = vpop.f32.mrb[0].mxu0
      %v3109 = vadd.f32 0.0, %v3108
      %v3110 = vpop.f32.mrb[0].mxu0
      %3111 = vmatprep.mubr.f32.mxu0 0.0
      %3112 = vmatmul.mubr.f32.gmra.mrb[0].mxu0 %v1375
      %v3113 = vpop.f32.mrb[0].mxu0
      %v3114 = vadd.f32 0.0, %v3113
      %v3115 = vpop.f32.mrb[0].mxu0
      %3116 = vmatprep.mubr.f32.mxu0 0.0
      %3117 = vmatmul.mubr.f32.gmra.mrb[0].mxu0 %v1377
      %v3118 = vpop.f32.mrb[0].mxu0
      %v3119 = vadd.f32 0.0, %v3118
      %v3120 = vpop.f32.mrb[0].mxu0
      %3121 = vmatprep.mubr.f32.mxu0 0.0
      %3122 = vmatmul.mubr.f32.gmra.mrb[0].mxu0 %v1379
      %v3123 = vpop.f32.mrb[0].mxu0
      %v3124 = vadd.f32 0.0, %v3123
      %v3125 = vpop.f32.mrb[0].mxu0
      %3126 = vmatprep.mubr.f32.mxu0 0.0
      %3127 = vmatmul.mubr.f32.gmra.mrb[0].mxu0 %v1381
      %v3128 = vpop.f32.mrb[0].mxu0
      %v3129 = vadd.f32 0.0, %v3128
      %v3130 = vpop.f32.mrb[0].mxu0
      %3131 = vmatprep.mubr.f32.mxu0 0.0
      %3132 = vmatmul.mubr.f32.gmra.mrb[0].mxu0 %v1383
      %v3133 = vpop.f32.mrb[0].mxu0
      %v3134 = vadd.f32 0.0, %v3133
      %v3135 = vpop.f32.mrb[0].mxu0
      %3136 = vmatprep.mubr.f32.mxu0 0.0
      %3137 = vmatmul.mubr.f32.gmra.mrb[0].mxu0 %v1385
      %v3138 = vpop.f32.mrb[0].mxu0
      %v3139 = vadd.f32 0.0, %v3138
      %v3140 = vpop.f32.mrb[0].mxu0
      %3141 = vmatprep.mubr.f32.mxu0 0.0
      %3142 = vmatmul.mubr.f32.gmra.mrb[0].mxu0 %v1387
      %v3143 = vpop.f32.mrb[0].mxu0
      %v3144 = vadd.f32 0.0, %v3143
      %v3145 = vpop.f32.mrb[0].mxu0
      %3146 = vmatprep.mubr.f32.mxu0 0.0
      %3147 = vmatmul.mubr.f32.gmra.mrb[0].mxu0 %v1389
      %v3148 = vpop.f32.mrb[0].mxu0
      %v3149 = vadd.f32 0.0, %v3148
      %v3150 = vpop.f32.mrb[0].mxu0
      %3151 = vmatprep.mubr.f32.mxu0 0.0
      %3152 = vmatmul.mubr.f32.gmra.mrb[0].mxu0 %v1391
      %v3153 = vpop.f32.mrb[0].mxu0
      %v3154 = vadd.f32 0.0, %v3153
      %v3155 = vpop.f32.mrb[0].mxu0
      %3156 = vmatprep.mubr.f32.mxu0 0.0
      %3157 = vmatmul.mubr.f32.gmra.mrb[0].mxu0 %v1393
      %v3158 = vpop.f32.mrb[0].mxu0
      %v3159 = vadd.f32 0.0, %v3158
      %v3160 = vpop.f32.mrb[0].mxu0
      %3161 = vmatprep.mubr.f32.mxu0 0.0
      %3162 = vmatmul.mubr.f32.gmra.mrb[0].mxu0 %v1395
      %v3163 = vpop.f32.mrb[0].mxu0
      %v3164 = vadd.f32 0.0, %v3163
      %v3165 = vpop.f32.mrb[0].mxu0
      %3166 = vmatprep.mubr.f32.mxu0 0.0
      %3167 = vmatmul.mubr.f32.gmra.mrb[0].mxu0 %v1397
      %v3168 = vpop.f32.mrb[0].mxu0
      %v3169 = vadd.f32 0.0, %v3168
      %v3170 = vpop.f32.mrb[0].mxu0
      %3171 = vmatprep.mubr.f32.mxu0 0.0
      %3172 = vmatmul.mubr.f32.gmra.mrb[0].mxu0 %v1399
      %v3173 = vpop.f32.mrb[0].mxu0
      %v3174 = vadd.f32 0.0, %v3173
      %v3175 = vpop.f32.mrb[0].mxu0
      %3176 = vmatprep.mubr.f32.mxu0 0.0
      %3177 = vmatmul.mubr.f32.gmra.mrb[0].mxu0 %v1401
      %v3178 = vpop.f32.mrb[0].mxu0
      %v3179 = vadd.f32 0.0, %v3178
      %v3180 = vpop.f32.mrb[0].mxu0
      %3181 = vmatprep.mubr.f32.mxu0 0.0
      %3182 = vmatmul.mubr.f32.gmra.mrb[0].mxu0 %v1403
      %v3183 = vpop.f32.mrb[0].mxu0
      %v3184 = vadd.f32 0.0, %v3183
      %v3185 = vpop.f32.mrb[0].mxu0
      %3186 = vmatprep.mubr.f32.mxu0 0.0
      %3187 = vmatmul.mubr.f32.gmra.mrb[0].mxu0 %v1405
      %v3188 = vpop.f32.mrb[0].mxu0
      %v3189 = vadd.f32 0.0, %v3188
      %v3190 = vpop.f32.mrb[0].mxu0
      %3191 = vmatprep.mubr.f32.mxu0 0.0
      %3192 = vmatmul.mubr.f32.gmra.mrb[0].mxu0 %v1407
      %v3193 = vpop.f32.mrb[0].mxu0
      %v3194 = vadd.f32 0.0, %v3193
      %v3195 = vpop.f32.mrb[0].mxu0
      %3196 = vmatprep.mubr.f32.mxu0 0.0
      %3197 = vmatmul.mubr.f32.gmra.mrb[0].mxu0 %v1409
      %v3198 = vpop.f32.mrb[0].mxu0
      %v3199 = vadd.f32 0.0, %v3198
      %v3200 = vpop.f32.mrb[0].mxu0
      %3201 = vmatprep.mubr.f32.mxu0 0.0
      %3202 = vmatmul.mubr.f32.gmra.mrb[0].mxu0 %v1411
      %v3203 = vpop.f32.mrb[0].mxu0
      %v3204 = vadd.f32 0.0, %v3203
      %v3205 = vpop.f32.mrb[0].mxu0
      %3206 = vmatprep.mubr.f32.mxu0 0.0
      %3207 = vmatmul.mubr.f32.gmra.mrb[0].mxu0 %v1413
      %v3208 = vpop.f32.mrb[0].mxu0
      %v3209 = vadd.f32 0.0, %v3208
      %v3210 = vpop.f32.mrb[0].mxu0
      %3211 = vmatprep.mubr.f32.mxu0 0.0
      %3212 = vmatmul.mubr.f32.gmra.mrb[0].mxu0 %v1415
      %v3213 = vpop.f32.mrb[0].mxu0
      %v3214 = vadd.f32 0.0, %v3213
      %v3215 = vpop.f32.mrb[0].mxu0
      %3216 = vmatprep.mubr.f32.mxu0 0.0
      %3217 = vmatmul.mubr.f32.gmra.mrb[0].mxu0 %v1417
      %v3218 = vpop.f32.mrb[0].mxu0
      %v3219 = vadd.f32 0.0, %v3218
      %v3220 = vpop.f32.mrb[0].mxu0
      %3221 = vmatprep.mubr.f32.mxu0 0.0
      %3222 = vmatmul.mubr.f32.gmra.mrb[0].mxu0 %v1419
      %v3223 = vpop.f32.mrb[0].mxu0
      %v3224 = vadd.f32 0.0, %v3223
      %v3225 = vpop.f32.mrb[0].mxu0
      %3226 = vmatprep.mubr.f32.mxu0 0.0
      %3227 = vmatmul.mubr.f32.gmra.mrb[0].mxu0 %v2210
      %v3228 = vpop.f32.mrb[0].mxu0
      %v3229 = vadd.f32 0.0, %v3228
      %v3230 = vpop.f32.mrb[0].mxu0
      %3231 = vmatprep.mubr.f32.mxu0 0.0
      %3232 = vmatmul.mubr.f32.gmra.mrb[0].mxu0 %v2212
      %v3233 = vpop.f32.mrb[0].mxu0
      %v3234 = vadd.f32 0.0, %v3233
      %v3235 = vpop.f32.mrb[0].mxu0
      %3236 = vmatprep.mubr.f32.mxu0 0.0
      %3237 = vmatmul.mubr.f32.gmra.mrb[0].mxu0 %v3015
      %v3238 = vpop.f32.mrb[0].mxu0
      %v3239 = vadd.f32 0.0, %v3238
      %v3240 = vpop.f32.mrb[0].mxu0
      %3241 = vmatprep.mubr.f32.mxu0 0.0
      %3242 = vmatmul.mubr.f32.gmra.mrb[0].mxu0 %v3017
      %v3243 = vpop.f32.mrb[0].mxu0
      %v3244 = vadd.f32 0.0, %v3243
      %v3245 = vpop.f32.mrb[0].mxu0
      %3246 = vdwg.mxu0
      %v3247 = vadd.f32 %v2978, %v3089
      %v3248 = vadd.f32 %v2979, %v3094
      %v3249 = vadd.f32 %v2980, %v3099
      %v3250 = vadd.f32 %v2981, %v3104
      %v3251 = vadd.f32 %v2982, %v3109
      %v3252 = vadd.f32 %v2983, %v3114
      %v3253 = vadd.f32 %v2984, %v3119
      %v3254 = vadd.f32 %v2985, %v3124
      %v3255 = vadd.f32 %v2986, %v3129
      %v3256 = vadd.f32 %v2987, %v3134
      %v3257 = vadd.f32 %v2988, %v3139
      %v3258 = vadd.f32 %v2989, %v3144
      %v3259 = vadd.f32 %v2990, %v3149
      %v3260 = vadd.f32 %v2991, %v3154
      %v3261 = vadd.f32 %v2992, %v3159
      %v3262 = vadd.f32 %v2993, %v3164
      %v3263 = vadd.f32 %v2994, %v3169
      %v3264 = vadd.f32 %v2995, %v3174
      %v3265 = vadd.f32 %v2996, %v3179
      %v3266 = vadd.f32 %v2997, %v3184
      %v3267 = vadd.f32 %v2998, %v3189
      %v3268 = vadd.f32 %v2999, %v3194
      %v3269 = vadd.f32 %v3000, %v3199
      %v3270 = vadd.f32 %v3001, %v3204
      %v3271 = vadd.f32 %v3002, %v3209
      %v3272 = vadd.f32 %v3003, %v3214
      %v3273 = vadd.f32 %v3004, %v3219
      %v3274 = vadd.f32 %v3005, %v3224
      %v3275 = vadd.f32 %v3006, %v3229
      %v3276 = vadd.f32 %v3007, %v3234
      %v3277 = vadd.f32 %v3008, %v3239
      %v3278 = vadd.f32 %v3009, %v3244
      %v3279 = vld [vmem:[%s2] sm:$0x1]
      %v3280 = vld [vmem:[%s4] sm:$0x1]
      %v3281 = vadd.f32 %v3279, %v3280
      %v3283 = vlaneseq
      %v3284 = vshrl.u32 %v3283, 7
      %v3285 = vsub.s32 0, %v3284
      %v3286 = vrot.slane %v3281, %v3285
      %v3288 = vadd.f32 %v3247, %v3286
      %v3289 = vadd.f32 %v3248, %v3286
      %v3290 = vadd.f32 %v3249, %v3286
      %v3291 = vadd.f32 %v3250, %v3286
      %v3292 = vadd.f32 %v3251, %v3286
      %v3293 = vadd.f32 %v3252, %v3286
      %v3294 = vadd.f32 %v3253, %v3286
      %v3295 = vadd.f32 %v3254, %v3286
      %v3296 = vadd.f32 %v3255, %v3286
      %v3297 = vadd.f32 %v3256, %v3286
      %v3298 = vadd.f32 %v3257, %v3286
      %v3299 = vadd.f32 %v3258, %v3286
      %v3300 = vadd.f32 %v3259, %v3286
      %v3301 = vadd.f32 %v3260, %v3286
      %v3302 = vadd.f32 %v3261, %v3286
      %v3303 = vadd.f32 %v3262, %v3286
      %v3304 = vadd.f32 %v3263, %v3286
      %v3305 = vadd.f32 %v3264, %v3286
      %v3306 = vadd.f32 %v3265, %v3286
      %v3307 = vadd.f32 %v3266, %v3286
      %v3308 = vadd.f32 %v3267, %v3286
      %v3309 = vadd.f32 %v3268, %v3286
      %v3310 = vadd.f32 %v3269, %v3286
      %v3311 = vadd.f32 %v3270, %v3286
      %v3312 = vadd.f32 %v3271, %v3286
      %v3313 = vadd.f32 %v3272, %v3286
      %v3314 = vadd.f32 %v3273, %v3286
      %v3315 = vadd.f32 %v3274, %v3286
      %v3316 = vadd.f32 %v3275, %v3286
      %v3317 = vadd.f32 %v3276, %v3286
      %v3318 = vadd.f32 %v3277, %v3286
      %v3319 = vadd.f32 %v3278, %v3286
      %vm3320 = vcmask 64512
      %3321 = vst.msk [vmem:[%s224] sm:$0xff] %vm3320, %v3288
      %3322 = vst.msk [vmem:[%s224 + $0x8] sm:$0xff] %vm3320, %v3289
      %3323 = vst.msk [vmem:[%s224 + $0x10] sm:$0xff] %vm3320, %v3290
      %3324 = vst.msk [vmem:[%s224 + $0x18] sm:$0xff] %vm3320, %v3291
      %3325 = vst.msk [vmem:[%s224 + $0x20] sm:$0xff] %vm3320, %v3292
      %3326 = vst.msk [vmem:[%s224 + $0x28] sm:$0xff] %vm3320, %v3293
      %3327 = vst.msk [vmem:[%s224 + $0x30] sm:$0xff] %vm3320, %v3294
      %3328 = vst.msk [vmem:[%s224 + $0x38] sm:$0xff] %vm3320, %v3295
      %3329 = vst.msk [vmem:[%s224 + $0x40] sm:$0xff] %vm3320, %v3296
      %3330 = vst.msk [vmem:[%s224 + $0x48] sm:$0xff] %vm3320, %v3297
      %3331 = vst.msk [vmem:[%s224 + $0x50] sm:$0xff] %vm3320, %v3298
      %3332 = vst.msk [vmem:[%s224 + $0x58] sm:$0xff] %vm3320, %v3299
      %3333 = vst.msk [vmem:[%s224 + $0x60] sm:$0xff] %vm3320, %v3300
      %3334 = vst.msk [vmem:[%s224 + $0x68] sm:$0xff] %vm3320, %v3301
      %3335 = vst.msk [vmem:[%s224 + $0x70] sm:$0xff] %vm3320, %v3302
      %3336 = vst.msk [vmem:[%s224 + $0x78] sm:$0xff] %vm3320, %v3303
      %3337 = vst.msk [vmem:[%s224 + $0x80] sm:$0xff] %vm3320, %v3304
      %3338 = vst.msk [vmem:[%s224 + $0x88] sm:$0xff] %vm3320, %v3305
      %3339 = vst.msk [vmem:[%s224 + $0x90] sm:$0xff] %vm3320, %v3306
      %3340 = vst.msk [vmem:[%s224 + $0x98] sm:$0xff] %vm3320, %v3307
      %3341 = vst.msk [vmem:[%s224 + $0xa0] sm:$0xff] %vm3320, %v3308
      %3342 = vst.msk [vmem:[%s224 + $0xa8] sm:$0xff] %vm3320, %v3309
      %3343 = vst.msk [vmem:[%s224 + $0xb0] sm:$0xff] %vm3320, %v3310
      %3344 = vst.msk [vmem:[%s224 + $0xb8] sm:$0xff] %vm3320, %v3311
      %3345 = vst.msk [vmem:[%s224 + $0xc0] sm:$0xff] %vm3320, %v3312
      %3346 = vst.msk [vmem:[%s224 + $0xc8] sm:$0xff] %vm3320, %v3313
      %3347 = vst.msk [vmem:[%s224 + $0xd0] sm:$0xff] %vm3320, %v3314
      %3348 = vst.msk [vmem:[%s224 + $0xd8] sm:$0xff] %vm3320, %v3315
      %3349 = vst.msk [vmem:[%s224 + $0xe0] sm:$0xff] %vm3320, %v3316
      %3350 = vst.msk [vmem:[%s224 + $0xe8] sm:$0xff] %vm3320, %v3317
      %3351 = vst.msk [vmem:[%s224 + $0xf0] sm:$0xff] %vm3320, %v3318
      %3352 = vst.msk [vmem:[%s224 + $0xf8] sm:$0xff] %vm3320, %v3319
      %p3353 = scmp.lt.s32.totalorder %s16, 1
      %s3354 = scalar_select %p3353, %s16, 1
      %s3355 = smul.addr %s3354, 32
      %s3356 = smul.addr %s3355, 8
      %s3357 = scalar_lea.vmem %s5, %s3356
      // Predicated region
      $region41: #{tpu_custom_call.1} parent=39 // pred_check
        %p3358 = pneg %p144
      $region42: #{tpu_custom_call.1} parent=39 // pred_check_branch
        %3360 = sbr.rel (%p3358) target = $region44
      $region43: #{tpu_custom_call.1} parent=39 // pred_region
        _
      $region44: #{tpu_custom_call.1} parent=39 // pred_fallthru
        _
    $region40: #{tpu_custom_call.1} parent=5 // pred_fallthru
      _
    %p3361 = scmp.le.s32.totalorder 2, %s11
    // Predicated region
    $region45: #{tpu_custom_call.1} parent=5 // pred_check
      %p3362 = pneg %p3361
    $region46: #{tpu_custom_call.1} parent=5 // pred_check_branch
      %3364 = sbr.rel (%p3362) target = $region48
    $region47: #{tpu_custom_call.1} parent=5 // pred_region
      %s3365 = ssub.s32 %s11, 2
      // Predicated region
      $region49: #{tpu_custom_call.1} parent=47 // pred_check
        %p3366 = pneg %p150
      $region50: #{tpu_custom_call.1} parent=47 // pred_check_branch
        %3368 = sbr.rel (%p3366) target = $region52
      $region51: #{tpu_custom_call.1} parent=47 // pred_region
        %p3369 = scmp.lt.s32.totalorder %s17, 1
        %s3370 = scalar_select %p3369, %s17, 1
        %s3371 = smul.addr %s3370, 32
        %s3372 = smul.addr %s3371, 8
        %s3373 = scalar_lea.vmem %s5, %s3372
      $region52: #{tpu_custom_call.1} parent=47 // pred_fallthru
        _
    $region48: #{tpu_custom_call.1} parent=5 // pred_fallthru
      _
  $region6: #{tpu_custom_call.1} parent=0 // loop_footer
    %s15 = sadd.s32 1, %s11
  $region7: #{tpu_custom_call.1} parent=0 // loop_footer_branch
    %10 = sbr.rel target = $region3
  $region8: #{tpu_custom_call.1} parent=0 // loop_exit
    _

</llo_original>
